<compile_context>
chip_gen: v7x
topology: tpu7x:2x2x1
jax: 0.10.0
libtpu: 0.0.40
codegen_flags: <defaults>
</compile_context>

<pallas_src>
import functools
import math

import jax
import jax.numpy as jnp
from jax.experimental import pallas as pl
from jax.experimental.pallas import tpu as pltpu

_GELU_CONST = math.sqrt(2.0 / math.pi)
_LANES = 128
ACT_DTYPE = jnp.bfloat16   # HBM activation / matmul-operand dtype


# ----------------------------------------------------------------------------
# Generation-aware tuning knobs (best-effort detection, conservative fallback).
# ----------------------------------------------------------------------------
def _device_kind():
    try:
        return jax.devices()[0].device_kind.lower()
    except Exception:
        return ""


def _vmem_capacity_bytes():
    try:
        cap = int(pltpu.get_tpu_info().vmem_capacity_bytes)
        if cap >= 32 * 1024 * 1024:
            return cap
    except Exception:
        pass
    kind = _device_kind()
    if "v7" in kind:
        return 64 * 1024 * 1024            # v7x: 64 MiB per TensorCore
    if kind:
        return 128 * 1024 * 1024           # v4 / v5e / v5p / v6e
    return 64 * 1024 * 1024                # unknown -> conservative


_VMEM_CAP = _vmem_capacity_bytes()
_VMEM_LIMIT = max(32 * 1024 * 1024, min(int(0.80 * _VMEM_CAP), 110 * 1024 * 1024))
_VMEM_BUDGET = max(24 * 1024 * 1024, int(0.55 * _VMEM_CAP))
_IS_V5E = any(t in _device_kind() for t in ("v5e", "v5 lite", "v5lite"))
# v5e's MXU is 128-deep: the k*C im2col slab buys nothing there, skip it.
_FUSE_TAPS = not _IS_V5E


# ----------------------------------------------------------------------------
# In-kernel building blocks (matmul operands bf16, accumulation / LN in f32).
# ----------------------------------------------------------------------------
def _dilated_conv(x, w, b, *, k, dilation, causal, fuse_taps):
    """Dilated 1-D conv over the sequence dim, driven through the MXU.

    x: (Bb, S, Cin) bf16 (padded channels are exactly zero).
    w: (k, Cin, Cout) bf16.  b: (1, Cout) f32.
    Returns (Bb*S, Cout) f32.
    """
    Bb, S, Cin = x.shape
    Cout = w.shape[-1]
    pad_total = (k - 1) * dilation
    pad_left = pad_total if causal else pad_total // 2
    pad_right = pad_total - pad_left

    if pad_total:                               # in-kernel SAME / causal padding (bf16)
        parts = []
        if pad_left:
            parts.append(jnp.zeros((Bb, pad_left, Cin), x.dtype))
        parts.append(x)
        if pad_right:
            parts.append(jnp.zeros((Bb, pad_right, Cin), x.dtype))
        xpad = jnp.concatenate(parts, axis=1)   # (Bb, S_pad, Cin) bf16
    else:
        xpad = x

    if k == 1:
        acc = jnp.dot(xpad.reshape(Bb * S, Cin), w[0],
                      preferred_element_type=jnp.float32)
    elif fuse_taps:
        # im2col: fold the k taps into the lane dim -> single MXU matmul with
        # contraction k*Cin (v6e/v7x: 256-deep MXU, fewer weight-load passes).
        taps = [
            jax.lax.slice(xpad, (0, j * dilation, 0), (Bb, j * dilation + S, Cin))
            for j in range(k)
        ]
        slab = jnp.concatenate(taps, axis=-1).reshape(Bb * S, k * Cin)   # bf16
        acc = jnp.dot(slab, w.reshape(k * Cin, Cout),
                      preferred_element_type=jnp.float32)
    else:
        # v5e path: k accumulated K=Cin matmuls, no k*Cin slab materialization.
        acc = jnp.zeros((Bb * S, Cout), jnp.float32)
        for j in range(k):
            tap = jax.lax.slice(xpad, (0, j * dilation, 0),
                                (Bb, j * dilation + S, Cin)).reshape(Bb * S, Cin)
            acc = acc + jnp.dot(tap, w[j], preferred_element_type=jnp.float32)

    return acc + b.astype(jnp.float32)


def _ln_relu(y, g, be, *, c_real):
    """Layer_norm (mean/var over channels, unbiased=False, eps=1e-8) + ReLU.

    y: (rows, C_pad) f32 where channels >= c_real are exactly zero, so
    var = E[y^2] - mean^2 over all lanes equals the real-channel variance
    (no lane mask needed).  gamma/beta are zero-padded so padded lanes stay 0.
    """
    inv_c = 1.0 / c_real
    mean = jnp.sum(y, axis=-1, keepdims=True) * inv_c
    msq = jnp.sum(y * y, axis=-1, keepdims=True) * inv_c
    var = jnp.maximum(msq - mean * mean, 0.0)
    yn = (y - mean) * jax.lax.rsqrt(var + 1e-8)
    yn = yn * g.astype(jnp.float32) + be.astype(jnp.float32)
    return jnp.maximum(yn, 0.0)


# ----------------------------------------------------------------------------
# Fused kernels
# ----------------------------------------------------------------------------
def _stack_kernel(x_ref, w1_ref, b1_ref, g1_ref, be1_ref,
                  w2_ref, b2_ref, g2_ref, be2_ref, out_ref,
                  *, k, dilations, causal, c_real, fuse_taps):
    """All L ResidualBlocks of an encoder/decoder stack, fully in VMEM.

    Each block: conv1(dil) + LN + ReLU -> conv2(2*dil) + LN + ReLU -> +x.
    Weight refs are stacked over layers: w* (L,k,C,C), vectors (L,1,C).
    """
    x = x_ref[...]                                        # (Bb, S, Cp) bf16
    Bb, S, Cp = x.shape
    for l, d in enumerate(dilations):
        h = _dilated_conv(x, w1_ref[l], b1_ref[l], k=k, dilation=d,
                          causal=causal, fuse_taps=fuse_taps)
        h = _ln_relu(h, g1_ref[l], be1_ref[l], c_real=c_real)
        h = h.astype(jnp.bfloat16).reshape(Bb, S, Cp)
        h = _dilated_conv(h, w2_ref[l], b2_ref[l], k=k, dilation=2 * d,
                          causal=causal, fuse_taps=fuse_taps)
        h = _ln_relu(h, g2_ref[l], be2_ref[l], c_real=c_real)
        x = (h.reshape(Bb, S, Cp) + x.astype(jnp.float32)).astype(jnp.bfloat16)
    out_ref[...] = x.astype(out_ref.dtype)


def _projector_kernel(x_ref, add_ref, wd_ref, bd_ref, wu_ref, bu_ref, out_ref):
    """x = enc_out + embed_de (fused add); then x + up(gelu(down(x)))."""
    Bb, S, C = x_ref.shape
    x2 = (x_ref[...].astype(jnp.float32)
          + add_ref[...].astype(jnp.float32)).reshape(Bb * S, C)

    h = jnp.dot(x2.astype(jnp.bfloat16), wd_ref[...],
                preferred_element_type=jnp.float32) + bd_ref[...].astype(jnp.float32)
    cdf = 0.5 * (1.0 + jnp.tanh(_GELU_CONST * (h + 0.044715 * h * h * h)))
    h = (h * cdf).astype(jnp.bfloat16)
    up = jnp.dot(h, wu_ref[...],
                 preferred_element_type=jnp.float32) + bu_ref[...].astype(jnp.float32)
    out_ref[...] = (up + x2).reshape(Bb, S, C).astype(out_ref.dtype)


def _final_logits_kernel(x_ref, w_ref, b_ref, out_ref):
    """masked_logits (test=False): pre-ReLU + pointwise projection to item_size."""
    x = jnp.maximum(x_ref[...], jnp.zeros((), x_ref.dtype))   # ReLU in bf16 (exact)
    acc = jnp.dot(x, w_ref[...], preferred_element_type=jnp.float32)
    out_ref[...] = (acc + b_ref[...].astype(jnp.float32)).astype(out_ref.dtype)


# ----------------------------------------------------------------------------
# pallas_call wrappers
# ----------------------------------------------------------------------------
def _pick_batch_block(B, S, per_row_bytes, fixed_bytes, target_rows=1024):
    """Rows per grid step: fill the MXU M dim, respect the VMEM budget, and
    keep >= 2 grid steps so both v7x TensorCores get work."""
    avail = max(_VMEM_BUDGET - fixed_bytes, per_row_bytes * 8)
    rows = min(target_rows, max(1, avail // per_row_bytes))
    bb = max(1, min(B, rows // max(S, 1)))
    if B >= 2:
        bb = min(bb, pl.cdiv(B, 2))        # >= 2 parallel grid steps
    return int(bb)


def residual_stack(x, sp, *, k, dilations, causal, c_real):
    """One pallas_call for the whole encoder or decoder stack."""
    B, S, Cp = x.shape
    L = sp["w1"].shape[0]
    # Rough per-row VMEM bytes: dbl-buffered bf16 I/O + bf16 pad/slab + f32
    # accumulator / LN temps; 1.5x slack for compiler temporaries.
    per_row = int((32 + 2 * k) * Cp * 1.5)
    fixed = 2 * L * (2 * k * Cp * Cp * 2 + 6 * Cp * 4)   # dbl-buffered weights
    bb = _pick_batch_block(B, S, per_row, fixed)
    # TODO(synk): for very long sequences add an S-tile grid axis with
    # (k-1)*max_dilation halos to bound per-step VMEM.
    # TODO(synk): on v7x, mark the constant-index weight specs
    # pipeline_mode=pl.Buffered(1) (or persistent scratch) to reclaim the dead
    # second pipeline buffer.
    kernel = functools.partial(_stack_kernel, k=k, dilations=tuple(dilations),
                               causal=causal, c_real=c_real,
                               fuse_taps=_FUSE_TAPS)
    act = pl.BlockSpec((bb, S, Cp), lambda i: (i, 0, 0))
    wsp = pl.BlockSpec((L, k, Cp, Cp), lambda i: (0, 0, 0, 0))
    vec = pl.BlockSpec((L, 1, Cp), lambda i: (0, 0, 0))
    return pl.pallas_call(
        kernel,
        grid=(pl.cdiv(B, bb),),
        in_specs=[act, wsp, vec, vec, vec, wsp, vec, vec, vec],
        out_specs=act,
        out_shape=jax.ShapeDtypeStruct((B, S, Cp), ACT_DTYPE),
        compiler_params=pltpu.CompilerParams(
            dimension_semantics=("parallel",),
            vmem_limit_bytes=_VMEM_LIMIT),
    )(x, sp["w1"], sp["b1"], sp["g1"], sp["be1"],
      sp["w2"], sp["b2"], sp["g2"], sp["be2"])


def projector(x, add, wd, bd, wu, bu):
    B, S, C = x.shape
    H = wd.shape[-1]
    per_row = int(48 * max(C, H) * 1.5)
    fixed = 2 * 2 * (C * H * 2)            # dbl-buffered down + up weights (bf16)
    bb = _pick_batch_block(B, S, per_row, fixed)
    act = pl.BlockSpec((bb, S, C), lambda i: (i, 0, 0))
    return pl.pallas_call(
        _projector_kernel,
        grid=(pl.cdiv(B, bb),),
        in_specs=[act, act,
                  pl.BlockSpec((C, H), lambda i: (0, 0)),
                  pl.BlockSpec((1, H), lambda i: (0, 0)),
                  pl.BlockSpec((H, C), lambda i: (0, 0)),
                  pl.BlockSpec((1, C), lambda i: (0, 0))],
        out_specs=act,
        out_shape=jax.ShapeDtypeStruct((B, S, C), ACT_DTYPE),
        compiler_params=pltpu.CompilerParams(
            dimension_semantics=("parallel",),
            vmem_limit_bytes=_VMEM_LIMIT),
    )(x, add, wd, bd, wu, bu)


def final_logits(x2d, w, b, *, out_cols):
    """ReLU + pointwise item projection.  The padded item axis is the OUTER
    grid axis so each (C, tn) weight tile is streamed from HBM exactly once;
    rows are the inner axis.  Output sliced back to the real item_size."""
    R, C = x2d.shape
    Np = w.shape[-1]                         # item_size padded to a lane multiple
    tr = min(R, 512)
    tn = min(Np, 1024)
    # TODO(synk): on v7x, store final_w as fp8 for ~2x MXU throughput and half
    # the weight HBM traffic (gate on accuracy).
    out = pl.pallas_call(
        _final_logits_kernel,
        grid=(pl.cdiv(Np, tn), pl.cdiv(R, tr)),
        in_specs=[pl.BlockSpec((tr, C), lambda n, r: (r, 0)),
                  pl.BlockSpec((C, tn), lambda n, r: (0, n)),
                  pl.BlockSpec((1, tn), lambda n, r: (0, n))],
        out_specs=pl.BlockSpec((tr, tn), lambda n, r: (r, n)),
        out_shape=jax.ShapeDtypeStruct((R, Np), jnp.float32),
        compiler_params=pltpu.CompilerParams(
            dimension_semantics=("parallel", "parallel"),
            vmem_limit_bytes=_VMEM_LIMIT),
    )(x2d, w, b)
    return out[:, :out_cols]


# ----------------------------------------------------------------------------
# Model glue (plain JAX): init, lane-padding / bf16 packing, embeddings, gather.
# ----------------------------------------------------------------------------
def init_params(key, model_para):
    item_size = model_para["item_size"]
    C = model_para["dilated_channels"]
    k = model_para["kernel_size"]
    dilations = model_para["dilations"]
    hidden = 2 * C      # Projector(residual_channels, 2 * residual_channels)

    keys = iter(jax.random.split(key, 8 * len(dilations) + 8))

    def tn(shape):      # truncated_normal_(w, 0, 0.02)
        return 0.02 * jax.random.truncated_normal(next(keys), -2.0, 2.0, shape,
                                                  jnp.float32)

    def block_params():
        return {
            "w1": tn((k, C, C)), "b1": jnp.zeros((C,), jnp.float32),
            "g1": jnp.ones((C,), jnp.float32), "be1": jnp.zeros((C,), jnp.float32),
            "w2": tn((k, C, C)), "b2": jnp.zeros((C,), jnp.float32),
            "g2": jnp.ones((C,), jnp.float32), "be2": jnp.zeros((C,), jnp.float32),
        }

    return {
        "embed_en": tn((item_size, C)),
        "embed_de": tn((item_size, C)),
        "encoder": [block_params() for _ in dilations],
        "decoder": [block_params() for _ in dilations],
        "proj_down_w": tn((1, C, hidden)),
        "proj_down_b": jnp.zeros((hidden,), jnp.float32),
        "proj_up_w": tn((1, hidden, C)),
        "proj_up_b": jnp.zeros((C,), jnp.float32),
        "final_w": tn((1, C, item_size)),
        "final_b": jnp.zeros((item_size,), jnp.float32),
    }


def _round_up(n, m=_LANES):
    return ((n + m - 1) // m) * m


def _pad_axis(a, axis, size):
    pad = size - a.shape[axis]
    if pad <= 0:
        return a
    widths = [(0, 0)] * a.ndim
    widths[axis] = (0, pad)
    return jnp.pad(a, widths)


def pack_params(params, model_para):
    """Zero-pad channel/item dims to 128-lane multiples, cast matmul weights to
    bf16, and stack per-layer weights so a whole stack is one pallas_call."""
    # TODO(synk): if production dilated_channels stays well below 128, revisit
    # the lane layout instead of zero-padding to 128.
    C = model_para["dilated_channels"]
    Cp = _round_up(C)
    Hp = _round_up(2 * C)
    item_p = _round_up(model_para["item_size"])

    def vec(v, n):                   # (c,) -> (1, n) f32, zero-padded
        return _pad_axis(v, 0, n).reshape(1, n).astype(jnp.float32)

    def w3(w, cin_p, cout_p):        # (k, cin, cout) -> padded bf16
        return _pad_axis(_pad_axis(w, 1, cin_p), 2, cout_p).astype(ACT_DTYPE)

    def stack(blocks):
        # NOTE: gamma is zero-padded (not one-padded) so padded lanes stay 0.
        return {
            "w1": jnp.stack([w3(b["w1"], Cp, Cp) for b in blocks]),
            "b1": jnp.stack([vec(b["b1"], Cp) for b in blocks]),
            "g1": jnp.stack([vec(b["g1"], Cp) for b in blocks]),
            "be1": jnp.stack([vec(b["be1"], Cp) for b in blocks]),
            "w2": jnp.stack([w3(b["w2"], Cp, Cp) for b in blocks]),
            "b2": jnp.stack([vec(b["b2"], Cp) for b in blocks]),
            "g2": jnp.stack([vec(b["g2"], Cp) for b in blocks]),
            "be2": jnp.stack([vec(b["be2"], Cp) for b in blocks]),
        }

    return {
        "embed_en": _pad_axis(params["embed_en"], 1, Cp).astype(ACT_DTYPE),
        "embed_de": _pad_axis(params["embed_de"], 1, Cp).astype(ACT_DTYPE),
        "encoder": stack(params["encoder"]),
        "decoder": stack(params["decoder"]),
        "proj_down_w": w3(params["proj_down_w"], Cp, Hp)[0],
        "proj_down_b": vec(params["proj_down_b"], Hp),
        "proj_up_w": w3(params["proj_up_w"], Hp, Cp)[0],
        "proj_up_b": vec(params["proj_up_b"], Cp),
        "final_w": w3(params["final_w"], Cp, item_p)[0],
        "final_b": vec(params["final_b"], item_p),
    }


def grec_forward(packed, seq_en, seq_de, positions, *, dilations, kernel_size,
                 item_size, c_real):
    # Embedding lookups / position gather are plain-JAX gathers (glue).
    x = packed["embed_en"][seq_en]                           # (B, S, Cp) bf16
    # Encoder: all residual blocks fused in ONE pallas_call (causal=False).
    x = residual_stack(x, packed["encoder"], k=kernel_size, dilations=dilations,
                       causal=False, c_real=c_real)
    emb_de = packed["embed_de"][seq_de]
    # Projector; the `encoder_out + embed_de` add is fused into the kernel.
    x = projector(x, emb_de, packed["proj_down_w"], packed["proj_down_b"],
                  packed["proj_up_w"], packed["proj_up_b"])
    # Decoder: all residual blocks fused in ONE pallas_call (causal=True).
    x = residual_stack(x, packed["decoder"], k=kernel_size, dilations=dilations,
                       causal=True, c_real=c_real)
    # gather_ids: pick `positions` rows per batch element.
    gathered = jnp.take_along_axis(x, positions[:, :, None], axis=1)  # (B, M, Cp)
    B, M, Cp = gathered.shape
    # masked_logits (test=False): ReLU + final pointwise conv, fused in kernel.
    # TODO(synk): test=True branch (last-position softmax probs) not implemented.
    return final_logits(gathered.reshape(B * M, Cp), packed["final_w"],
                        packed["final_b"], out_cols=item_size)


if __name__ == "__main__":
    model_para = {
        "item_size": 64,
        "dilations": [1, 2],
        "dilated_channels": 32,
        "kernel_size": 3,
    }
    B, S, M = 2, 8, 4

    key = jax.random.PRNGKey(0)
    pkey, k1, k2, k3 = jax.random.split(key, 4)
    params = init_params(pkey, model_para)
    packed = pack_params(params, model_para)

    seq_en = jax.random.randint(k1, (B, S), 0, model_para["item_size"], dtype=jnp.int32)
    seq_de = jax.random.randint(k2, (B, S), 0, model_para["item_size"], dtype=jnp.int32)
    positions = jax.random.randint(k3, (B, M), 0, S, dtype=jnp.int32)

    fwd = jax.jit(functools.partial(
        grec_forward,
        dilations=tuple(model_para["dilations"]),      # static config
        kernel_size=model_para["kernel_size"],
        item_size=model_para["item_size"],
        c_real=model_para["dilated_channels"]))

    out = fwd(packed, seq_en, seq_de, positions)
    out = jax.block_until_ready(out)
    assert out.shape == (B * M, model_para["item_size"])
    assert bool(jnp.all(jnp.isfinite(out)))
    print("KERNEL_OK")
</pallas_src>

<mosaic_0001>
module attributes {stable_mosaic.version = 11 : i64} {
  func.func @_projector_kernel(%arg0: i32, %arg1: memref<1x8x128xbf16, #tpu.memory_space<vmem>>, %arg2: memref<1x8x128xbf16, #tpu.memory_space<vmem>>, %arg3: memref<128x128xbf16, #tpu.memory_space<vmem>>, %arg4: memref<1x128xf32, #tpu.memory_space<vmem>>, %arg5: memref<128x128xbf16, #tpu.memory_space<vmem>>, %arg6: memref<1x128xf32, #tpu.memory_space<vmem>>, %arg7: memref<1x8x128xbf16, #tpu.memory_space<vmem>>) attributes {dimension_semantics = [#tpu.dimension_semantics<parallel>], iteration_bounds = array<i64: 2>, scalar_prefetch = 0 : i64, scratch_operands = 0 : i64, tpu.core_type = #tpu.core_type<tc>, window_params = [{transform_indices = @transform_0, window_bounds = array<i64: 1, 8, 128>}, {transform_indices = @transform_1, window_bounds = array<i64: 1, 8, 128>}, {pipeline_mode = #tpu.pipeline_mode<synchronous>, transform_indices = @transform_2, window_bounds = array<i64: 128, 128>}, {pipeline_mode = #tpu.pipeline_mode<synchronous>, transform_indices = @transform_3, window_bounds = array<i64: 1, 128>}, {pipeline_mode = #tpu.pipeline_mode<synchronous>, transform_indices = @transform_4, window_bounds = array<i64: 128, 128>}, {pipeline_mode = #tpu.pipeline_mode<synchronous>, transform_indices = @transform_5, window_bounds = array<i64: 1, 128>}, {transform_indices = @transform_6, window_bounds = array<i64: 1, 8, 128>}]} {
    %c0 = arith.constant 0 : index
    %c0_0 = arith.constant 0 : index
    %c0_1 = arith.constant 0 : index
    %0 = vector.load %arg1[%c0, %c0_0, %c0_1] : memref<1x8x128xbf16, #tpu.memory_space<vmem>>, vector<1x8x128xbf16>
    %1 = arith.extf %0 : vector<1x8x128xbf16> to vector<1x8x128xf32>
    %c0_2 = arith.constant 0 : index
    %c0_3 = arith.constant 0 : index
    %c0_4 = arith.constant 0 : index
    %2 = vector.load %arg2[%c0_2, %c0_3, %c0_4] : memref<1x8x128xbf16, #tpu.memory_space<vmem>>, vector<1x8x128xbf16>
    %3 = arith.extf %2 : vector<1x8x128xbf16> to vector<1x8x128xf32>
    %4 = arith.addf %1, %3 : vector<1x8x128xf32>
    %5 = vector.shape_cast %4 : vector<1x8x128xf32> to vector<8x128xf32>
    %6 = arith.truncf %5 : vector<8x128xf32> to vector<8x128xbf16>
    %c0_5 = arith.constant 0 : index
    %c0_6 = arith.constant 0 : index
    %7 = vector.load %arg3[%c0_5, %c0_6] : memref<128x128xbf16, #tpu.memory_space<vmem>>, vector<128x128xbf16>
    %cst = arith.constant dense<0.000000e+00> : vector<8x128xf32>
    %8 = tpu.matmul %6, %7, %cst {dimension_numbers = #tpu.dot_dimension_numbers<[1], [0], [0], [1], [0, 0, 1, 1], [], []>} : vector<8x128xbf16>, vector<128x128xbf16>, vector<8x128xf32> -> vector<8x128xf32>
    %c0_7 = arith.constant 0 : index
    %c0_8 = arith.constant 0 : index
    %9 = vector.load %arg4[%c0_7, %c0_8] : memref<1x128xf32, #tpu.memory_space<vmem>>, vector<1x128xf32>
    %10 = vector.broadcast %9 : vector<1x128xf32> to vector<8x128xf32>
    %11 = arith.addf %8, %10 : vector<8x128xf32>
    %cst_9 = arith.constant 4.471500e-02 : f32
    %12 = vector.broadcast %cst_9 : f32 to vector<8x128xf32>
    %13 = arith.mulf %12, %11 : vector<8x128xf32>
    %14 = arith.mulf %13, %11 : vector<8x128xf32>
    %15 = arith.mulf %14, %11 : vector<8x128xf32>
    %16 = arith.addf %11, %15 : vector<8x128xf32>
    %cst_10 = arith.constant 0.797884583 : f32
    %17 = vector.broadcast %cst_10 : f32 to vector<8x128xf32>
    %18 = arith.mulf %17, %16 : vector<8x128xf32>
    %19 = math.tanh %18 : vector<8x128xf32>
    %cst_11 = arith.constant 1.000000e+00 : f32
    %20 = vector.broadcast %cst_11 : f32 to vector<8x128xf32>
    %21 = arith.addf %20, %19 : vector<8x128xf32>
    %cst_12 = arith.constant 5.000000e-01 : f32
    %22 = vector.broadcast %cst_12 : f32 to vector<8x128xf32>
    %23 = arith.mulf %22, %21 : vector<8x128xf32>
    %24 = arith.mulf %11, %23 : vector<8x128xf32>
    %25 = arith.truncf %24 : vector<8x128xf32> to vector<8x128xbf16>
    %c0_13 = arith.constant 0 : index
    %c0_14 = arith.constant 0 : index
    %26 = vector.load %arg5[%c0_13, %c0_14] : memref<128x128xbf16, #tpu.memory_space<vmem>>, vector<128x128xbf16>
    %cst_15 = arith.constant dense<0.000000e+00> : vector<8x128xf32>
    %27 = tpu.matmul %25, %26, %cst_15 {dimension_numbers = #tpu.dot_dimension_numbers<[1], [0], [0], [1], [0, 0, 1, 1], [], []>} : vector<8x128xbf16>, vector<128x128xbf16>, vector<8x128xf32> -> vector<8x128xf32>
    %c0_16 = arith.constant 0 : index
    %c0_17 = arith.constant 0 : index
    %28 = vector.load %arg6[%c0_16, %c0_17] : memref<1x128xf32, #tpu.memory_space<vmem>>, vector<1x128xf32>
    %29 = vector.broadcast %28 : vector<1x128xf32> to vector<8x128xf32>
    %30 = arith.addf %27, %29 : vector<8x128xf32>
    %31 = arith.addf %30, %5 : vector<8x128xf32>
    %32 = vector.shape_cast %31 : vector<8x128xf32> to vector<1x8x128xf32>
    %33 = arith.truncf %32 : vector<1x8x128xf32> to vector<1x8x128xbf16>
    %c0_18 = arith.constant 0 : index
    %c0_19 = arith.constant 0 : index
    %c0_20 = arith.constant 0 : index
    %34 = vector.load %arg7[%c0_18, %c0_19, %c0_20] : memref<1x8x128xbf16, #tpu.memory_space<vmem>>, vector<1x8x128xbf16>
    tpu.vector_store %arg7[%c0_18, %c0_19, %c0_20], %33 {strides = array<i32>} : memref<1x8x128xbf16, #tpu.memory_space<vmem>>, vector<1x8x128xbf16>,
    return
  }
  func.func @transform_0(%arg0: i32) -> (i32, i32, i32) {
    %c0_i32 = arith.constant 0 : i32
    %c0_i32_0 = arith.constant 0 : i32
    %c0_i32_1 = arith.constant 0 : i32
    return %arg0, %c0_i32, %c0_i32_0 : i32, i32, i32
  }
  func.func @transform_1(%arg0: i32) -> (i32, i32, i32) {
    %c0_i32 = arith.constant 0 : i32
    %c0_i32_0 = arith.constant 0 : i32
    %c0_i32_1 = arith.constant 0 : i32
    return %arg0, %c0_i32, %c0_i32_0 : i32, i32, i32
  }
  func.func @transform_2(%arg0: i32) -> (i32, i32) {
    %c0_i32 = arith.constant 0 : i32
    %c0_i32_0 = arith.constant 0 : i32
    %c0_i32_1 = arith.constant 0 : i32
    return %c0_i32, %c0_i32_0 : i32, i32
  }
  func.func @transform_3(%arg0: i32) -> (i32, i32) {
    %c0_i32 = arith.constant 0 : i32
    %c0_i32_0 = arith.constant 0 : i32
    %c0_i32_1 = arith.constant 0 : i32
    return %c0_i32, %c0_i32_0 : i32, i32
  }
  func.func @transform_4(%arg0: i32) -> (i32, i32) {
    %c0_i32 = arith.constant 0 : i32
    %c0_i32_0 = arith.constant 0 : i32
    %c0_i32_1 = arith.constant 0 : i32
    return %c0_i32, %c0_i32_0 : i32, i32
  }
  func.func @transform_5(%arg0: i32) -> (i32, i32) {
    %c0_i32 = arith.constant 0 : i32
    %c0_i32_0 = arith.constant 0 : i32
    %c0_i32_1 = arith.constant 0 : i32
    return %c0_i32, %c0_i32_0 : i32, i32
  }
  func.func @transform_6(%arg0: i32) -> (i32, i32, i32) {
    %c0_i32 = arith.constant 0 : i32
    %c0_i32_0 = arith.constant 0 : i32
    %c0_i32_1 = arith.constant 0 : i32
    return %arg0, %c0_i32, %c0_i32_0 : i32, i32, i32
  }
}

module attributes {stable_mosaic.version = 11 : i64} {
  func.func @_stack_kernel(%arg0: i32, %arg1: memref<1x8x128xbf16, #tpu.memory_space<vmem>>, %arg2: memref<2x3x128x128xbf16, #tpu.memory_space<vmem>>, %arg3: memref<2x1x128xf32, #tpu.memory_space<vmem>>, %arg4: memref<2x1x128xf32, #tpu.memory_space<vmem>>, %arg5: memref<2x1x128xf32, #tpu.memory_space<vmem>>, %arg6: memref<2x3x128x128xbf16, #tpu.memory_space<vmem>>, %arg7: memref<2x1x128xf32, #tpu.memory_space<vmem>>, %arg8: memref<2x1x128xf32, #tpu.memory_space<vmem>>, %arg9: memref<2x1x128xf32, #tpu.memory_space<vmem>>, %arg10: memref<1x8x128xbf16, #tpu.memory_space<vmem>>) attributes {dimension_semantics = [#tpu.dimension_semantics<parallel>], iteration_bounds = array<i64: 2>, scalar_prefetch = 0 : i64, scratch_operands = 0 : i64, tpu.core_type = #tpu.core_type<tc>, window_params = [{transform_indices = @transform_0, window_bounds = array<i64: 1, 8, 128>}, {pipeline_mode = #tpu.pipeline_mode<synchronous>, transform_indices = @transform_1, window_bounds = array<i64: 2, 3, 128, 128>}, {pipeline_mode = #tpu.pipeline_mode<synchronous>, transform_indices = @transform_2, window_bounds = array<i64: 2, 1, 128>}, {pipeline_mode = #tpu.pipeline_mode<synchronous>, transform_indices = @transform_3, window_bounds = array<i64: 2, 1, 128>}, {pipeline_mode = #tpu.pipeline_mode<synchronous>, transform_indices = @transform_4, window_bounds = array<i64: 2, 1, 128>}, {pipeline_mode = #tpu.pipeline_mode<synchronous>, transform_indices = @transform_5, window_bounds = array<i64: 2, 3, 128, 128>}, {pipeline_mode = #tpu.pipeline_mode<synchronous>, transform_indices = @transform_6, window_bounds = array<i64: 2, 1, 128>}, {pipeline_mode = #tpu.pipeline_mode<synchronous>, transform_indices = @transform_7, window_bounds = array<i64: 2, 1, 128>}, {pipeline_mode = #tpu.pipeline_mode<synchronous>, transform_indices = @transform_8, window_bounds = array<i64: 2, 1, 128>}, {transform_indices = @transform_9, window_bounds = array<i64: 1, 8, 128>}]} {
    %c0 = arith.constant 0 : index
    %c0_0 = arith.constant 0 : index
    %c0_1 = arith.constant 0 : index
    %0 = vector.load %arg1[%c0, %c0_0, %c0_1] : memref<1x8x128xbf16, #tpu.memory_space<vmem>>, vector<1x8x128xbf16>
    %c0_2 = arith.constant 0 : index
    %c0_3 = arith.constant 0 : index
    %c0_4 = arith.constant 0 : index
    %c0_5 = arith.constant 0 : index
    %1 = vector.load %arg2[%c0_2, %c0_3, %c0_4, %c0_5] : memref<2x3x128x128xbf16, #tpu.memory_space<vmem>>, vector<1x3x128x128xbf16>
    %2 = vector.shape_cast %1 : vector<1x3x128x128xbf16> to vector<3x128x128xbf16>
    %c0_6 = arith.constant 0 : index
    %c0_7 = arith.constant 0 : index
    %c0_8 = arith.constant 0 : index
    %3 = vector.load %arg3[%c0_6, %c0_7, %c0_8] : memref<2x1x128xf32, #tpu.memory_space<vmem>>, vector<1x1x128xf32>
    %4 = vector.shape_cast %3 : vector<1x1x128xf32> to vector<1x128xf32>
    %cst = arith.constant 0.000000e+00 : bf16
    %5 = vector.broadcast %cst : bf16 to vector<1x1x128xbf16>
    %cst_9 = arith.constant 0.000000e+00 : bf16
    %6 = vector.broadcast %cst_9 : bf16 to vector<1x1x128xbf16>
    %7 = tpu.concatenate %5, %0, %6 in 1 : vector<1x1x128xbf16>, vector<1x8x128xbf16>, vector<1x1x128xbf16> -> vector<1x10x128xbf16>
    %8 = vector.extract_strided_slice %7 {offsets = [0, 0, 0], sizes = [1, 8, 128], strides = [1, 1, 1]} : vector<1x10x128xbf16> to vector<1x8x128xbf16>
    %9 = vector.extract_strided_slice %7 {offsets = [0, 1, 0], sizes = [1, 8, 128], strides = [1, 1, 1]} : vector<1x10x128xbf16> to vector<1x8x128xbf16>
    %10 = vector.extract_strided_slice %7 {offsets = [0, 2, 0], sizes = [1, 8, 128], strides = [1, 1, 1]} : vector<1x10x128xbf16> to vector<1x8x128xbf16>
    %11 = tpu.concatenate %8, %9, %10 in 2 : vector<1x8x128xbf16>, vector<1x8x128xbf16>, vector<1x8x128xbf16> -> vector<1x8x384xbf16>
    %12 = vector.shape_cast %11 : vector<1x8x384xbf16> to vector<8x384xbf16>
    %13 = vector.shape_cast %2 : vector<3x128x128xbf16> to vector<384x128xbf16>
    %cst_10 = arith.constant dense<0.000000e+00> : vector<8x128xf32>
    %14 = tpu.matmul %12, %13, %cst_10 {dimension_numbers = #tpu.dot_dimension_numbers<[1], [0], [0], [1], [0, 0, 1, 1], [], []>} : vector<8x384xbf16>, vector<384x128xbf16>, vector<8x128xf32> -> vector<8x128xf32>
    %15 = vector.broadcast %4 : vector<1x128xf32> to vector<8x128xf32>
    %16 = arith.addf %14, %15 : vector<8x128xf32>
    %c0_11 = arith.constant 0 : index
    %c0_12 = arith.constant 0 : index
    %c0_13 = arith.constant 0 : index
    %17 = vector.load %arg4[%c0_11, %c0_12, %c0_13] : memref<2x1x128xf32, #tpu.memory_space<vmem>>, vector<1x1x128xf32>
    %18 = vector.shape_cast %17 : vector<1x1x128xf32> to vector<1x128xf32>
    %c0_14 = arith.constant 0 : index
    %c0_15 = arith.constant 0 : index
    %c0_16 = arith.constant 0 : index
    %19 = vector.load %arg5[%c0_14, %c0_15, %c0_16] : memref<2x1x128xf32, #tpu.memory_space<vmem>>, vector<1x1x128xf32>
    %20 = vector.shape_cast %19 : vector<1x1x128xf32> to vector<1x128xf32>
    %cst_17 = arith.constant dense<0.000000e+00> : vector<8xf32>
    %21 = vector.multi_reduction <add>, %16, %cst_17 [1] : vector<8x128xf32> to vector<8xf32>
    %22 = vector.shape_cast %21 : vector<8xf32> to vector<8x1xf32>
    %cst_18 = arith.constant 3.125000e-02 : f32
    %23 = vector.broadcast %cst_18 : f32 to vector<8x1xf32>
    %24 = arith.mulf %22, %23 : vector<8x1xf32>
    %25 = arith.mulf %16, %16 : vector<8x128xf32>
    %cst_19 = arith.constant dense<0.000000e+00> : vector<8xf32>
    %26 = vector.multi_reduction <add>, %25, %cst_19 [1] : vector<8x128xf32> to vector<8xf32>
    %27 = vector.shape_cast %26 : vector<8xf32> to vector<8x1xf32>
    %cst_20 = arith.constant 3.125000e-02 : f32
    %28 = vector.broadcast %cst_20 : f32 to vector<8x1xf32>
    %29 = arith.mulf %27, %28 : vector<8x1xf32>
    %30 = arith.mulf %24, %24 : vector<8x1xf32>
    %31 = arith.subf %29, %30 : vector<8x1xf32>
    %cst_21 = arith.constant 0.000000e+00 : f32
    %32 = vector.broadcast %cst_21 : f32 to vector<8x1xf32>
    %33 = arith.maximumf %31, %32 : vector<8x1xf32>
    %34 = vector.broadcast %24 : vector<8x1xf32> to vector<8x128xf32>
    %35 = arith.subf %16, %34 : vector<8x128xf32>
    %cst_22 = arith.constant 9.99999993E-9 : f32
    %36 = vector.broadcast %cst_22 : f32 to vector<8x1xf32>
    %37 = arith.addf %33, %36 : vector<8x1xf32>
    %38 = math.rsqrt %37 : vector<8x1xf32>
    %39 = vector.broadcast %38 : vector<8x1xf32> to vector<8x128xf32>
    %40 = arith.mulf %35, %39 : vector<8x128xf32>
    %41 = vector.broadcast %18 : vector<1x128xf32> to vector<8x128xf32>
    %42 = arith.mulf %40, %41 : vector<8x128xf32>
    %43 = vector.broadcast %20 : vector<1x128xf32> to vector<8x128xf32>
    %44 = arith.addf %42, %43 : vector<8x128xf32>
    %cst_23 = arith.constant 0.000000e+00 : f32
    %45 = vector.broadcast %cst_23 : f32 to vector<8x128xf32>
    %46 = arith.maximumf %44, %45 : vector<8x128xf32>
    %47 = arith.truncf %46 : vector<8x128xf32> to vector<8x128xbf16>
    %48 = vector.shape_cast %47 : vector<8x128xbf16> to vector<1x8x128xbf16>
    %c0_24 = arith.constant 0 : index
    %c0_25 = arith.constant 0 : index
    %c0_26 = arith.constant 0 : index
    %c0_27 = arith.constant 0 : index
    %49 = vector.load %arg6[%c0_24, %c0_25, %c0_26, %c0_27] : memref<2x3x128x128xbf16, #tpu.memory_space<vmem>>, vector<1x3x128x128xbf16>
    %50 = vector.shape_cast %49 : vector<1x3x128x128xbf16> to vector<3x128x128xbf16>
    %c0_28 = arith.constant 0 : index
    %c0_29 = arith.constant 0 : index
    %c0_30 = arith.constant 0 : index
    %51 = vector.load %arg7[%c0_28, %c0_29, %c0_30] : memref<2x1x128xf32, #tpu.memory_space<vmem>>, vector<1x1x128xf32>
    %52 = vector.shape_cast %51 : vector<1x1x128xf32> to vector<1x128xf32>
    %cst_31 = arith.constant 0.000000e+00 : bf16
    %53 = vector.broadcast %cst_31 : bf16 to vector<1x2x128xbf16>
    %cst_32 = arith.constant 0.000000e+00 : bf16
    %54 = vector.broadcast %cst_32 : bf16 to vector<1x2x128xbf16>
    %55 = tpu.concatenate %53, %48, %54 in 1 : vector<1x2x128xbf16>, vector<1x8x128xbf16>, vector<1x2x128xbf16> -> vector<1x12x128xbf16>
    %56 = vector.extract_strided_slice %55 {offsets = [0, 0, 0], sizes = [1, 8, 128], strides = [1, 1, 1]} : vector<1x12x128xbf16> to vector<1x8x128xbf16>
    %57 = vector.extract_strided_slice %55 {offsets = [0, 2, 0], sizes = [1, 8, 128], strides = [1, 1, 1]} : vector<1x12x128xbf16> to vector<1x8x128xbf16>
    %58 = vector.extract_strided_slice %55 {offsets = [0, 4, 0], sizes = [1, 8, 128], strides = [1, 1, 1]} : vector<1x12x128xbf16> to vector<1x8x128xbf16>
    %59 = tpu.concatenate %56, %57, %58 in 2 : vector<1x8x128xbf16>, vector<1x8x128xbf16>, vector<1x8x128xbf16> -> vector<1x8x384xbf16>
    %60 = vector.shape_cast %59 : vector<1x8x384xbf16> to vector<8x384xbf16>
    %61 = vector.shape_cast %50 : vector<3x128x128xbf16> to vector<384x128xbf16>
    %cst_33 = arith.constant dense<0.000000e+00> : vector<8x128xf32>
    %62 = tpu.matmul %60, %61, %cst_33 {dimension_numbers = #tpu.dot_dimension_numbers<[1], [0], [0], [1], [0, 0, 1, 1], [], []>} : vector<8x384xbf16>, vector<384x128xbf16>, vector<8x128xf32> -> vector<8x128xf32>
    %63 = vector.broadcast %52 : vector<1x128xf32> to vector<8x128xf32>
    %64 = arith.addf %62, %63 : vector<8x128xf32>
    %c0_34 = arith.constant 0 : index
    %c0_35 = arith.constant 0 : index
    %c0_36 = arith.constant 0 : index
    %65 = vector.load %arg8[%c0_34, %c0_35, %c0_36] : memref<2x1x128xf32, #tpu.memory_space<vmem>>, vector<1x1x128xf32>
    %66 = vector.shape_cast %65 : vector<1x1x128xf32> to vector<1x128xf32>
    %c0_37 = arith.constant 0 : index
    %c0_38 = arith.constant 0 : index
    %c0_39 = arith.constant 0 : index
    %67 = vector.load %arg9[%c0_37, %c0_38, %c0_39] : memref<2x1x128xf32, #tpu.memory_space<vmem>>, vector<1x1x128xf32>
    %68 = vector.shape_cast %67 : vector<1x1x128xf32> to vector<1x128xf32>
    %cst_40 = arith.constant dense<0.000000e+00> : vector<8xf32>
    %69 = vector.multi_reduction <add>, %64, %cst_40 [1] : vector<8x128xf32> to vector<8xf32>
    %70 = vector.shape_cast %69 : vector<8xf32> to vector<8x1xf32>
    %cst_41 = arith.constant 3.125000e-02 : f32
    %71 = vector.broadcast %cst_41 : f32 to vector<8x1xf32>
    %72 = arith.mulf %70, %71 : vector<8x1xf32>
    %73 = arith.mulf %64, %64 : vector<8x128xf32>
    %cst_42 = arith.constant dense<0.000000e+00> : vector<8xf32>
    %74 = vector.multi_reduction <add>, %73, %cst_42 [1] : vector<8x128xf32> to vector<8xf32>
    %75 = vector.shape_cast %74 : vector<8xf32> to vector<8x1xf32>
    %cst_43 = arith.constant 3.125000e-02 : f32
    %76 = vector.broadcast %cst_43 : f32 to vector<8x1xf32>
    %77 = arith.mulf %75, %76 : vector<8x1xf32>
    %78 = arith.mulf %72, %72 : vector<8x1xf32>
    %79 = arith.subf %77, %78 : vector<8x1xf32>
    %cst_44 = arith.constant 0.000000e+00 : f32
    %80 = vector.broadcast %cst_44 : f32 to vector<8x1xf32>
    %81 = arith.maximumf %79, %80 : vector<8x1xf32>
    %82 = vector.broadcast %72 : vector<8x1xf32> to vector<8x128xf32>
    %83 = arith.subf %64, %82 : vector<8x128xf32>
    %cst_45 = arith.constant 9.99999993E-9 : f32
    %84 = vector.broadcast %cst_45 : f32 to vector<8x1xf32>
    %85 = arith.addf %81, %84 : vector<8x1xf32>
    %86 = math.rsqrt %85 : vector<8x1xf32>
    %87 = vector.broadcast %86 : vector<8x1xf32> to vector<8x128xf32>
    %88 = arith.mulf %83, %87 : vector<8x128xf32>
    %89 = vector.broadcast %66 : vector<1x128xf32> to vector<8x128xf32>
    %90 = arith.mulf %88, %89 : vector<8x128xf32>
    %91 = vector.broadcast %68 : vector<1x128xf32> to vector<8x128xf32>
    %92 = arith.addf %90, %91 : vector<8x128xf32>
    %cst_46 = arith.constant 0.000000e+00 : f32
    %93 = vector.broadcast %cst_46 : f32 to vector<8x128xf32>
    %94 = arith.maximumf %92, %93 : vector<8x128xf32>
    %95 = vector.shape_cast %94 : vector<8x128xf32> to vector<1x8x128xf32>
    %96 = arith.extf %0 : vector<1x8x128xbf16> to vector<1x8x128xf32>
    %97 = arith.addf %95, %96 : vector<1x8x128xf32>
    %98 = arith.truncf %97 : vector<1x8x128xf32> to vector<1x8x128xbf16>
    %c1 = arith.constant 1 : index
    %c0_47 = arith.constant 0 : index
    %c0_48 = arith.constant 0 : index
    %c0_49 = arith.constant 0 : index
    %99 = vector.load %arg2[%c1, %c0_47, %c0_48, %c0_49] : memref<2x3x128x128xbf16, #tpu.memory_space<vmem>>, vector<1x3x128x128xbf16>
    %100 = vector.shape_cast %99 : vector<1x3x128x128xbf16> to vector<3x128x128xbf16>
    %c1_50 = arith.constant 1 : index
    %c0_51 = arith.constant 0 : index
    %c0_52 = arith.constant 0 : index
    %101 = vector.load %arg3[%c1_50, %c0_51, %c0_52] : memref<2x1x128xf32, #tpu.memory_space<vmem>>, vector<1x1x128xf32>
    %102 = vector.shape_cast %101 : vector<1x1x128xf32> to vector<1x128xf32>
    %cst_53 = arith.constant 0.000000e+00 : bf16
    %103 = vector.broadcast %cst_53 : bf16 to vector<1x2x128xbf16>
    %cst_54 = arith.constant 0.000000e+00 : bf16
    %104 = vector.broadcast %cst_54 : bf16 to vector<1x2x128xbf16>
    %105 = tpu.concatenate %103, %98, %104 in 1 : vector<1x2x128xbf16>, vector<1x8x128xbf16>, vector<1x2x128xbf16> -> vector<1x12x128xbf16>
    %106 = vector.extract_strided_slice %105 {offsets = [0, 0, 0], sizes = [1, 8, 128], strides = [1, 1, 1]} : vector<1x12x128xbf16> to vector<1x8x128xbf16>
    %107 = vector.extract_strided_slice %105 {offsets = [0, 2, 0], sizes = [1, 8, 128], strides = [1, 1, 1]} : vector<1x12x128xbf16> to vector<1x8x128xbf16>
    %108 = vector.extract_strided_slice %105 {offsets = [0, 4, 0], sizes = [1, 8, 128], strides = [1, 1, 1]} : vector<1x12x128xbf16> to vector<1x8x128xbf16>
    %109 = tpu.concatenate %106, %107, %108 in 2 : vector<1x8x128xbf16>, vector<1x8x128xbf16>, vector<1x8x128xbf16> -> vector<1x8x384xbf16>
    %110 = vector.shape_cast %109 : vector<1x8x384xbf16> to vector<8x384xbf16>
    %111 = vector.shape_cast %100 : vector<3x128x128xbf16> to vector<384x128xbf16>
    %cst_55 = arith.constant dense<0.000000e+00> : vector<8x128xf32>
    %112 = tpu.matmul %110, %111, %cst_55 {dimension_numbers = #tpu.dot_dimension_numbers<[1], [0], [0], [1], [0, 0, 1, 1], [], []>} : vector<8x384xbf16>, vector<384x128xbf16>, vector<8x128xf32> -> vector<8x128xf32>
    %113 = vector.broadcast %102 : vector<1x128xf32> to vector<8x128xf32>
    %114 = arith.addf %112, %113 : vector<8x128xf32>
    %c1_56 = arith.constant 1 : index
    %c0_57 = arith.constant 0 : index
    %c0_58 = arith.constant 0 : index
    %115 = vector.load %arg4[%c1_56, %c0_57, %c0_58] : memref<2x1x128xf32, #tpu.memory_space<vmem>>, vector<1x1x128xf32>
    %116 = vector.shape_cast %115 : vector<1x1x128xf32> to vector<1x128xf32>
    %c1_59 = arith.constant 1 : index
    %c0_60 = arith.constant 0 : index
    %c0_61 = arith.constant 0 : index
    %117 = vector.load %arg5[%c1_59, %c0_60, %c0_61] : memref<2x1x128xf32, #tpu.memory_space<vmem>>, vector<1x1x128xf32>
    %118 = vector.shape_cast %117 : vector<1x1x128xf32> to vector<1x128xf32>
    %cst_62 = arith.constant dense<0.000000e+00> : vector<8xf32>
    %119 = vector.multi_reduction <add>, %114, %cst_62 [1] : vector<8x128xf32> to vector<8xf32>
    %120 = vector.shape_cast %119 : vector<8xf32> to vector<8x1xf32>
    %cst_63 = arith.constant 3.125000e-02 : f32
    %121 = vector.broadcast %cst_63 : f32 to vector<8x1xf32>
    %122 = arith.mulf %120, %121 : vector<8x1xf32>
    %123 = arith.mulf %114, %114 : vector<8x128xf32>
    %cst_64 = arith.constant dense<0.000000e+00> : vector<8xf32>
    %124 = vector.multi_reduction <add>, %123, %cst_64 [1] : vector<8x128xf32> to vector<8xf32>
    %125 = vector.shape_cast %124 : vector<8xf32> to vector<8x1xf32>
    %cst_65 = arith.constant 3.125000e-02 : f32
    %126 = vector.broadcast %cst_65 : f32 to vector<8x1xf32>
    %127 = arith.mulf %125, %126 : vector<8x1xf32>
    %128 = arith.mulf %122, %122 : vector<8x1xf32>
    %129 = arith.subf %127, %128 : vector<8x1xf32>
    %cst_66 = arith.constant 0.000000e+00 : f32
    %130 = vector.broadcast %cst_66 : f32 to vector<8x1xf32>
    %131 = arith.maximumf %129, %130 : vector<8x1xf32>
    %132 = vector.broadcast %122 : vector<8x1xf32> to vector<8x128xf32>
    %133 = arith.subf %114, %132 : vector<8x128xf32>
    %cst_67 = arith.constant 9.99999993E-9 : f32
    %134 = vector.broadcast %cst_67 : f32 to vector<8x1xf32>
    %135 = arith.addf %131, %134 : vector<8x1xf32>
    %136 = math.rsqrt %135 : vector<8x1xf32>
    %137 = vector.broadcast %136 : vector<8x1xf32> to vector<8x128xf32>
    %138 = arith.mulf %133, %137 : vector<8x128xf32>
    %139 = vector.broadcast %116 : vector<1x128xf32> to vector<8x128xf32>
    %140 = arith.mulf %138, %139 : vector<8x128xf32>
    %141 = vector.broadcast %118 : vector<1x128xf32> to vector<8x128xf32>
    %142 = arith.addf %140, %141 : vector<8x128xf32>
    %cst_68 = arith.constant 0.000000e+00 : f32
    %143 = vector.broadcast %cst_68 : f32 to vector<8x128xf32>
    %144 = arith.maximumf %142, %143 : vector<8x128xf32>
    %145 = arith.truncf %144 : vector<8x128xf32> to vector<8x128xbf16>
    %146 = vector.shape_cast %145 : vector<8x128xbf16> to vector<1x8x128xbf16>
    %c1_69 = arith.constant 1 : index
    %c0_70 = arith.constant 0 : index
    %c0_71 = arith.constant 0 : index
    %c0_72 = arith.constant 0 : index
    %147 = vector.load %arg6[%c1_69, %c0_70, %c0_71, %c0_72] : memref<2x3x128x128xbf16, #tpu.memory_space<vmem>>, vector<1x3x128x128xbf16>
    %148 = vector.shape_cast %147 : vector<1x3x128x128xbf16> to vector<3x128x128xbf16>
    %c1_73 = arith.constant 1 : index
    %c0_74 = arith.constant 0 : index
    %c0_75 = arith.constant 0 : index
    %149 = vector.load %arg7[%c1_73, %c0_74, %c0_75] : memref<2x1x128xf32, #tpu.memory_space<vmem>>, vector<1x1x128xf32>
    %150 = vector.shape_cast %149 : vector<1x1x128xf32> to vector<1x128xf32>
    %cst_76 = arith.constant 0.000000e+00 : bf16
    %151 = vector.broadcast %cst_76 : bf16 to vector<1x4x128xbf16>
    %cst_77 = arith.constant 0.000000e+00 : bf16
    %152 = vector.broadcast %cst_77 : bf16 to vector<1x4x128xbf16>
    %153 = tpu.concatenate %151, %146, %152 in 1 : vector<1x4x128xbf16>, vector<1x8x128xbf16>, vector<1x4x128xbf16> -> vector<1x16x128xbf16>
    %154 = vector.extract_strided_slice %153 {offsets = [0, 0, 0], sizes = [1, 8, 128], strides = [1, 1, 1]} : vector<1x16x128xbf16> to vector<1x8x128xbf16>
    %155 = vector.extract_strided_slice %153 {offsets = [0, 4, 0], sizes = [1, 8, 128], strides = [1, 1, 1]} : vector<1x16x128xbf16> to vector<1x8x128xbf16>
    %156 = vector.extract_strided_slice %153 {offsets = [0, 8, 0], sizes = [1, 8, 128], strides = [1, 1, 1]} : vector<1x16x128xbf16> to vector<1x8x128xbf16>
    %157 = tpu.concatenate %154, %155, %156 in 2 : vector<1x8x128xbf16>, vector<1x8x128xbf16>, vector<1x8x128xbf16> -> vector<1x8x384xbf16>
    %158 = vector.shape_cast %157 : vector<1x8x384xbf16> to vector<8x384xbf16>
    %159 = vector.shape_cast %148 : vector<3x128x128xbf16> to vector<384x128xbf16>
    %cst_78 = arith.constant dense<0.000000e+00> : vector<8x128xf32>
    %160 = tpu.matmul %158, %159, %cst_78 {dimension_numbers = #tpu.dot_dimension_numbers<[1], [0], [0], [1], [0, 0, 1, 1], [], []>} : vector<8x384xbf16>, vector<384x128xbf16>, vector<8x128xf32> -> vector<8x128xf32>
    %161 = vector.broadcast %150 : vector<1x128xf32> to vector<8x128xf32>
    %162 = arith.addf %160, %161 : vector<8x128xf32>
    %c1_79 = arith.constant 1 : index
    %c0_80 = arith.constant 0 : index
    %c0_81 = arith.constant 0 : index
    %163 = vector.load %arg8[%c1_79, %c0_80, %c0_81] : memref<2x1x128xf32, #tpu.memory_space<vmem>>, vector<1x1x128xf32>
    %164 = vector.shape_cast %163 : vector<1x1x128xf32> to vector<1x128xf32>
    %c1_82 = arith.constant 1 : index
    %c0_83 = arith.constant 0 : index
    %c0_84 = arith.constant 0 : index
    %165 = vector.load %arg9[%c1_82, %c0_83, %c0_84] : memref<2x1x128xf32, #tpu.memory_space<vmem>>, vector<1x1x128xf32>
    %166 = vector.shape_cast %165 : vector<1x1x128xf32> to vector<1x128xf32>
    %cst_85 = arith.constant dense<0.000000e+00> : vector<8xf32>
    %167 = vector.multi_reduction <add>, %162, %cst_85 [1] : vector<8x128xf32> to vector<8xf32>
    %168 = vector.shape_cast %167 : vector<8xf32> to vector<8x1xf32>
    %cst_86 = arith.constant 3.125000e-02 : f32
    %169 = vector.broadcast %cst_86 : f32 to vector<8x1xf32>
    %170 = arith.mulf %168, %169 : vector<8x1xf32>
    %171 = arith.mulf %162, %162 : vector<8x128xf32>
    %cst_87 = arith.constant dense<0.000000e+00> : vector<8xf32>
    %172 = vector.multi_reduction <add>, %171, %cst_87 [1] : vector<8x128xf32> to vector<8xf32>
    %173 = vector.shape_cast %172 : vector<8xf32> to vector<8x1xf32>
    %cst_88 = arith.constant 3.125000e-02 : f32
    %174 = vector.broadcast %cst_88 : f32 to vector<8x1xf32>
    %175 = arith.mulf %173, %174 : vector<8x1xf32>
    %176 = arith.mulf %170, %170 : vector<8x1xf32>
    %177 = arith.subf %175, %176 : vector<8x1xf32>
    %cst_89 = arith.constant 0.000000e+00 : f32
    %178 = vector.broadcast %cst_89 : f32 to vector<8x1xf32>
    %179 = arith.maximumf %177, %178 : vector<8x1xf32>
    %180 = vector.broadcast %170 : vector<8x1xf32> to vector<8x128xf32>
    %181 = arith.subf %162, %180 : vector<8x128xf32>
    %cst_90 = arith.constant 9.99999993E-9 : f32
    %182 = vector.broadcast %cst_90 : f32 to vector<8x1xf32>
    %183 = arith.addf %179, %182 : vector<8x1xf32>
    %184 = math.rsqrt %183 : vector<8x1xf32>
    %185 = vector.broadcast %184 : vector<8x1xf32> to vector<8x128xf32>
    %186 = arith.mulf %181, %185 : vector<8x128xf32>
    %187 = vector.broadcast %164 : vector<1x128xf32> to vector<8x128xf32>
    %188 = arith.mulf %186, %187 : vector<8x128xf32>
    %189 = vector.broadcast %166 : vector<1x128xf32> to vector<8x128xf32>
    %190 = arith.addf %188, %189 : vector<8x128xf32>
    %cst_91 = arith.constant 0.000000e+00 : f32
    %191 = vector.broadcast %cst_91 : f32 to vector<8x128xf32>
    %192 = arith.maximumf %190, %191 : vector<8x128xf32>
    %193 = vector.shape_cast %192 : vector<8x128xf32> to vector<1x8x128xf32>
    %194 = arith.extf %98 : vector<1x8x128xbf16> to vector<1x8x128xf32>
    %195 = arith.addf %193, %194 : vector<1x8x128xf32>
    %196 = arith.truncf %195 : vector<1x8x128xf32> to vector<1x8x128xbf16>
    %c0_92 = arith.constant 0 : index
    %c0_93 = arith.constant 0 : index
    %c0_94 = arith.constant 0 : index
    %197 = vector.load %arg10[%c0_92, %c0_93, %c0_94] : memref<1x8x128xbf16, #tpu.memory_space<vmem>>, vector<1x8x128xbf16>
    tpu.vector_store %arg10[%c0_92, %c0_93, %c0_94], %196 {strides = array<i32>} : memref<1x8x128xbf16, #tpu.memory_space<vmem>>, vector<1x8x128xbf16>,
    return
  }
  func.func @transform_0(%arg0: i32) -> (i32, i32, i32) {
    %c0_i32 = arith.constant 0 : i32
    %c0_i32_0 = arith.constant 0 : i32
    %c0_i32_1 = arith.constant 0 : i32
    return %arg0, %c0_i32, %c0_i32_0 : i32, i32, i32
  }
  func.func @transform_1(%arg0: i32) -> (i32, i32, i32, i32) {
    %c0_i32 = arith.constant 0 : i32
    %c0_i32_0 = arith.constant 0 : i32
    %c0_i32_1 = arith.constant 0 : i32
    %c0_i32_2 = arith.constant 0 : i32
    %c0_i32_3 = arith.constant 0 : i32
    return %c0_i32, %c0_i32_0, %c0_i32_1, %c0_i32_2 : i32, i32, i32, i32
  }
  func.func @transform_2(%arg0: i32) -> (i32, i32, i32) {
    %c0_i32 = arith.constant 0 : i32
    %c0_i32_0 = arith.constant 0 : i32
    %c0_i32_1 = arith.constant 0 : i32
    %c0_i32_2 = arith.constant 0 : i32
    return %c0_i32, %c0_i32_0, %c0_i32_1 : i32, i32, i32
  }
  func.func @transform_3(%arg0: i32) -> (i32, i32, i32) {
    %c0_i32 = arith.constant 0 : i32
    %c0_i32_0 = arith.constant 0 : i32
    %c0_i32_1 = arith.constant 0 : i32
    %c0_i32_2 = arith.constant 0 : i32
    return %c0_i32, %c0_i32_0, %c0_i32_1 : i32, i32, i32
  }
  func.func @transform_4(%arg0: i32) -> (i32, i32, i32) {
    %c0_i32 = arith.constant 0 : i32
    %c0_i32_0 = arith.constant 0 : i32
    %c0_i32_1 = arith.constant 0 : i32
    %c0_i32_2 = arith.constant 0 : i32
    return %c0_i32, %c0_i32_0, %c0_i32_1 : i32, i32, i32
  }
  func.func @transform_5(%arg0: i32) -> (i32, i32, i32, i32) {
    %c0_i32 = arith.constant 0 : i32
    %c0_i32_0 = arith.constant 0 : i32
    %c0_i32_1 = arith.constant 0 : i32
    %c0_i32_2 = arith.constant 0 : i32
    %c0_i32_3 = arith.constant 0 : i32
    return %c0_i32, %c0_i32_0, %c0_i32_1, %c0_i32_2 : i32, i32, i32, i32
  }
  func.func @transform_6(%arg0: i32) -> (i32, i32, i32) {
    %c0_i32 = arith.constant 0 : i32
    %c0_i32_0 = arith.constant 0 : i32
    %c0_i32_1 = arith.constant 0 : i32
    %c0_i32_2 = arith.constant 0 : i32
    return %c0_i32, %c0_i32_0, %c0_i32_1 : i32, i32, i32
  }
  func.func @transform_7(%arg0: i32) -> (i32, i32, i32) {
    %c0_i32 = arith.constant 0 : i32
    %c0_i32_0 = arith.constant 0 : i32
    %c0_i32_1 = arith.constant 0 : i32
    %c0_i32_2 = arith.constant 0 : i32
    return %c0_i32, %c0_i32_0, %c0_i32_1 : i32, i32, i32
  }
  func.func @transform_8(%arg0: i32) -> (i32, i32, i32) {
    %c0_i32 = arith.constant 0 : i32
    %c0_i32_0 = arith.constant 0 : i32
    %c0_i32_1 = arith.constant 0 : i32
    %c0_i32_2 = arith.constant 0 : i32
    return %c0_i32, %c0_i32_0, %c0_i32_1 : i32, i32, i32
  }
  func.func @transform_9(%arg0: i32) -> (i32, i32, i32) {
    %c0_i32 = arith.constant 0 : i32
    %c0_i32_0 = arith.constant 0 : i32
    %c0_i32_1 = arith.constant 0 : i32
    return %arg0, %c0_i32, %c0_i32_0 : i32, i32, i32
  }
}

module attributes {stable_mosaic.version = 11 : i64} {
  func.func @_stack_kernel(%arg0: i32, %arg1: memref<1x8x128xbf16, #tpu.memory_space<vmem>>, %arg2: memref<2x3x128x128xbf16, #tpu.memory_space<vmem>>, %arg3: memref<2x1x128xf32, #tpu.memory_space<vmem>>, %arg4: memref<2x1x128xf32, #tpu.memory_space<vmem>>, %arg5: memref<2x1x128xf32, #tpu.memory_space<vmem>>, %arg6: memref<2x3x128x128xbf16, #tpu.memory_space<vmem>>, %arg7: memref<2x1x128xf32, #tpu.memory_space<vmem>>, %arg8: memref<2x1x128xf32, #tpu.memory_space<vmem>>, %arg9: memref<2x1x128xf32, #tpu.memory_space<vmem>>, %arg10: memref<1x8x128xbf16, #tpu.memory_space<vmem>>) attributes {dimension_semantics = [#tpu.dimension_semantics<parallel>], iteration_bounds = array<i64: 2>, scalar_prefetch = 0 : i64, scratch_operands = 0 : i64, tpu.core_type = #tpu.core_type<tc>, window_params = [{transform_indices = @transform_0, window_bounds = array<i64: 1, 8, 128>}, {pipeline_mode = #tpu.pipeline_mode<synchronous>, transform_indices = @transform_1, window_bounds = array<i64: 2, 3, 128, 128>}, {pipeline_mode = #tpu.pipeline_mode<synchronous>, transform_indices = @transform_2, window_bounds = array<i64: 2, 1, 128>}, {pipeline_mode = #tpu.pipeline_mode<synchronous>, transform_indices = @transform_3, window_bounds = array<i64: 2, 1, 128>}, {pipeline_mode = #tpu.pipeline_mode<synchronous>, transform_indices = @transform_4, window_bounds = array<i64: 2, 1, 128>}, {pipeline_mode = #tpu.pipeline_mode<synchronous>, transform_indices = @transform_5, window_bounds = array<i64: 2, 3, 128, 128>}, {pipeline_mode = #tpu.pipeline_mode<synchronous>, transform_indices = @transform_6, window_bounds = array<i64: 2, 1, 128>}, {pipeline_mode = #tpu.pipeline_mode<synchronous>, transform_indices = @transform_7, window_bounds = array<i64: 2, 1, 128>}, {pipeline_mode = #tpu.pipeline_mode<synchronous>, transform_indices = @transform_8, window_bounds = array<i64: 2, 1, 128>}, {transform_indices = @transform_9, window_bounds = array<i64: 1, 8, 128>}]} {
    %c0 = arith.constant 0 : index
    %c0_0 = arith.constant 0 : index
    %c0_1 = arith.constant 0 : index
    %0 = vector.load %arg1[%c0, %c0_0, %c0_1] : memref<1x8x128xbf16, #tpu.memory_space<vmem>>, vector<1x8x128xbf16>
    %c0_2 = arith.constant 0 : index
    %c0_3 = arith.constant 0 : index
    %c0_4 = arith.constant 0 : index
    %c0_5 = arith.constant 0 : index
    %1 = vector.load %arg2[%c0_2, %c0_3, %c0_4, %c0_5] : memref<2x3x128x128xbf16, #tpu.memory_space<vmem>>, vector<1x3x128x128xbf16>
    %2 = vector.shape_cast %1 : vector<1x3x128x128xbf16> to vector<3x128x128xbf16>
    %c0_6 = arith.constant 0 : index
    %c0_7 = arith.constant 0 : index
    %c0_8 = arith.constant 0 : index
    %3 = vector.load %arg3[%c0_6, %c0_7, %c0_8] : memref<2x1x128xf32, #tpu.memory_space<vmem>>, vector<1x1x128xf32>
    %4 = vector.shape_cast %3 : vector<1x1x128xf32> to vector<1x128xf32>
    %cst = arith.constant 0.000000e+00 : bf16
    %5 = vector.broadcast %cst : bf16 to vector<1x2x128xbf16>
    %6 = tpu.concatenate %5, %0 in 1 : vector<1x2x128xbf16>, vector<1x8x128xbf16> -> vector<1x10x128xbf16>
    %7 = vector.extract_strided_slice %6 {offsets = [0, 0, 0], sizes = [1, 8, 128], strides = [1, 1, 1]} : vector<1x10x128xbf16> to vector<1x8x128xbf16>
    %8 = vector.extract_strided_slice %6 {offsets = [0, 1, 0], sizes = [1, 8, 128], strides = [1, 1, 1]} : vector<1x10x128xbf16> to vector<1x8x128xbf16>
    %9 = vector.extract_strided_slice %6 {offsets = [0, 2, 0], sizes = [1, 8, 128], strides = [1, 1, 1]} : vector<1x10x128xbf16> to vector<1x8x128xbf16>
    %10 = tpu.concatenate %7, %8, %9 in 2 : vector<1x8x128xbf16>, vector<1x8x128xbf16>, vector<1x8x128xbf16> -> vector<1x8x384xbf16>
    %11 = vector.shape_cast %10 : vector<1x8x384xbf16> to vector<8x384xbf16>
    %12 = vector.shape_cast %2 : vector<3x128x128xbf16> to vector<384x128xbf16>
    %cst_9 = arith.constant dense<0.000000e+00> : vector<8x128xf32>
    %13 = tpu.matmul %11, %12, %cst_9 {dimension_numbers = #tpu.dot_dimension_numbers<[1], [0], [0], [1], [0, 0, 1, 1], [], []>} : vector<8x384xbf16>, vector<384x128xbf16>, vector<8x128xf32> -> vector<8x128xf32>
    %14 = vector.broadcast %4 : vector<1x128xf32> to vector<8x128xf32>
    %15 = arith.addf %13, %14 : vector<8x128xf32>
    %c0_10 = arith.constant 0 : index
    %c0_11 = arith.constant 0 : index
    %c0_12 = arith.constant 0 : index
    %16 = vector.load %arg4[%c0_10, %c0_11, %c0_12] : memref<2x1x128xf32, #tpu.memory_space<vmem>>, vector<1x1x128xf32>
    %17 = vector.shape_cast %16 : vector<1x1x128xf32> to vector<1x128xf32>
    %c0_13 = arith.constant 0 : index
    %c0_14 = arith.constant 0 : index
    %c0_15 = arith.constant 0 : index
    %18 = vector.load %arg5[%c0_13, %c0_14, %c0_15] : memref<2x1x128xf32, #tpu.memory_space<vmem>>, vector<1x1x128xf32>
    %19 = vector.shape_cast %18 : vector<1x1x128xf32> to vector<1x128xf32>
    %cst_16 = arith.constant dense<0.000000e+00> : vector<8xf32>
    %20 = vector.multi_reduction <add>, %15, %cst_16 [1] : vector<8x128xf32> to vector<8xf32>
    %21 = vector.shape_cast %20 : vector<8xf32> to vector<8x1xf32>
    %cst_17 = arith.constant 3.125000e-02 : f32
    %22 = vector.broadcast %cst_17 : f32 to vector<8x1xf32>
    %23 = arith.mulf %21, %22 : vector<8x1xf32>
    %24 = arith.mulf %15, %15 : vector<8x128xf32>
    %cst_18 = arith.constant dense<0.000000e+00> : vector<8xf32>
    %25 = vector.multi_reduction <add>, %24, %cst_18 [1] : vector<8x128xf32> to vector<8xf32>
    %26 = vector.shape_cast %25 : vector<8xf32> to vector<8x1xf32>
    %cst_19 = arith.constant 3.125000e-02 : f32
    %27 = vector.broadcast %cst_19 : f32 to vector<8x1xf32>
    %28 = arith.mulf %26, %27 : vector<8x1xf32>
    %29 = arith.mulf %23, %23 : vector<8x1xf32>
    %30 = arith.subf %28, %29 : vector<8x1xf32>
    %cst_20 = arith.constant 0.000000e+00 : f32
    %31 = vector.broadcast %cst_20 : f32 to vector<8x1xf32>
    %32 = arith.maximumf %30, %31 : vector<8x1xf32>
    %33 = vector.broadcast %23 : vector<8x1xf32> to vector<8x128xf32>
    %34 = arith.subf %15, %33 : vector<8x128xf32>
    %cst_21 = arith.constant 9.99999993E-9 : f32
    %35 = vector.broadcast %cst_21 : f32 to vector<8x1xf32>
    %36 = arith.addf %32, %35 : vector<8x1xf32>
    %37 = math.rsqrt %36 : vector<8x1xf32>
    %38 = vector.broadcast %37 : vector<8x1xf32> to vector<8x128xf32>
    %39 = arith.mulf %34, %38 : vector<8x128xf32>
    %40 = vector.broadcast %17 : vector<1x128xf32> to vector<8x128xf32>
    %41 = arith.mulf %39, %40 : vector<8x128xf32>
    %42 = vector.broadcast %19 : vector<1x128xf32> to vector<8x128xf32>
    %43 = arith.addf %41, %42 : vector<8x128xf32>
    %cst_22 = arith.constant 0.000000e+00 : f32
    %44 = vector.broadcast %cst_22 : f32 to vector<8x128xf32>
    %45 = arith.maximumf %43, %44 : vector<8x128xf32>
    %46 = arith.truncf %45 : vector<8x128xf32> to vector<8x128xbf16>
    %47 = vector.shape_cast %46 : vector<8x128xbf16> to vector<1x8x128xbf16>
    %c0_23 = arith.constant 0 : index
    %c0_24 = arith.constant 0 : index
    %c0_25 = arith.constant 0 : index
    %c0_26 = arith.constant 0 : index
    %48 = vector.load %arg6[%c0_23, %c0_24, %c0_25, %c0_26] : memref<2x3x128x128xbf16, #tpu.memory_space<vmem>>, vector<1x3x128x128xbf16>
    %49 = vector.shape_cast %48 : vector<1x3x128x128xbf16> to vector<3x128x128xbf16>
    %c0_27 = arith.constant 0 : index
    %c0_28 = arith.constant 0 : index
    %c0_29 = arith.constant 0 : index
    %50 = vector.load %arg7[%c0_27, %c0_28, %c0_29] : memref<2x1x128xf32, #tpu.memory_space<vmem>>, vector<1x1x128xf32>
    %51 = vector.shape_cast %50 : vector<1x1x128xf32> to vector<1x128xf32>
    %cst_30 = arith.constant 0.000000e+00 : bf16
    %52 = vector.broadcast %cst_30 : bf16 to vector<1x4x128xbf16>
    %53 = tpu.concatenate %52, %47 in 1 : vector<1x4x128xbf16>, vector<1x8x128xbf16> -> vector<1x12x128xbf16>
    %54 = vector.extract_strided_slice %53 {offsets = [0, 0, 0], sizes = [1, 8, 128], strides = [1, 1, 1]} : vector<1x12x128xbf16> to vector<1x8x128xbf16>
    %55 = vector.extract_strided_slice %53 {offsets = [0, 2, 0], sizes = [1, 8, 128], strides = [1, 1, 1]} : vector<1x12x128xbf16> to vector<1x8x128xbf16>
    %56 = vector.extract_strided_slice %53 {offsets = [0, 4, 0], sizes = [1, 8, 128], strides = [1, 1, 1]} : vector<1x12x128xbf16> to vector<1x8x128xbf16>
    %57 = tpu.concatenate %54, %55, %56 in 2 : vector<1x8x128xbf16>, vector<1x8x128xbf16>, vector<1x8x128xbf16> -> vector<1x8x384xbf16>
    %58 = vector.shape_cast %57 : vector<1x8x384xbf16> to vector<8x384xbf16>
    %59 = vector.shape_cast %49 : vector<3x128x128xbf16> to vector<384x128xbf16>
    %cst_31 = arith.constant dense<0.000000e+00> : vector<8x128xf32>
    %60 = tpu.matmul %58, %59, %cst_31 {dimension_numbers = #tpu.dot_dimension_numbers<[1], [0], [0], [1], [0, 0, 1, 1], [], []>} : vector<8x384xbf16>, vector<384x128xbf16>, vector<8x128xf32> -> vector<8x128xf32>
    %61 = vector.broadcast %51 : vector<1x128xf32> to vector<8x128xf32>
    %62 = arith.addf %60, %61 : vector<8x128xf32>
    %c0_32 = arith.constant 0 : index
    %c0_33 = arith.constant 0 : index
    %c0_34 = arith.constant 0 : index
    %63 = vector.load %arg8[%c0_32, %c0_33, %c0_34] : memref<2x1x128xf32, #tpu.memory_space<vmem>>, vector<1x1x128xf32>
    %64 = vector.shape_cast %63 : vector<1x1x128xf32> to vector<1x128xf32>
    %c0_35 = arith.constant 0 : index
    %c0_36 = arith.constant 0 : index
    %c0_37 = arith.constant 0 : index
    %65 = vector.load %arg9[%c0_35, %c0_36, %c0_37] : memref<2x1x128xf32, #tpu.memory_space<vmem>>, vector<1x1x128xf32>
    %66 = vector.shape_cast %65 : vector<1x1x128xf32> to vector<1x128xf32>
    %cst_38 = arith.constant dense<0.000000e+00> : vector<8xf32>
    %67 = vector.multi_reduction <add>, %62, %cst_38 [1] : vector<8x128xf32> to vector<8xf32>
    %68 = vector.shape_cast %67 : vector<8xf32> to vector<8x1xf32>
    %cst_39 = arith.constant 3.125000e-02 : f32
    %69 = vector.broadcast %cst_39 : f32 to vector<8x1xf32>
    %70 = arith.mulf %68, %69 : vector<8x1xf32>
    %71 = arith.mulf %62, %62 : vector<8x128xf32>
    %cst_40 = arith.constant dense<0.000000e+00> : vector<8xf32>
    %72 = vector.multi_reduction <add>, %71, %cst_40 [1] : vector<8x128xf32> to vector<8xf32>
    %73 = vector.shape_cast %72 : vector<8xf32> to vector<8x1xf32>
    %cst_41 = arith.constant 3.125000e-02 : f32
    %74 = vector.broadcast %cst_41 : f32 to vector<8x1xf32>
    %75 = arith.mulf %73, %74 : vector<8x1xf32>
    %76 = arith.mulf %70, %70 : vector<8x1xf32>
    %77 = arith.subf %75, %76 : vector<8x1xf32>
    %cst_42 = arith.constant 0.000000e+00 : f32
    %78 = vector.broadcast %cst_42 : f32 to vector<8x1xf32>
    %79 = arith.maximumf %77, %78 : vector<8x1xf32>
    %80 = vector.broadcast %70 : vector<8x1xf32> to vector<8x128xf32>
    %81 = arith.subf %62, %80 : vector<8x128xf32>
    %cst_43 = arith.constant 9.99999993E-9 : f32
    %82 = vector.broadcast %cst_43 : f32 to vector<8x1xf32>
    %83 = arith.addf %79, %82 : vector<8x1xf32>
    %84 = math.rsqrt %83 : vector<8x1xf32>
    %85 = vector.broadcast %84 : vector<8x1xf32> to vector<8x128xf32>
    %86 = arith.mulf %81, %85 : vector<8x128xf32>
    %87 = vector.broadcast %64 : vector<1x128xf32> to vector<8x128xf32>
    %88 = arith.mulf %86, %87 : vector<8x128xf32>
    %89 = vector.broadcast %66 : vector<1x128xf32> to vector<8x128xf32>
    %90 = arith.addf %88, %89 : vector<8x128xf32>
    %cst_44 = arith.constant 0.000000e+00 : f32
    %91 = vector.broadcast %cst_44 : f32 to vector<8x128xf32>
    %92 = arith.maximumf %90, %91 : vector<8x128xf32>
    %93 = vector.shape_cast %92 : vector<8x128xf32> to vector<1x8x128xf32>
    %94 = arith.extf %0 : vector<1x8x128xbf16> to vector<1x8x128xf32>
    %95 = arith.addf %93, %94 : vector<1x8x128xf32>
    %96 = arith.truncf %95 : vector<1x8x128xf32> to vector<1x8x128xbf16>
    %c1 = arith.constant 1 : index
    %c0_45 = arith.constant 0 : index
    %c0_46 = arith.constant 0 : index
    %c0_47 = arith.constant 0 : index
    %97 = vector.load %arg2[%c1, %c0_45, %c0_46, %c0_47] : memref<2x3x128x128xbf16, #tpu.memory_space<vmem>>, vector<1x3x128x128xbf16>
    %98 = vector.shape_cast %97 : vector<1x3x128x128xbf16> to vector<3x128x128xbf16>
    %c1_48 = arith.constant 1 : index
    %c0_49 = arith.constant 0 : index
    %c0_50 = arith.constant 0 : index
    %99 = vector.load %arg3[%c1_48, %c0_49, %c0_50] : memref<2x1x128xf32, #tpu.memory_space<vmem>>, vector<1x1x128xf32>
    %100 = vector.shape_cast %99 : vector<1x1x128xf32> to vector<1x128xf32>
    %cst_51 = arith.constant 0.000000e+00 : bf16
    %101 = vector.broadcast %cst_51 : bf16 to vector<1x4x128xbf16>
    %102 = tpu.concatenate %101, %96 in 1 : vector<1x4x128xbf16>, vector<1x8x128xbf16> -> vector<1x12x128xbf16>
    %103 = vector.extract_strided_slice %102 {offsets = [0, 0, 0], sizes = [1, 8, 128], strides = [1, 1, 1]} : vector<1x12x128xbf16> to vector<1x8x128xbf16>
    %104 = vector.extract_strided_slice %102 {offsets = [0, 2, 0], sizes = [1, 8, 128], strides = [1, 1, 1]} : vector<1x12x128xbf16> to vector<1x8x128xbf16>
    %105 = vector.extract_strided_slice %102 {offsets = [0, 4, 0], sizes = [1, 8, 128], strides = [1, 1, 1]} : vector<1x12x128xbf16> to vector<1x8x128xbf16>
    %106 = tpu.concatenate %103, %104, %105 in 2 : vector<1x8x128xbf16>, vector<1x8x128xbf16>, vector<1x8x128xbf16> -> vector<1x8x384xbf16>
    %107 = vector.shape_cast %106 : vector<1x8x384xbf16> to vector<8x384xbf16>
    %108 = vector.shape_cast %98 : vector<3x128x128xbf16> to vector<384x128xbf16>
    %cst_52 = arith.constant dense<0.000000e+00> : vector<8x128xf32>
    %109 = tpu.matmul %107, %108, %cst_52 {dimension_numbers = #tpu.dot_dimension_numbers<[1], [0], [0], [1], [0, 0, 1, 1], [], []>} : vector<8x384xbf16>, vector<384x128xbf16>, vector<8x128xf32> -> vector<8x128xf32>
    %110 = vector.broadcast %100 : vector<1x128xf32> to vector<8x128xf32>
    %111 = arith.addf %109, %110 : vector<8x128xf32>
    %c1_53 = arith.constant 1 : index
    %c0_54 = arith.constant 0 : index
    %c0_55 = arith.constant 0 : index
    %112 = vector.load %arg4[%c1_53, %c0_54, %c0_55] : memref<2x1x128xf32, #tpu.memory_space<vmem>>, vector<1x1x128xf32>
    %113 = vector.shape_cast %112 : vector<1x1x128xf32> to vector<1x128xf32>
    %c1_56 = arith.constant 1 : index
    %c0_57 = arith.constant 0 : index
    %c0_58 = arith.constant 0 : index
    %114 = vector.load %arg5[%c1_56, %c0_57, %c0_58] : memref<2x1x128xf32, #tpu.memory_space<vmem>>, vector<1x1x128xf32>
    %115 = vector.shape_cast %114 : vector<1x1x128xf32> to vector<1x128xf32>
    %cst_59 = arith.constant dense<0.000000e+00> : vector<8xf32>
    %116 = vector.multi_reduction <add>, %111, %cst_59 [1] : vector<8x128xf32> to vector<8xf32>
    %117 = vector.shape_cast %116 : vector<8xf32> to vector<8x1xf32>
    %cst_60 = arith.constant 3.125000e-02 : f32
    %118 = vector.broadcast %cst_60 : f32 to vector<8x1xf32>
    %119 = arith.mulf %117, %118 : vector<8x1xf32>
    %120 = arith.mulf %111, %111 : vector<8x128xf32>
    %cst_61 = arith.constant dense<0.000000e+00> : vector<8xf32>
    %121 = vector.multi_reduction <add>, %120, %cst_61 [1] : vector<8x128xf32> to vector<8xf32>
    %122 = vector.shape_cast %121 : vector<8xf32> to vector<8x1xf32>
    %cst_62 = arith.constant 3.125000e-02 : f32
    %123 = vector.broadcast %cst_62 : f32 to vector<8x1xf32>
    %124 = arith.mulf %122, %123 : vector<8x1xf32>
    %125 = arith.mulf %119, %119 : vector<8x1xf32>
    %126 = arith.subf %124, %125 : vector<8x1xf32>
    %cst_63 = arith.constant 0.000000e+00 : f32
    %127 = vector.broadcast %cst_63 : f32 to vector<8x1xf32>
    %128 = arith.maximumf %126, %127 : vector<8x1xf32>
    %129 = vector.broadcast %119 : vector<8x1xf32> to vector<8x128xf32>
    %130 = arith.subf %111, %129 : vector<8x128xf32>
    %cst_64 = arith.constant 9.99999993E-9 : f32
    %131 = vector.broadcast %cst_64 : f32 to vector<8x1xf32>
    %132 = arith.addf %128, %131 : vector<8x1xf32>
    %133 = math.rsqrt %132 : vector<8x1xf32>
    %134 = vector.broadcast %133 : vector<8x1xf32> to vector<8x128xf32>
    %135 = arith.mulf %130, %134 : vector<8x128xf32>
    %136 = vector.broadcast %113 : vector<1x128xf32> to vector<8x128xf32>
    %137 = arith.mulf %135, %136 : vector<8x128xf32>
    %138 = vector.broadcast %115 : vector<1x128xf32> to vector<8x128xf32>
    %139 = arith.addf %137, %138 : vector<8x128xf32>
    %cst_65 = arith.constant 0.000000e+00 : f32
    %140 = vector.broadcast %cst_65 : f32 to vector<8x128xf32>
    %141 = arith.maximumf %139, %140 : vector<8x128xf32>
    %142 = arith.truncf %141 : vector<8x128xf32> to vector<8x128xbf16>
    %143 = vector.shape_cast %142 : vector<8x128xbf16> to vector<1x8x128xbf16>
    %c1_66 = arith.constant 1 : index
    %c0_67 = arith.constant 0 : index
    %c0_68 = arith.constant 0 : index
    %c0_69 = arith.constant 0 : index
    %144 = vector.load %arg6[%c1_66, %c0_67, %c0_68, %c0_69] : memref<2x3x128x128xbf16, #tpu.memory_space<vmem>>, vector<1x3x128x128xbf16>
    %145 = vector.shape_cast %144 : vector<1x3x128x128xbf16> to vector<3x128x128xbf16>
    %c1_70 = arith.constant 1 : index
    %c0_71 = arith.constant 0 : index
    %c0_72 = arith.constant 0 : index
    %146 = vector.load %arg7[%c1_70, %c0_71, %c0_72] : memref<2x1x128xf32, #tpu.memory_space<vmem>>, vector<1x1x128xf32>
    %147 = vector.shape_cast %146 : vector<1x1x128xf32> to vector<1x128xf32>
    %cst_73 = arith.constant 0.000000e+00 : bf16
    %148 = vector.broadcast %cst_73 : bf16 to vector<1x8x128xbf16>
    %149 = tpu.concatenate %148, %143 in 1 : vector<1x8x128xbf16>, vector<1x8x128xbf16> -> vector<1x16x128xbf16>
    %150 = vector.extract_strided_slice %149 {offsets = [0, 0, 0], sizes = [1, 8, 128], strides = [1, 1, 1]} : vector<1x16x128xbf16> to vector<1x8x128xbf16>
    %151 = vector.extract_strided_slice %149 {offsets = [0, 4, 0], sizes = [1, 8, 128], strides = [1, 1, 1]} : vector<1x16x128xbf16> to vector<1x8x128xbf16>
    %152 = vector.extract_strided_slice %149 {offsets = [0, 8, 0], sizes = [1, 8, 128], strides = [1, 1, 1]} : vector<1x16x128xbf16> to vector<1x8x128xbf16>
    %153 = tpu.concatenate %150, %151, %152 in 2 : vector<1x8x128xbf16>, vector<1x8x128xbf16>, vector<1x8x128xbf16> -> vector<1x8x384xbf16>
    %154 = vector.shape_cast %153 : vector<1x8x384xbf16> to vector<8x384xbf16>
    %155 = vector.shape_cast %145 : vector<3x128x128xbf16> to vector<384x128xbf16>
    %cst_74 = arith.constant dense<0.000000e+00> : vector<8x128xf32>
    %156 = tpu.matmul %154, %155, %cst_74 {dimension_numbers = #tpu.dot_dimension_numbers<[1], [0], [0], [1], [0, 0, 1, 1], [], []>} : vector<8x384xbf16>, vector<384x128xbf16>, vector<8x128xf32> -> vector<8x128xf32>
    %157 = vector.broadcast %147 : vector<1x128xf32> to vector<8x128xf32>
    %158 = arith.addf %156, %157 : vector<8x128xf32>
    %c1_75 = arith.constant 1 : index
    %c0_76 = arith.constant 0 : index
    %c0_77 = arith.constant 0 : index
    %159 = vector.load %arg8[%c1_75, %c0_76, %c0_77] : memref<2x1x128xf32, #tpu.memory_space<vmem>>, vector<1x1x128xf32>
    %160 = vector.shape_cast %159 : vector<1x1x128xf32> to vector<1x128xf32>
    %c1_78 = arith.constant 1 : index
    %c0_79 = arith.constant 0 : index
    %c0_80 = arith.constant 0 : index
    %161 = vector.load %arg9[%c1_78, %c0_79, %c0_80] : memref<2x1x128xf32, #tpu.memory_space<vmem>>, vector<1x1x128xf32>
    %162 = vector.shape_cast %161 : vector<1x1x128xf32> to vector<1x128xf32>
    %cst_81 = arith.constant dense<0.000000e+00> : vector<8xf32>
    %163 = vector.multi_reduction <add>, %158, %cst_81 [1] : vector<8x128xf32> to vector<8xf32>
    %164 = vector.shape_cast %163 : vector<8xf32> to vector<8x1xf32>
    %cst_82 = arith.constant 3.125000e-02 : f32
    %165 = vector.broadcast %cst_82 : f32 to vector<8x1xf32>
    %166 = arith.mulf %164, %165 : vector<8x1xf32>
    %167 = arith.mulf %158, %158 : vector<8x128xf32>
    %cst_83 = arith.constant dense<0.000000e+00> : vector<8xf32>
    %168 = vector.multi_reduction <add>, %167, %cst_83 [1] : vector<8x128xf32> to vector<8xf32>
    %169 = vector.shape_cast %168 : vector<8xf32> to vector<8x1xf32>
    %cst_84 = arith.constant 3.125000e-02 : f32
    %170 = vector.broadcast %cst_84 : f32 to vector<8x1xf32>
    %171 = arith.mulf %169, %170 : vector<8x1xf32>
    %172 = arith.mulf %166, %166 : vector<8x1xf32>
    %173 = arith.subf %171, %172 : vector<8x1xf32>
    %cst_85 = arith.constant 0.000000e+00 : f32
    %174 = vector.broadcast %cst_85 : f32 to vector<8x1xf32>
    %175 = arith.maximumf %173, %174 : vector<8x1xf32>
    %176 = vector.broadcast %166 : vector<8x1xf32> to vector<8x128xf32>
    %177 = arith.subf %158, %176 : vector<8x128xf32>
    %cst_86 = arith.constant 9.99999993E-9 : f32
    %178 = vector.broadcast %cst_86 : f32 to vector<8x1xf32>
    %179 = arith.addf %175, %178 : vector<8x1xf32>
    %180 = math.rsqrt %179 : vector<8x1xf32>
    %181 = vector.broadcast %180 : vector<8x1xf32> to vector<8x128xf32>
    %182 = arith.mulf %177, %181 : vector<8x128xf32>
    %183 = vector.broadcast %160 : vector<1x128xf32> to vector<8x128xf32>
    %184 = arith.mulf %182, %183 : vector<8x128xf32>
    %185 = vector.broadcast %162 : vector<1x128xf32> to vector<8x128xf32>
    %186 = arith.addf %184, %185 : vector<8x128xf32>
    %cst_87 = arith.constant 0.000000e+00 : f32
    %187 = vector.broadcast %cst_87 : f32 to vector<8x128xf32>
    %188 = arith.maximumf %186, %187 : vector<8x128xf32>
    %189 = vector.shape_cast %188 : vector<8x128xf32> to vector<1x8x128xf32>
    %190 = arith.extf %96 : vector<1x8x128xbf16> to vector<1x8x128xf32>
    %191 = arith.addf %189, %190 : vector<1x8x128xf32>
    %192 = arith.truncf %191 : vector<1x8x128xf32> to vector<1x8x128xbf16>
    %c0_88 = arith.constant 0 : index
    %c0_89 = arith.constant 0 : index
    %c0_90 = arith.constant 0 : index
    %193 = vector.load %arg10[%c0_88, %c0_89, %c0_90] : memref<1x8x128xbf16, #tpu.memory_space<vmem>>, vector<1x8x128xbf16>
    tpu.vector_store %arg10[%c0_88, %c0_89, %c0_90], %192 {strides = array<i32>} : memref<1x8x128xbf16, #tpu.memory_space<vmem>>, vector<1x8x128xbf16>,
    return
  }
  func.func @transform_0(%arg0: i32) -> (i32, i32, i32) {
    %c0_i32 = arith.constant 0 : i32
    %c0_i32_0 = arith.constant 0 : i32
    %c0_i32_1 = arith.constant 0 : i32
    return %arg0, %c0_i32, %c0_i32_0 : i32, i32, i32
  }
  func.func @transform_1(%arg0: i32) -> (i32, i32, i32, i32) {
    %c0_i32 = arith.constant 0 : i32
    %c0_i32_0 = arith.constant 0 : i32
    %c0_i32_1 = arith.constant 0 : i32
    %c0_i32_2 = arith.constant 0 : i32
    %c0_i32_3 = arith.constant 0 : i32
    return %c0_i32, %c0_i32_0, %c0_i32_1, %c0_i32_2 : i32, i32, i32, i32
  }
  func.func @transform_2(%arg0: i32) -> (i32, i32, i32) {
    %c0_i32 = arith.constant 0 : i32
    %c0_i32_0 = arith.constant 0 : i32
    %c0_i32_1 = arith.constant 0 : i32
    %c0_i32_2 = arith.constant 0 : i32
    return %c0_i32, %c0_i32_0, %c0_i32_1 : i32, i32, i32
  }
  func.func @transform_3(%arg0: i32) -> (i32, i32, i32) {
    %c0_i32 = arith.constant 0 : i32
    %c0_i32_0 = arith.constant 0 : i32
    %c0_i32_1 = arith.constant 0 : i32
    %c0_i32_2 = arith.constant 0 : i32
    return %c0_i32, %c0_i32_0, %c0_i32_1 : i32, i32, i32
  }
  func.func @transform_4(%arg0: i32) -> (i32, i32, i32) {
    %c0_i32 = arith.constant 0 : i32
    %c0_i32_0 = arith.constant 0 : i32
    %c0_i32_1 = arith.constant 0 : i32
    %c0_i32_2 = arith.constant 0 : i32
    return %c0_i32, %c0_i32_0, %c0_i32_1 : i32, i32, i32
  }
  func.func @transform_5(%arg0: i32) -> (i32, i32, i32, i32) {
    %c0_i32 = arith.constant 0 : i32
    %c0_i32_0 = arith.constant 0 : i32
    %c0_i32_1 = arith.constant 0 : i32
    %c0_i32_2 = arith.constant 0 : i32
    %c0_i32_3 = arith.constant 0 : i32
    return %c0_i32, %c0_i32_0, %c0_i32_1, %c0_i32_2 : i32, i32, i32, i32
  }
  func.func @transform_6(%arg0: i32) -> (i32, i32, i32) {
    %c0_i32 = arith.constant 0 : i32
    %c0_i32_0 = arith.constant 0 : i32
    %c0_i32_1 = arith.constant 0 : i32
    %c0_i32_2 = arith.constant 0 : i32
    return %c0_i32, %c0_i32_0, %c0_i32_1 : i32, i32, i32
  }
  func.func @transform_7(%arg0: i32) -> (i32, i32, i32) {
    %c0_i32 = arith.constant 0 : i32
    %c0_i32_0 = arith.constant 0 : i32
    %c0_i32_1 = arith.constant 0 : i32
    %c0_i32_2 = arith.constant 0 : i32
    return %c0_i32, %c0_i32_0, %c0_i32_1 : i32, i32, i32
  }
  func.func @transform_8(%arg0: i32) -> (i32, i32, i32) {
    %c0_i32 = arith.constant 0 : i32
    %c0_i32_0 = arith.constant 0 : i32
    %c0_i32_1 = arith.constant 0 : i32
    %c0_i32_2 = arith.constant 0 : i32
    return %c0_i32, %c0_i32_0, %c0_i32_1 : i32, i32, i32
  }
  func.func @transform_9(%arg0: i32) -> (i32, i32, i32) {
    %c0_i32 = arith.constant 0 : i32
    %c0_i32_0 = arith.constant 0 : i32
    %c0_i32_1 = arith.constant 0 : i32
    return %arg0, %c0_i32, %c0_i32_0 : i32, i32, i32
  }
}

module attributes {stable_mosaic.version = 11 : i64} {
  func.func @_final_logits_kernel(%arg0: i32, %arg1: i32, %arg2: memref<8x128xbf16, #tpu.memory_space<vmem>>, %arg3: memref<128x128xbf16, #tpu.memory_space<vmem>>, %arg4: memref<1x128xf32, #tpu.memory_space<vmem>>, %arg5: memref<8x128xf32, #tpu.memory_space<vmem>>) attributes {dimension_semantics = [#tpu.dimension_semantics<parallel>, #tpu.dimension_semantics<parallel>], iteration_bounds = array<i64: 1, 1>, scalar_prefetch = 0 : i64, scratch_operands = 0 : i64, tpu.core_type = #tpu.core_type<tc>, window_params = [{transform_indices = @transform_0, window_bounds = array<i64: 8, 128>}, {transform_indices = @transform_1, window_bounds = array<i64: 128, 128>}, {transform_indices = @transform_2, window_bounds = array<i64: 1, 128>}, {transform_indices = @transform_3, window_bounds = array<i64: 8, 128>}]} {
    %c0 = arith.constant 0 : index
    %c0_0 = arith.constant 0 : index
    %0 = vector.load %arg2[%c0, %c0_0] : memref<8x128xbf16, #tpu.memory_space<vmem>>, vector<8x128xbf16>
    %cst = arith.constant 0.000000e+00 : bf16
    %1 = vector.broadcast %cst : bf16 to vector<8x128xbf16>
    %2 = arith.maximumf %0, %1 : vector<8x128xbf16>
    %c0_1 = arith.constant 0 : index
    %c0_2 = arith.constant 0 : index
    %3 = vector.load %arg3[%c0_1, %c0_2] : memref<128x128xbf16, #tpu.memory_space<vmem>>, vector<128x128xbf16>
    %cst_3 = arith.constant dense<0.000000e+00> : vector<8x128xf32>
    %4 = tpu.matmul %2, %3, %cst_3 {dimension_numbers = #tpu.dot_dimension_numbers<[1], [0], [0], [1], [0, 0, 1, 1], [], []>} : vector<8x128xbf16>, vector<128x128xbf16>, vector<8x128xf32> -> vector<8x128xf32>
    %c0_4 = arith.constant 0 : index
    %c0_5 = arith.constant 0 : index
    %5 = vector.load %arg4[%c0_4, %c0_5] : memref<1x128xf32, #tpu.memory_space<vmem>>, vector<1x128xf32>
    %6 = vector.broadcast %5 : vector<1x128xf32> to vector<8x128xf32>
    %7 = arith.addf %4, %6 : vector<8x128xf32>
    %c0_6 = arith.constant 0 : index
    %c0_7 = arith.constant 0 : index
    %8 = vector.load %arg5[%c0_6, %c0_7] : memref<8x128xf32, #tpu.memory_space<vmem>>, vector<8x128xf32>
    tpu.vector_store %arg5[%c0_6, %c0_7], %7 {strides = array<i32>} : memref<8x128xf32, #tpu.memory_space<vmem>>, vector<8x128xf32>,
    return
  }
  func.func @transform_0(%arg0: i32, %arg1: i32) -> (i32, i32) {
    %c0_i32 = arith.constant 0 : i32
    %c0_i32_0 = arith.constant 0 : i32
    return %arg1, %c0_i32 : i32, i32
  }
  func.func @transform_1(%arg0: i32, %arg1: i32) -> (i32, i32) {
    %c0_i32 = arith.constant 0 : i32
    %c0_i32_0 = arith.constant 0 : i32
    return %c0_i32, %arg0 : i32, i32
  }
  func.func @transform_2(%arg0: i32, %arg1: i32) -> (i32, i32) {
    %c0_i32 = arith.constant 0 : i32
    %c0_i32_0 = arith.constant 0 : i32
    return %c0_i32, %arg0 : i32, i32
  }
  func.func @transform_3(%arg0: i32, %arg1: i32) -> (i32, i32) {
    %c0_i32 = arith.constant 0 : i32
    return %arg1, %arg0 : i32, i32
  }
}

</mosaic_0001>

<llo_original>
// kernel: grec_forward.5
$region0: #{grec_forward.5}
  #allocation0 [shape = 'u32[]', space=smem, size = 0x4, offset = 0x4, fixed_abs, tag = 'smem constant byte address 0x4 - core index']
  #allocation1 [shape = 'u32[144,128]{1,0:T(1,128)}', space=vmem, size = 0x12000, scoped, tag = 'internal scratch']
  %s0 = inlined_call_operand.hbm [shape: bf16[2,8,128], index: 0, kind: input, shape index: {}]
  %s1 = inlined_call_operand.hbm [shape: bf16[2,8,128], index: 1, kind: input, shape index: {}]
  %s2 = inlined_call_operand.hbm [shape: bf16[128,128], index: 2, kind: input, shape index: {}]
  %s3 = inlined_call_operand.hbm [shape: f32[1,128], index: 3, kind: input, shape index: {}]
  %s4 = inlined_call_operand.hbm [shape: bf16[128,128], index: 4, kind: input, shape index: {}]
  %s5 = inlined_call_operand.hbm [shape: f32[1,128], index: 5, kind: input, shape index: {}]
  %s6 = inlined_call_operand.hbm [shape: bf16[2,8,128], index: 6, kind: output, shape index: {}]
  %s7 = sld [smem:[#allocation0]]
  $region81: #{grec_forward.5} parent=0
    _
  %s9 = ssub.s32 1, %s7
  %s10 = scalar_select 0, %s9, %s7
  $region1: #{grec_forward.5} parent=0
    #allocation2 [shape = 'u8[4096]{0}', space=vmem, size = 0x1000, scoped, tag = 'input window, operand 0']
    #allocation3 [shape = 's32[2]{0}', space=sflag, size = 0x8, scoped, tag = 'scoped memory for grec_forward.5']
    #allocation4 [shape = 's32[2]{0}', space=sflag, size = 0x8, scoped, tag = 'scoped memory for grec_forward.5']
    #allocation5 [shape = 'u8[4096]{0}', space=vmem, size = 0x1000, scoped, tag = 'input window, operand 1']
    #allocation6 [shape = 's32[2]{0}', space=sflag, size = 0x8, scoped, tag = 'scoped memory for grec_forward.5']
    #allocation7 [shape = 'u8[32768]{0}', space=vmem, size = 0x8000, scoped, tag = 'input window, operand 2, single buffered']
    #allocation8 [shape = 'u8[512]{0}', space=vmem, size = 0x400, scoped, tag = 'input window, operand 3, single buffered']
    #allocation9 [shape = 's32[1]{0}', space=sflag, size = 0x4, scoped, tag = 'scoped memory for grec_forward.5']
    #allocation10 [shape = 'u8[32768]{0}', space=vmem, size = 0x8000, scoped, tag = 'input window, operand 4, single buffered']
    #allocation11 [shape = 'u8[512]{0}', space=vmem, size = 0x400, scoped, tag = 'input window, operand 5, single buffered']
    #allocation12 [shape = 's32[1]{0}', space=sflag, size = 0x4, scoped, tag = 'scoped memory for grec_forward.5']
    #allocation13 [shape = 'u8[4096]{0}', space=vmem, size = 0x1000, scoped, tag = 'output window, operand 0']
    %11 = vsyncpa [#allocation3], 0
    %s12 = scalar_lea.sflag [#allocation3], 1
    %13 = vsyncpa %s12, 0
    %14 = vsyncpa [#allocation6], 0
    %s15 = scalar_lea.sflag [#allocation6], 1
    %16 = vsyncpa %s15, 0
    %17 = vsyncpa [#allocation9], 0
    %18 = vsyncpa [#allocation12], 0
    %19 = vsyncpa [#allocation4], 0
    %s20 = scalar_lea.sflag [#allocation4], 1
    %21 = vsyncpa %s20, 0
    loop: start=0, step=1, limit=4
    $region2: #{grec_forward.5} parent=1 // loop_pre_header
      _
    $region3: #{grec_forward.5} parent=1 // loop_header
      %s23 = sphi 0, %s27
      %p24 = scmp.ge.s32.totalorder %s23, 4
      %s33 = sphi 0, %s35
      %s36 = sphi 0, %s33
      %s37 = sphi 0, %s36
      %s53 = sphi 0, %s37
      %s59 = sphi 0, %s61
      %s62 = sphi 0, %s59
      %s63 = sphi 0, %s62
      %s79 = sphi 0, %s63
      %s83 = sphi 0, %s83
      %s85 = sphi 0, %s83
      %s86 = sphi 0, %s85
      %s100 = sphi 0, %s86
      %s104 = sphi 0, %s104
      %s106 = sphi 0, %s104
      %s107 = sphi 0, %s106
      %s121 = sphi 0, %s107
      %s125 = sphi 0, %s125
      %s127 = sphi 0, %s125
      %s128 = sphi 0, %s127
      %s142 = sphi 0, %s128
      %s146 = sphi 0, %s146
      %s148 = sphi 0, %s146
      %s149 = sphi 0, %s148
      %s163 = sphi 0, %s149
      %s169 = sphi 0, %s171
      %s172 = sphi 0, %s169
      %s173 = sphi 0, %s172
      %s189 = sphi 0, %s173
    $region4: #{grec_forward.5} parent=1 // loop_header_branch
      %26 = sbr.rel (%p24) target = $region8
    $region5: #{grec_forward.5} parent=1 // loop_body
      %s28 = ssub.s32 %s23, 1
      %s29 = ssub.s32 %s23, 2
      %s30 = sadd.s32 %s23, 1
      %s31 = ssub.s32 %s23, %s30
      %p32 = scmp.eq.s32.totalorder %s31, 0
      %s34 = sadd.s32 %s33, 1
      %s35 = scalar_select %p32, %s33, %s34
      %p38 = pneg %p32
      %p39 = scmp.eq.s32.totalorder %s23, 1
      %p40 = por %p38, %p39
      %p41 = scmp.ne.s32.totalorder %s33, %s36
      %p42 = scmp.eq.s32.totalorder %s23, 0
      %p43 = por %p41, %p42
      %p44 = scmp.ne.s32.totalorder %s33, %s36
      %p45 = scmp.eq.s32.totalorder %s28, 1
      %p46 = por %p44, %p45
      %p47 = scmp.ne.s32.totalorder %s36, %s37
      %p48 = scmp.eq.s32.totalorder %s28, 0
      %p49 = por %p47, %p48
      %p50 = scmp.ne.s32.totalorder %s36, %s37
      %p51 = scmp.eq.s32.totalorder %s29, 1
      %p52 = por %p50, %p51
      %p54 = scmp.ne.s32.totalorder %s37, %s53
      %p55 = scmp.eq.s32.totalorder %s29, 0
      %p56 = por %p54, %p55
      %s57 = ssub.s32 %s23, %s30
      %p58 = scmp.eq.s32.totalorder %s57, 0
      %s60 = sadd.s32 %s59, 1
      %s61 = scalar_select %p58, %s59, %s60
      %p64 = pneg %p58
      %p65 = scmp.eq.s32.totalorder %s23, 1
      %p66 = por %p64, %p65
      %p67 = scmp.ne.s32.totalorder %s59, %s62
      %p68 = scmp.eq.s32.totalorder %s23, 0
      %p69 = por %p67, %p68
      %p70 = scmp.ne.s32.totalorder %s59, %s62
      %p71 = scmp.eq.s32.totalorder %s28, 1
      %p72 = por %p70, %p71
      %p73 = scmp.ne.s32.totalorder %s62, %s63
      %p74 = scmp.eq.s32.totalorder %s28, 0
      %p75 = por %p73, %p74
      %p76 = scmp.ne.s32.totalorder %s62, %s63
      %p77 = scmp.eq.s32.totalorder %s29, 1
      %p78 = por %p76, %p77
      %p80 = scmp.ne.s32.totalorder %s63, %s79
      %p81 = scmp.eq.s32.totalorder %s29, 0
      %p82 = por %p80, %p81
      %s84 = sadd.s32 %s83, 1
      %p87 = scmp.eq.s32.totalorder %s23, 1
      %p88 = scmp.ne.s32.totalorder %s83, %s85
      %p89 = scmp.eq.s32.totalorder %s23, 0
      %p90 = por %p88, %p89
      %p91 = scmp.ne.s32.totalorder %s83, %s85
      %p92 = scmp.eq.s32.totalorder %s28, 1
      %p93 = por %p91, %p92
      %p94 = scmp.ne.s32.totalorder %s85, %s86
      %p95 = scmp.eq.s32.totalorder %s28, 0
      %p96 = por %p94, %p95
      %p97 = scmp.ne.s32.totalorder %s85, %s86
      %p98 = scmp.eq.s32.totalorder %s29, 1
      %p99 = por %p97, %p98
      %p101 = scmp.ne.s32.totalorder %s86, %s100
      %p102 = scmp.eq.s32.totalorder %s29, 0
      %p103 = por %p101, %p102
      %s105 = sadd.s32 %s104, 1
      %p108 = scmp.eq.s32.totalorder %s23, 1
      %p109 = scmp.ne.s32.totalorder %s104, %s106
      %p110 = scmp.eq.s32.totalorder %s23, 0
      %p111 = por %p109, %p110
      %p112 = scmp.ne.s32.totalorder %s104, %s106
      %p113 = scmp.eq.s32.totalorder %s28, 1
      %p114 = por %p112, %p113
      %p115 = scmp.ne.s32.totalorder %s106, %s107
      %p116 = scmp.eq.s32.totalorder %s28, 0
      %p117 = por %p115, %p116
      %p118 = scmp.ne.s32.totalorder %s106, %s107
      %p119 = scmp.eq.s32.totalorder %s29, 1
      %p120 = por %p118, %p119
      %p122 = scmp.ne.s32.totalorder %s107, %s121
      %p123 = scmp.eq.s32.totalorder %s29, 0
      %p124 = por %p122, %p123
      %s126 = sadd.s32 %s125, 1
      %p129 = scmp.eq.s32.totalorder %s23, 1
      %p130 = scmp.ne.s32.totalorder %s125, %s127
      %p131 = scmp.eq.s32.totalorder %s23, 0
      %p132 = por %p130, %p131
      %p133 = scmp.ne.s32.totalorder %s125, %s127
      %p134 = scmp.eq.s32.totalorder %s28, 1
      %p135 = por %p133, %p134
      %p136 = scmp.ne.s32.totalorder %s127, %s128
      %p137 = scmp.eq.s32.totalorder %s28, 0
      %p138 = por %p136, %p137
      %p139 = scmp.ne.s32.totalorder %s127, %s128
      %p140 = scmp.eq.s32.totalorder %s29, 1
      %p141 = por %p139, %p140
      %p143 = scmp.ne.s32.totalorder %s128, %s142
      %p144 = scmp.eq.s32.totalorder %s29, 0
      %p145 = por %p143, %p144
      %s147 = sadd.s32 %s146, 1
      %p150 = scmp.eq.s32.totalorder %s23, 1
      %p151 = scmp.ne.s32.totalorder %s146, %s148
      %p152 = scmp.eq.s32.totalorder %s23, 0
      %p153 = por %p151, %p152
      %p154 = scmp.ne.s32.totalorder %s146, %s148
      %p155 = scmp.eq.s32.totalorder %s28, 1
      %p156 = por %p154, %p155
      %p157 = scmp.ne.s32.totalorder %s148, %s149
      %p158 = scmp.eq.s32.totalorder %s28, 0
      %p159 = por %p157, %p158
      %p160 = scmp.ne.s32.totalorder %s148, %s149
      %p161 = scmp.eq.s32.totalorder %s29, 1
      %p162 = por %p160, %p161
      %p164 = scmp.ne.s32.totalorder %s149, %s163
      %p165 = scmp.eq.s32.totalorder %s29, 0
      %p166 = por %p164, %p165
      %s167 = ssub.s32 %s23, %s30
      %p168 = scmp.eq.s32.totalorder %s167, 0
      %s170 = sadd.s32 %s169, 1
      %s171 = scalar_select %p168, %s169, %s170
      %p174 = pneg %p168
      %p175 = scmp.eq.s32.totalorder %s23, 1
      %p176 = por %p174, %p175
      %p177 = scmp.ne.s32.totalorder %s169, %s172
      %p178 = scmp.eq.s32.totalorder %s23, 0
      %p179 = por %p177, %p178
      %p180 = scmp.ne.s32.totalorder %s169, %s172
      %p181 = scmp.eq.s32.totalorder %s28, 1
      %p182 = por %p180, %p181
      %p183 = scmp.ne.s32.totalorder %s172, %s173
      %p184 = scmp.eq.s32.totalorder %s28, 0
      %p185 = por %p183, %p184
      %p186 = scmp.ne.s32.totalorder %s172, %s173
      %p187 = scmp.eq.s32.totalorder %s29, 1
      %p188 = por %p186, %p187
      %p190 = scmp.ne.s32.totalorder %s173, %s189
      %p191 = scmp.eq.s32.totalorder %s29, 0
      %p192 = por %p190, %p191
      %p193 = scmp.le.s32.totalorder 1, %s23
      %p194 = scmp.lt.s32.totalorder %s23, 3
      %p195 = pnand %p193, %p194
      %p196 = pneg %p195
      // Predicated region
      $region9: #{grec_forward.5} parent=5 // pred_check
        _
      $region10: #{grec_forward.5} parent=5 // pred_check_branch
        %198 = sbr.rel (%p195) target = $region12
      $region11: #{grec_forward.5} parent=5 // pred_region
        %s199 = ssub.s32 %s23, 1
        // Predicated region
        $region13: #{grec_forward.5} parent=11 // pred_check
          %p200 = pneg %p96
        $region14: #{grec_forward.5} parent=11 // pred_check_branch
          %202 = sbr.rel (%p200) target = $region16
        $region15: #{grec_forward.5} parent=11 // pred_region
          %s204 = ssub.s32 1024, 1024
          %205 = vsyncadd [#allocation6], %s204
          %s206 = sshll.u32 [#allocation7], 4
          %s207 = int_to_ptr.vmem [resolvable:$true] %s206
          %212 = dma.hbm_to_vmem [thread:$0]  %s2, 1024, %s207, [#allocation6], 64, 64, 4
        $region16: #{grec_forward.5} parent=11 // pred_fallthru
          _
        // Predicated region
        $region17: #{grec_forward.5} parent=11 // pred_check
          %p213 = pneg %p117
        $region18: #{grec_forward.5} parent=11 // pred_check_branch
          %215 = sbr.rel (%p213) target = $region20
        $region19: #{grec_forward.5} parent=11 // pred_region
          %s217 = ssub.s32 16, 16
          %218 = vsyncadd [#allocation9], %s217
          %s220 = sshll.u32 [#allocation8], 4
          %s221 = int_to_ptr.vmem [resolvable:$true] %s220
          %223 = dma.hbm_to_vmem [thread:$0]  %s3, 16, %s221, [#allocation9]
        $region20: #{grec_forward.5} parent=11 // pred_fallthru
          _
        // Predicated region
        $region21: #{grec_forward.5} parent=11 // pred_check
          %p224 = pneg %p138
        $region22: #{grec_forward.5} parent=11 // pred_check_branch
          %226 = sbr.rel (%p224) target = $region24
        $region23: #{grec_forward.5} parent=11 // pred_region
          %s228 = ssub.s32 1024, 1024
          %229 = vsyncadd [#allocation9], %s228
          %s230 = sshll.u32 [#allocation10], 4
          %s231 = int_to_ptr.vmem [resolvable:$true] %s230
          %236 = dma.hbm_to_vmem [thread:$0]  %s4, 1024, %s231, [#allocation9], 64, 64, 4
        $region24: #{grec_forward.5} parent=11 // pred_fallthru
          _
        // Predicated region
        $region25: #{grec_forward.5} parent=11 // pred_check
          %p237 = pneg %p159
        $region26: #{grec_forward.5} parent=11 // pred_check_branch
          %239 = sbr.rel (%p237) target = $region28
        $region27: #{grec_forward.5} parent=11 // pred_region
          %s241 = ssub.s32 16, 16
          %242 = vsyncadd [#allocation12], %s241
          %s244 = sshll.u32 [#allocation11], 4
          %s245 = int_to_ptr.vmem [resolvable:$true] %s244
          %247 = dma.hbm_to_vmem [thread:$0]  %s5, 16, %s245, [#allocation12]
        $region28: #{grec_forward.5} parent=11 // pred_fallthru
          _
      $region12: #{grec_forward.5} parent=5 // pred_fallthru
        _
      %p248 = scmp.lt.s32.totalorder %s23, 2
      // Predicated region
      $region29: #{grec_forward.5} parent=5 // pred_check
        %p249 = pneg %p248
      $region30: #{grec_forward.5} parent=5 // pred_check_branch
        %251 = sbr.rel (%p249) target = $region32
      $region31: #{grec_forward.5} parent=5 // pred_region
        // Predicated region
        $region33: #{grec_forward.5} parent=31 // pred_check
          %p252 = pneg %p43
        $region34: #{grec_forward.5} parent=31 // pred_check_branch
          %254 = sbr.rel (%p252) target = $region36
        $region35: #{grec_forward.5} parent=31 // pred_region
          %s255 = sand.u32 %s33, 1
          %s256 = scalar_lea.sflag [#allocation3], %s255
          %s257 = sand.u32 %s33, 1
          %s258 = smul.addr %s257, 4
          %s259 = scalar_lea.vmem [#allocation2], %s258
          %s261 = ssub.s32 64, 64
          %262 = vsyncadd %s256, %s261
          %s263 = smul.addr %s23, 64
          %s264 = scalar_lea.hbm %s0, %s263
          %s266 = sshll.u32 %s259, 4
          %s267 = int_to_ptr.vmem [resolvable:$true] %s266
          %269 = dma.hbm_to_vmem [thread:$0]  %s264, 64, %s267, %s256
        $region36: #{grec_forward.5} parent=31 // pred_fallthru
          _
        // Predicated region
        $region37: #{grec_forward.5} parent=31 // pred_check
          %p270 = pneg %p69
        $region38: #{grec_forward.5} parent=31 // pred_check_branch
          %272 = sbr.rel (%p270) target = $region40
        $region39: #{grec_forward.5} parent=31 // pred_region
          %s273 = sand.u32 %s23, 1
          %s274 = scalar_lea.sflag [#allocation6], %s273
          %s275 = sand.u32 %s59, 1
          %s276 = smul.addr %s275, 4
          %s277 = scalar_lea.vmem [#allocation5], %s276
          %s279 = ssub.s32 64, 64
          %280 = vsyncadd %s274, %s279
          %s281 = smul.addr %s23, 64
          %s282 = scalar_lea.hbm %s1, %s281
          %s284 = sshll.u32 %s277, 4
          %s285 = int_to_ptr.vmem [resolvable:$true] %s284
          %287 = dma.hbm_to_vmem [thread:$0]  %s282, 64, %s285, %s274
        $region40: #{grec_forward.5} parent=31 // pred_fallthru
          _
      $region32: #{grec_forward.5} parent=5 // pred_fallthru
        _
      %p288 = scmp.le.s32.totalorder 1, %s23
      %p289 = scmp.lt.s32.totalorder %s23, 3
      %p290 = pnand %p288, %p289
      %p291 = pneg %p290
      // Predicated region
      $region41: #{grec_forward.5} parent=5 // pred_check
        _
      $region42: #{grec_forward.5} parent=5 // pred_check_branch
        %293 = sbr.rel (%p290) target = $region44
      $region43: #{grec_forward.5} parent=5 // pred_region
        %s294 = ssub.s32 %s23, 1
        %s295 = sand.u32 %s36, 1
        %s296 = scalar_lea.sflag [#allocation3], %s295
        %s297 = sand.u32 %s36, 1
        %s298 = smul.addr %s297, 4
        %s299 = scalar_lea.vmem [#allocation2], %s298
        // Predicated region
        $region45: #{grec_forward.5} parent=43 // pred_check
          %p300 = pneg %p49
        $region46: #{grec_forward.5} parent=43 // pred_check_branch
          %302 = sbr.rel (%p300) target = $region48
        $region47: #{grec_forward.5} parent=43 // pred_region
          %303 = dma.done %s296, 64
        $region48: #{grec_forward.5} parent=43 // pred_fallthru
          _
        %s304 = sand.u32 %s28, 1
        %s305 = scalar_lea.sflag [#allocation6], %s304
        %s306 = sand.u32 %s62, 1
        %s307 = smul.addr %s306, 4
        %s308 = scalar_lea.vmem [#allocation5], %s307
        // Predicated region
        $region49: #{grec_forward.5} parent=43 // pred_check
          %p309 = pneg %p75
        $region50: #{grec_forward.5} parent=43 // pred_check_branch
          %311 = sbr.rel (%p309) target = $region52
        $region51: #{grec_forward.5} parent=43 // pred_region
          %312 = dma.done %s305, 64
        $region52: #{grec_forward.5} parent=43 // pred_fallthru
          _
        // Predicated region
        $region53: #{grec_forward.5} parent=43 // pred_check
          %p313 = pneg %p96
        $region54: #{grec_forward.5} parent=43 // pred_check_branch
          %315 = sbr.rel (%p313) target = $region56
        $region55: #{grec_forward.5} parent=43 // pred_region
          %316 = dma.done [#allocation6], 1024
        $region56: #{grec_forward.5} parent=43 // pred_fallthru
          _
        // Predicated region
        $region57: #{grec_forward.5} parent=43 // pred_check
          %p317 = pneg %p117
        $region58: #{grec_forward.5} parent=43 // pred_check_branch
          %319 = sbr.rel (%p317) target = $region60
        $region59: #{grec_forward.5} parent=43 // pred_region
          %320 = dma.done [#allocation9], 16
        $region60: #{grec_forward.5} parent=43 // pred_fallthru
          _
        // Predicated region
        $region61: #{grec_forward.5} parent=43 // pred_check
          %p321 = pneg %p138
        $region62: #{grec_forward.5} parent=43 // pred_check_branch
          %323 = sbr.rel (%p321) target = $region64
        $region63: #{grec_forward.5} parent=43 // pred_region
          %324 = dma.done [#allocation9], 1024
        $region64: #{grec_forward.5} parent=43 // pred_fallthru
          _
        // Predicated region
        $region65: #{grec_forward.5} parent=43 // pred_check
          %p325 = pneg %p159
        $region66: #{grec_forward.5} parent=43 // pred_check_branch
          %327 = sbr.rel (%p325) target = $region68
        $region67: #{grec_forward.5} parent=43 // pred_region
          %328 = dma.done [#allocation12], 16
        $region68: #{grec_forward.5} parent=43 // pred_fallthru
          _
        %s329 = sand.u32 %s36, 1
        %s330 = scalar_lea.sflag [#allocation3], %s329
        %s331 = sand.u32 %s36, 1
        %s332 = smul.addr %s331, 4
        %s333 = scalar_lea.vmem [#allocation2], %s332
        %p334 = pneg %p49
        %p335 = pneg %p46
        %s336 = sand.u32 %s28, 1
        %s337 = scalar_lea.sflag [#allocation6], %s336
        %s338 = sand.u32 %s62, 1
        %s339 = smul.addr %s338, 4
        %s340 = scalar_lea.vmem [#allocation5], %s339
        %p341 = pneg %p75
        %p342 = pneg %p72
        %p343 = pneg %p96
        %p344 = pneg %p93
        %p345 = pneg %p117
        %p346 = pneg %p114
        %p347 = pneg %p138
        %p348 = pneg %p135
        %p349 = pneg %p159
        %p350 = pneg %p156
        %p351 = pneg %p185
        %p352 = pneg %p182
        %s353 = sand.u32 %s172, 1
        %s354 = scalar_lea.sflag [#allocation4], %s353
        %s355 = sand.u32 %s172, 1
        %s356 = smul.addr %s355, 4
        %s357 = scalar_lea.vmem [#allocation13], %s356
        %v359 = vld [vmem:[%s299] sm:$0xf]
        %v360 = vunpack.c.l.bf16 %v359
        %v361 = vld [vmem:[%s308] sm:$0xf]
        %v362 = vunpack.c.l.bf16 %v361
        %v363 = vadd.f32 %v360, %v362
        %v364 = vpack.c.bf16 %v363, %v363
        %v365 = vld [vmem:[#allocation7] sm:$0xf]
        %v366 = vld [vmem:[#allocation7 + $0x4] sm:$0xf]
        %v367 = vld [vmem:[#allocation7 + $0x8] sm:$0xf]
        %v368 = vld [vmem:[#allocation7 + $0xc] sm:$0xf]
        %v369 = vld [vmem:[#allocation7 + $0x10] sm:$0xf]
        %v370 = vld [vmem:[#allocation7 + $0x14] sm:$0xf]
        %v371 = vld [vmem:[#allocation7 + $0x18] sm:$0xf]
        %v372 = vld [vmem:[#allocation7 + $0x1c] sm:$0xf]
        %v373 = vld [vmem:[#allocation7 + $0x20] sm:$0xf]
        %v374 = vld [vmem:[#allocation7 + $0x24] sm:$0xf]
        %v375 = vld [vmem:[#allocation7 + $0x28] sm:$0xf]
        %v376 = vld [vmem:[#allocation7 + $0x2c] sm:$0xf]
        %v377 = vld [vmem:[#allocation7 + $0x30] sm:$0xf]
        %v378 = vld [vmem:[#allocation7 + $0x34] sm:$0xf]
        %v379 = vld [vmem:[#allocation7 + $0x38] sm:$0xf]
        %v380 = vld [vmem:[#allocation7 + $0x3c] sm:$0xf]
        %v381 = vld [vmem:[#allocation8] sm:$0x1]
        %v383 = vlaneseq
        %v384 = vshrl.u32 %v383, 7
        %v385 = vsub.s32 0, %v384
        %v386 = vrot.slane %v381, %v385
        %v404 = vunpack.c.l.b16 %v365
        %v405 = vunpack.c.l.b16 %v366
        %v406 = vunpack.c.l.b16 %v367
        %v407 = vunpack.c.l.b16 %v368
        %v408 = vunpack.c.l.b16 %v369
        %v409 = vunpack.c.l.b16 %v370
        %v410 = vunpack.c.l.b16 %v371
        %v411 = vunpack.c.l.b16 %v372
        %v412 = vunpack.c.l.b16 %v373
        %v413 = vunpack.c.l.b16 %v374
        %v414 = vunpack.c.l.b16 %v375
        %v415 = vunpack.c.l.b16 %v376
        %v416 = vunpack.c.l.b16 %v377
        %v417 = vunpack.c.l.b16 %v378
        %v418 = vunpack.c.l.b16 %v379
        %v419 = vunpack.c.l.b16 %v380
        %v420 = vpack.c.b16 %v405, %v404
        %v421 = vpack.c.b16 %v407, %v406
        %v422 = vpack.c.b16 %v409, %v408
        %v423 = vpack.c.b16 %v411, %v410
        %v424 = vpack.c.b16 %v413, %v412
        %v425 = vpack.c.b16 %v415, %v414
        %v426 = vpack.c.b16 %v417, %v416
        %v427 = vpack.c.b16 %v419, %v418
        %436 = vmatprep.subr.bf16.mxu0 0
        %437 = vmatpush1.bf16.msra.mxu0 %v420
        %438 = vmatprep.subr.bf16.mxu0 0
        %439 = vmatpush1.bf16.msra.mxu0 %v421
        %440 = vmatprep.subr.bf16.mxu0 0
        %441 = vmatpush1.bf16.msra.mxu0 %v422
        %442 = vmatprep.subr.bf16.mxu0 0
        %443 = vmatpush1.bf16.msra.mxu0 %v423
        %444 = vmatprep.subr.bf16.mxu0 0
        %445 = vmatpush1.bf16.msra.mxu0 %v424
        %446 = vmatprep.subr.bf16.mxu0 0
        %447 = vmatpush1.bf16.msra.mxu0 %v425
        %448 = vmatprep.subr.bf16.mxu0 0
        %449 = vmatpush1.bf16.msra.mxu0 %v426
        %450 = vmatprep.subr.bf16.mxu0 0
        %451 = vmatpush1.bf16.msra.mxu0 %v427
        %452 = vmatprep.subr.bf16.mxu0 0
        %453 = vmatpush1.bf16.msra.mxu0 0
        %454 = vmatprep.subr.bf16.mxu0 0
        %455 = vmatpush1.bf16.msra.mxu0 0
        %456 = vmatprep.subr.bf16.mxu0 0
        %457 = vmatpush1.bf16.msra.mxu0 0
        %458 = vmatprep.subr.bf16.mxu0 0
        %459 = vmatpush1.bf16.msra.mxu0 0
        %460 = vmatprep.subr.bf16.mxu0 0
        %461 = vmatpush1.bf16.msra.mxu0 0
        %462 = vmatprep.subr.bf16.mxu0 0
        %463 = vmatpush1.bf16.msra.mxu0 0
        %464 = vmatprep.subr.bf16.mxu0 0
        %465 = vmatpush1.bf16.msra.mxu0 0
        %466 = vmatprep.subr.bf16.mxu0 0
        %467 = vmatpush1.bf16.msra.mxu0 0
        %468 = vmatprep.mubr.bf16.mxu0 0
        %469 = vmatmul.mubr.bf16.gmra.mrb[0].mxu0 %v364
        %v470 = vpop.f32.mrb[0].mxu0
        %v471 = vadd.f32 %v386, %v470
        %v472 = vpop.f32.mrb[0].mxu0
        %v473 = vpop.f32.mrb[0].mxu0
        %v474 = vpop.f32.mrb[0].mxu0
        %475 = vdwg.mxu0
        %v476 = vmul.f32 %v471, 0.044715
        %v477 = vmul.f32 %v476, %v471
        %v478 = vmul.f32 %v477, %v471
        %v479 = vadd.f32 %v471, %v478
        %v480 = vmul.f32 %v479, 0.7978846
        %v481 = vtanh.pop %v480
        %v482 = vadd.f32 %v481, 1.0
        %v483 = vmul.f32 %v482, 0.5
        %v484 = vmul.f32 %v471, %v483
        %v485 = vpack.c.bf16 %v484, %v484
        %v486 = vld [vmem:[#allocation10] sm:$0xf]
        %v487 = vld [vmem:[#allocation10 + $0x4] sm:$0xf]
        %v488 = vld [vmem:[#allocation10 + $0x8] sm:$0xf]
        %v489 = vld [vmem:[#allocation10 + $0xc] sm:$0xf]
        %v490 = vld [vmem:[#allocation10 + $0x10] sm:$0xf]
        %v491 = vld [vmem:[#allocation10 + $0x14] sm:$0xf]
        %v492 = vld [vmem:[#allocation10 + $0x18] sm:$0xf]
        %v493 = vld [vmem:[#allocation10 + $0x1c] sm:$0xf]
        %v494 = vld [vmem:[#allocation10 + $0x20] sm:$0xf]
        %v495 = vld [vmem:[#allocation10 + $0x24] sm:$0xf]
        %v496 = vld [vmem:[#allocation10 + $0x28] sm:$0xf]
        %v497 = vld [vmem:[#allocation10 + $0x2c] sm:$0xf]
        %v498 = vld [vmem:[#allocation10 + $0x30] sm:$0xf]
        %v499 = vld [vmem:[#allocation10 + $0x34] sm:$0xf]
        %v500 = vld [vmem:[#allocation10 + $0x38] sm:$0xf]
        %v501 = vld [vmem:[#allocation10 + $0x3c] sm:$0xf]
        %v502 = vld [vmem:[#allocation11] sm:$0x1]
        %v504 = vlaneseq
        %v505 = vshrl.u32 %v504, 7
        %v506 = vsub.s32 0, %v505
        %v507 = vrot.slane %v502, %v506
        %v525 = vunpack.c.l.b16 %v486
        %v526 = vunpack.c.l.b16 %v487
        %v527 = vunpack.c.l.b16 %v488
        %v528 = vunpack.c.l.b16 %v489
        %v529 = vunpack.c.l.b16 %v490
        %v530 = vunpack.c.l.b16 %v491
        %v531 = vunpack.c.l.b16 %v492
        %v532 = vunpack.c.l.b16 %v493
        %v533 = vunpack.c.l.b16 %v494
        %v534 = vunpack.c.l.b16 %v495
        %v535 = vunpack.c.l.b16 %v496
        %v536 = vunpack.c.l.b16 %v497
        %v537 = vunpack.c.l.b16 %v498
        %v538 = vunpack.c.l.b16 %v499
        %v539 = vunpack.c.l.b16 %v500
        %v540 = vunpack.c.l.b16 %v501
        %v541 = vpack.c.b16 %v526, %v525
        %v542 = vpack.c.b16 %v528, %v527
        %v543 = vpack.c.b16 %v530, %v529
        %v544 = vpack.c.b16 %v532, %v531
        %v545 = vpack.c.b16 %v534, %v533
        %v546 = vpack.c.b16 %v536, %v535
        %v547 = vpack.c.b16 %v538, %v537
        %v548 = vpack.c.b16 %v540, %v539
        %557 = vmatprep.subr.bf16.mxu0 0
        %558 = vmatpush1.bf16.msra.mxu0 %v541
        %559 = vmatprep.subr.bf16.mxu0 0
        %560 = vmatpush1.bf16.msra.mxu0 %v542
        %561 = vmatprep.subr.bf16.mxu0 0
        %562 = vmatpush1.bf16.msra.mxu0 %v543
        %563 = vmatprep.subr.bf16.mxu0 0
        %564 = vmatpush1.bf16.msra.mxu0 %v544
        %565 = vmatprep.subr.bf16.mxu0 0
        %566 = vmatpush1.bf16.msra.mxu0 %v545
        %567 = vmatprep.subr.bf16.mxu0 0
        %568 = vmatpush1.bf16.msra.mxu0 %v546
        %569 = vmatprep.subr.bf16.mxu0 0
        %570 = vmatpush1.bf16.msra.mxu0 %v547
        %571 = vmatprep.subr.bf16.mxu0 0
        %572 = vmatpush1.bf16.msra.mxu0 %v548
        %573 = vmatprep.subr.bf16.mxu0 0
        %574 = vmatpush1.bf16.msra.mxu0 0
        %575 = vmatprep.subr.bf16.mxu0 0
        %576 = vmatpush1.bf16.msra.mxu0 0
        %577 = vmatprep.subr.bf16.mxu0 0
        %578 = vmatpush1.bf16.msra.mxu0 0
        %579 = vmatprep.subr.bf16.mxu0 0
        %580 = vmatpush1.bf16.msra.mxu0 0
        %581 = vmatprep.subr.bf16.mxu0 0
        %582 = vmatpush1.bf16.msra.mxu0 0
        %583 = vmatprep.subr.bf16.mxu0 0
        %584 = vmatpush1.bf16.msra.mxu0 0
        %585 = vmatprep.subr.bf16.mxu0 0
        %586 = vmatpush1.bf16.msra.mxu0 0
        %587 = vmatprep.subr.bf16.mxu0 0
        %588 = vmatpush1.bf16.msra.mxu0 0
        %589 = vmatprep.mubr.bf16.mxu0 0
        %590 = vmatmul.mubr.bf16.gmra.mrb[0].mxu0 %v485
        %v591 = vpop.f32.mrb[0].mxu0
        %v592 = vadd.f32 %v507, %v591
        %v593 = vpop.f32.mrb[0].mxu0
        %v594 = vpop.f32.mrb[0].mxu0
        %v595 = vpop.f32.mrb[0].mxu0
        %596 = vdwg.mxu0
        %v597 = vadd.f32 %v592, %v363
        %v598 = vpack.c.bf16 %v597, %v597
        %599 = vst [vmem:[%s357] sm:$0xf] %v598
        %s600 = sand.u32 %s172, 1
        %s601 = scalar_lea.sflag [#allocation4], %s600
        %s602 = sand.u32 %s172, 1
        %s603 = smul.addr %s602, 4
        %s604 = scalar_lea.vmem [#allocation13], %s603
        // Predicated region
        $region69: #{grec_forward.5} parent=43 // pred_check
          %p605 = pneg %p182
        $region70: #{grec_forward.5} parent=43 // pred_check_branch
          %607 = sbr.rel (%p605) target = $region72
        $region71: #{grec_forward.5} parent=43 // pred_region
          %s609 = ssub.s32 64, 64
          %610 = vsyncadd %s601, %s609
          %s611 = smul.addr %s28, 64
          %s612 = scalar_lea.hbm %s6, %s611
          %s614 = sshll.u32 %s604, 4
          %s615 = int_to_ptr.vmem [resolvable:$true] %s614
          %617 = dma.vmem_to_hbm [thread:$0]  %s615, 64, %s612, %s601
        $region72: #{grec_forward.5} parent=43 // pred_fallthru
          _
      $region44: #{grec_forward.5} parent=5 // pred_fallthru
        _
      %p618 = scmp.le.s32.totalorder 2, %s23
      // Predicated region
      $region73: #{grec_forward.5} parent=5 // pred_check
        %p619 = pneg %p618
      $region74: #{grec_forward.5} parent=5 // pred_check_branch
        %621 = sbr.rel (%p619) target = $region76
      $region75: #{grec_forward.5} parent=5 // pred_region
        %s622 = ssub.s32 %s23, 2
        // Predicated region
        $region77: #{grec_forward.5} parent=75 // pred_check
          %p623 = pneg %p188
        $region78: #{grec_forward.5} parent=75 // pred_check_branch
          %625 = sbr.rel (%p623) target = $region80
        $region79: #{grec_forward.5} parent=75 // pred_region
          %s626 = sand.u32 %s173, 1
          %s627 = scalar_lea.sflag [#allocation4], %s626
          %s628 = sand.u32 %s173, 1
          %s629 = smul.addr %s628, 4
          %s630 = scalar_lea.vmem [#allocation13], %s629
          %631 = dma.done %s627, 64
        $region80: #{grec_forward.5} parent=75 // pred_fallthru
          _
      $region76: #{grec_forward.5} parent=5 // pred_fallthru
        _
    $region6: #{grec_forward.5} parent=1 // loop_footer
      %s27 = sadd.s32 1, %s23
    $region7: #{grec_forward.5} parent=1 // loop_footer_branch
      %22 = sbr.rel target = $region3
    $region8: #{grec_forward.5} parent=1 // loop_exit
      _
    %632 = vsyncpa [#allocation3], 1
    %s633 = scalar_lea.sflag [#allocation3], 1
    %634 = vsyncpa %s633, 1
    %635 = vsyncpa [#allocation6], 1
    %s636 = scalar_lea.sflag [#allocation6], 1
    %637 = vsyncpa %s636, 1
    %638 = vsyncpa [#allocation9], 1
    %639 = vsyncpa [#allocation12], 1
    %640 = vsyncpa [#allocation4], 1
    %s641 = scalar_lea.sflag [#allocation4], 1
    %642 = vsyncpa %s641, 1

// kernel: grec_forward.7
$region0: #{grec_forward.7}
  #allocation0 [shape = 'u32[]', space=smem, size = 0x4, offset = 0x4, fixed_abs, tag = 'smem constant byte address 0x4 - core index']
  #allocation1 [shape = 'u32[144,128]{1,0:T(1,128)}', space=vmem, size = 0x12000, scoped, tag = 'internal scratch']
  %s0 = inlined_call_operand.hbm [shape: bf16[8,128], index: 0, kind: input, shape index: {}]
  %s1 = inlined_call_operand.hbm [shape: bf16[128,128], index: 1, kind: input, shape index: {}]
  %s2 = inlined_call_operand.hbm [shape: f32[1,128], index: 2, kind: input, shape index: {}]
  %s3 = inlined_call_operand.hbm [shape: f32[8,128], index: 3, kind: output, shape index: {}]
  %s4 = sld [smem:[#allocation0]]
  $region34: #{grec_forward.7} parent=0
    _
  %s6 = ssub.s32 1, %s4
  %s7 = scalar_select 0, %s6, %s4
  $region1: #{grec_forward.7} parent=0
    #allocation2 [shape = 'u8[2048]{0}', space=vmem, size = 0x800, scoped, tag = 'input window, operand 0, single buffered']
    #allocation3 [shape = 's32[1]{0}', space=sflag, size = 0x4, scoped, tag = 'scoped memory for grec_forward.7']
    #allocation4 [shape = 's32[1]{0}', space=sflag, size = 0x4, scoped, tag = 'scoped memory for grec_forward.7']
    #allocation5 [shape = 'u8[32768]{0}', space=vmem, size = 0x8000, scoped, tag = 'input window, operand 1, single buffered']
    #allocation6 [shape = 's32[1]{0}', space=sflag, size = 0x4, scoped, tag = 'scoped memory for grec_forward.7']
    #allocation7 [shape = 'u8[512]{0}', space=vmem, size = 0x400, scoped, tag = 'input window, operand 2, single buffered']
    #allocation8 [shape = 'u8[4096]{0}', space=vmem, size = 0x1000, scoped, tag = 'output window, operand 0, single buffered']
    %8 = vsyncpa [#allocation3], 0
    %9 = vsyncpa [#allocation6], 0
    %10 = vsyncpa [#allocation4], 0
    // Predicated region
    $region2: #{grec_forward.7} parent=1 // pred_check
      _
    $region3: #{grec_forward.7} parent=1 // pred_check_branch
      %12 = sbr.rel (0) target = $region5
    $region4: #{grec_forward.7} parent=1 // pred_region
      %s14 = ssub.s32 64, 64
      %15 = vsyncadd [#allocation3], %s14
      %s17 = sshll.u32 [#allocation2], 4
      %s18 = int_to_ptr.vmem [resolvable:$true] %s17
      %20 = dma.hbm_to_vmem [thread:$0]  %s0, 64, %s18, [#allocation3]
    $region5: #{grec_forward.7} parent=1 // pred_fallthru
      _
    // Predicated region
    $region6: #{grec_forward.7} parent=1 // pred_check
      _
    $region7: #{grec_forward.7} parent=1 // pred_check_branch
      %22 = sbr.rel (0) target = $region9
    $region8: #{grec_forward.7} parent=1 // pred_region
      %s24 = ssub.s32 1024, 1024
      %25 = vsyncadd [#allocation6], %s24
      %s26 = sshll.u32 [#allocation5], 4
      %s27 = int_to_ptr.vmem [resolvable:$true] %s26
      %32 = dma.hbm_to_vmem [thread:$0]  %s1, 1024, %s27, [#allocation6], 64, 64, 4
    $region9: #{grec_forward.7} parent=1 // pred_fallthru
      _
    // Predicated region
    $region10: #{grec_forward.7} parent=1 // pred_check
      _
    $region11: #{grec_forward.7} parent=1 // pred_check_branch
      %34 = sbr.rel (0) target = $region13
    $region12: #{grec_forward.7} parent=1 // pred_region
      %s36 = ssub.s32 16, 16
      %37 = vsyncadd [#allocation6], %s36
      %s39 = sshll.u32 [#allocation7], 4
      %s40 = int_to_ptr.vmem [resolvable:$true] %s39
      %42 = dma.hbm_to_vmem [thread:$0]  %s2, 16, %s40, [#allocation6]
    $region13: #{grec_forward.7} parent=1 // pred_fallthru
      _
    // Predicated region
    $region14: #{grec_forward.7} parent=1 // pred_check
      _
    $region15: #{grec_forward.7} parent=1 // pred_check_branch
      %44 = sbr.rel (0) target = $region17
    $region16: #{grec_forward.7} parent=1 // pred_region
      %45 = dma.done [#allocation3], 64
    $region17: #{grec_forward.7} parent=1 // pred_fallthru
      _
    // Predicated region
    $region18: #{grec_forward.7} parent=1 // pred_check
      _
    $region19: #{grec_forward.7} parent=1 // pred_check_branch
      %47 = sbr.rel (0) target = $region21
    $region20: #{grec_forward.7} parent=1 // pred_region
      %48 = dma.done [#allocation6], 1024
    $region21: #{grec_forward.7} parent=1 // pred_fallthru
      _
    // Predicated region
    $region22: #{grec_forward.7} parent=1 // pred_check
      _
    $region23: #{grec_forward.7} parent=1 // pred_check_branch
      %50 = sbr.rel (0) target = $region25
    $region24: #{grec_forward.7} parent=1 // pred_region
      %51 = dma.done [#allocation6], 16
    $region25: #{grec_forward.7} parent=1 // pred_fallthru
      _
    %v53 = vld [vmem:[#allocation2] sm:$0xf]
    %v54 = vmax.bf16 %v53, 0
    %v55 = vld [vmem:[#allocation5] sm:$0xf]
    %v56 = vld [vmem:[#allocation5 + $0x4] sm:$0xf]
    %v57 = vld [vmem:[#allocation5 + $0x8] sm:$0xf]
    %v58 = vld [vmem:[#allocation5 + $0xc] sm:$0xf]
    %v59 = vld [vmem:[#allocation5 + $0x10] sm:$0xf]
    %v60 = vld [vmem:[#allocation5 + $0x14] sm:$0xf]
    %v61 = vld [vmem:[#allocation5 + $0x18] sm:$0xf]
    %v62 = vld [vmem:[#allocation5 + $0x1c] sm:$0xf]
    %v63 = vld [vmem:[#allocation5 + $0x20] sm:$0xf]
    %v64 = vld [vmem:[#allocation5 + $0x24] sm:$0xf]
    %v65 = vld [vmem:[#allocation5 + $0x28] sm:$0xf]
    %v66 = vld [vmem:[#allocation5 + $0x2c] sm:$0xf]
    %v67 = vld [vmem:[#allocation5 + $0x30] sm:$0xf]
    %v68 = vld [vmem:[#allocation5 + $0x34] sm:$0xf]
    %v69 = vld [vmem:[#allocation5 + $0x38] sm:$0xf]
    %v70 = vld [vmem:[#allocation5 + $0x3c] sm:$0xf]
    %v71 = vld [vmem:[#allocation7] sm:$0x1]
    %v73 = vlaneseq
    %v74 = vshrl.u32 %v73, 7
    %v75 = vsub.s32 0, %v74
    %v76 = vrot.slane %v71, %v75
    %v94 = vunpack.c.l.b16 %v55
    %v95 = vunpack.c.l.b16 %v56
    %v96 = vunpack.c.l.b16 %v57
    %v97 = vunpack.c.l.b16 %v58
    %v98 = vunpack.c.l.b16 %v59
    %v99 = vunpack.c.l.b16 %v60
    %v100 = vunpack.c.l.b16 %v61
    %v101 = vunpack.c.l.b16 %v62
    %v102 = vunpack.c.l.b16 %v63
    %v103 = vunpack.c.l.b16 %v64
    %v104 = vunpack.c.l.b16 %v65
    %v105 = vunpack.c.l.b16 %v66
    %v106 = vunpack.c.l.b16 %v67
    %v107 = vunpack.c.l.b16 %v68
    %v108 = vunpack.c.l.b16 %v69
    %v109 = vunpack.c.l.b16 %v70
    %v110 = vpack.c.b16 %v95, %v94
    %v111 = vpack.c.b16 %v97, %v96
    %v112 = vpack.c.b16 %v99, %v98
    %v113 = vpack.c.b16 %v101, %v100
    %v114 = vpack.c.b16 %v103, %v102
    %v115 = vpack.c.b16 %v105, %v104
    %v116 = vpack.c.b16 %v107, %v106
    %v117 = vpack.c.b16 %v109, %v108
    %126 = vmatprep.subr.bf16.mxu0 0
    %127 = vmatpush1.bf16.msra.mxu0 %v110
    %128 = vmatprep.subr.bf16.mxu0 0
    %129 = vmatpush1.bf16.msra.mxu0 %v111
    %130 = vmatprep.subr.bf16.mxu0 0
    %131 = vmatpush1.bf16.msra.mxu0 %v112
    %132 = vmatprep.subr.bf16.mxu0 0
    %133 = vmatpush1.bf16.msra.mxu0 %v113
    %134 = vmatprep.subr.bf16.mxu0 0
    %135 = vmatpush1.bf16.msra.mxu0 %v114
    %136 = vmatprep.subr.bf16.mxu0 0
    %137 = vmatpush1.bf16.msra.mxu0 %v115
    %138 = vmatprep.subr.bf16.mxu0 0
    %139 = vmatpush1.bf16.msra.mxu0 %v116
    %140 = vmatprep.subr.bf16.mxu0 0
    %141 = vmatpush1.bf16.msra.mxu0 %v117
    %142 = vmatprep.subr.bf16.mxu0 0
    %143 = vmatpush1.bf16.msra.mxu0 0
    %144 = vmatprep.subr.bf16.mxu0 0
    %145 = vmatpush1.bf16.msra.mxu0 0
    %146 = vmatprep.subr.bf16.mxu0 0
    %147 = vmatpush1.bf16.msra.mxu0 0
    %148 = vmatprep.subr.bf16.mxu0 0
    %149 = vmatpush1.bf16.msra.mxu0 0
    %150 = vmatprep.subr.bf16.mxu0 0
    %151 = vmatpush1.bf16.msra.mxu0 0
    %152 = vmatprep.subr.bf16.mxu0 0
    %153 = vmatpush1.bf16.msra.mxu0 0
    %154 = vmatprep.subr.bf16.mxu0 0
    %155 = vmatpush1.bf16.msra.mxu0 0
    %156 = vmatprep.subr.bf16.mxu0 0
    %157 = vmatpush1.bf16.msra.mxu0 0
    %158 = vmatprep.mubr.bf16.mxu0 0
    %159 = vmatmul.mubr.bf16.gmra.mrb[0].mxu0 %v54
    %v160 = vpop.f32.mrb[0].mxu0
    %v161 = vadd.f32 %v76, %v160
    %v162 = vpop.f32.mrb[0].mxu0
    %v163 = vpop.f32.mrb[0].mxu0
    %v164 = vpop.f32.mrb[0].mxu0
    %165 = vdwg.mxu0
    %166 = vst [vmem:[#allocation8] sm:$0xff] %v161
    // Predicated region
    $region26: #{grec_forward.7} parent=1 // pred_check
      _
    $region27: #{grec_forward.7} parent=1 // pred_check_branch
      %168 = sbr.rel (0) target = $region29
    $region28: #{grec_forward.7} parent=1 // pred_region
      %s170 = ssub.s32 128, 128
      %171 = vsyncadd [#allocation4], %s170
      %s173 = sshll.u32 [#allocation8], 4
      %s174 = int_to_ptr.vmem [resolvable:$true] %s173
      %176 = dma.vmem_to_hbm [thread:$0]  %s174, 128, %s3, [#allocation4]
    $region29: #{grec_forward.7} parent=1 // pred_fallthru
      _
    // Predicated region
    $region30: #{grec_forward.7} parent=1 // pred_check
      _
    $region31: #{grec_forward.7} parent=1 // pred_check_branch
      %178 = sbr.rel (0) target = $region33
    $region32: #{grec_forward.7} parent=1 // pred_region
      %179 = dma.done [#allocation4], 128
    $region33: #{grec_forward.7} parent=1 // pred_fallthru
      _
    %180 = vsyncpa [#allocation3], 1
    %181 = vsyncpa [#allocation6], 1
    %182 = vsyncpa [#allocation4], 1

// kernel: grec_forward.4
$region0: #{grec_forward.4}
  #allocation0 [shape = 'u32[]', space=smem, size = 0x4, offset = 0x4, fixed_abs, tag = 'smem constant byte address 0x4 - core index']
  #allocation1 [shape = 'u32[144,128]{1,0:T(1,128)}', space=vmem, size = 0x12000, scoped, tag = 'internal scratch']
  %s0 = inlined_call_operand.hbm [shape: bf16[2,8,128], index: 0, kind: input, shape index: {}]
  %s1 = inlined_call_operand.hbm [shape: bf16[2,3,128,128], index: 1, kind: input, shape index: {}]
  %s2 = inlined_call_operand.hbm [shape: f32[2,1,128], index: 2, kind: input, shape index: {}]
  %s3 = inlined_call_operand.hbm [shape: f32[2,1,128], index: 3, kind: input, shape index: {}]
  %s4 = inlined_call_operand.hbm [shape: f32[2,1,128], index: 4, kind: input, shape index: {}]
  %s5 = inlined_call_operand.hbm [shape: bf16[2,3,128,128], index: 5, kind: input, shape index: {}]
  %s6 = inlined_call_operand.hbm [shape: f32[2,1,128], index: 6, kind: input, shape index: {}]
  %s7 = inlined_call_operand.hbm [shape: f32[2,1,128], index: 7, kind: input, shape index: {}]
  %s8 = inlined_call_operand.hbm [shape: f32[2,1,128], index: 8, kind: input, shape index: {}]
  %s9 = inlined_call_operand.hbm [shape: bf16[2,8,128], index: 9, kind: output, shape index: {}]
  %s10 = sld [smem:[#allocation0]]
  $region105: #{grec_forward.4} parent=0
    _
  %s12 = ssub.s32 1, %s10
  %s13 = scalar_select 0, %s12, %s10
  $region1: #{grec_forward.4} parent=0
    #allocation2 [shape = 'u8[4096]{0}', space=vmem, size = 0x1000, scoped, tag = 'input window, operand 0']
    #allocation3 [shape = 's32[2]{0}', space=sflag, size = 0x8, scoped, tag = 'scoped memory for grec_forward.4']
    #allocation4 [shape = 's32[2]{0}', space=sflag, size = 0x8, scoped, tag = 'scoped memory for grec_forward.4']
    #allocation5 [shape = 'u8[196608]{0}', space=vmem, size = 0x30000, scoped, tag = 'input window, operand 1, single buffered']
    #allocation6 [shape = 's32[1]{0}', space=sflag, size = 0x4, scoped, tag = 'scoped memory for grec_forward.4']
    #allocation7 [shape = 'u8[1024]{0}', space=vmem, size = 0x400, scoped, tag = 'input window, operand 2, single buffered']
    #allocation8 [shape = 'u8[1024]{0}', space=vmem, size = 0x400, scoped, tag = 'input window, operand 3, single buffered']
    #allocation9 [shape = 's32[1]{0}', space=sflag, size = 0x4, scoped, tag = 'scoped memory for grec_forward.4']
    #allocation10 [shape = 'u8[1024]{0}', space=vmem, size = 0x400, scoped, tag = 'input window, operand 4, single buffered']
    #allocation11 [shape = 'u8[196608]{0}', space=vmem, size = 0x30000, scoped, tag = 'input window, operand 5, single buffered']
    #allocation12 [shape = 's32[1]{0}', space=sflag, size = 0x4, scoped, tag = 'scoped memory for grec_forward.4']
    #allocation13 [shape = 'u8[1024]{0}', space=vmem, size = 0x400, scoped, tag = 'input window, operand 6, single buffered']
    #allocation14 [shape = 'u8[1024]{0}', space=vmem, size = 0x400, scoped, tag = 'input window, operand 7, single buffered']
    #allocation15 [shape = 's32[1]{0}', space=sflag, size = 0x4, scoped, tag = 'scoped memory for grec_forward.4']
    #allocation16 [shape = 'u8[1024]{0}', space=vmem, size = 0x400, scoped, tag = 'input window, operand 8, single buffered']
    #allocation17 [shape = 'u8[4096]{0}', space=vmem, size = 0x1000, scoped, tag = 'output window, operand 0']
    %14 = vsyncpa [#allocation3], 0
    %s15 = scalar_lea.sflag [#allocation3], 1
    %16 = vsyncpa %s15, 0
    %17 = vsyncpa [#allocation6], 0
    %18 = vsyncpa [#allocation9], 0
    %19 = vsyncpa [#allocation12], 0
    %20 = vsyncpa [#allocation15], 0
    %21 = vsyncpa [#allocation4], 0
    %s22 = scalar_lea.sflag [#allocation4], 1
    %23 = vsyncpa %s22, 0
    loop: start=0, step=1, limit=4
    $region2: #{grec_forward.4} parent=1 // loop_pre_header
      _
    $region3: #{grec_forward.4} parent=1 // loop_header
      %s25 = sphi 0, %s29
      %p26 = scmp.ge.s32.totalorder %s25, 4
      %s35 = sphi 0, %s37
      %s38 = sphi 0, %s35
      %s39 = sphi 0, %s38
      %s55 = sphi 0, %s39
      %s59 = sphi 0, %s59
      %s61 = sphi 0, %s59
      %s62 = sphi 0, %s61
      %s76 = sphi 0, %s62
      %s80 = sphi 0, %s80
      %s82 = sphi 0, %s80
      %s83 = sphi 0, %s82
      %s97 = sphi 0, %s83
      %s101 = sphi 0, %s101
      %s103 = sphi 0, %s101
      %s104 = sphi 0, %s103
      %s118 = sphi 0, %s104
      %s122 = sphi 0, %s122
      %s124 = sphi 0, %s122
      %s125 = sphi 0, %s124
      %s139 = sphi 0, %s125
      %s143 = sphi 0, %s143
      %s145 = sphi 0, %s143
      %s146 = sphi 0, %s145
      %s160 = sphi 0, %s146
      %s164 = sphi 0, %s164
      %s166 = sphi 0, %s164
      %s167 = sphi 0, %s166
      %s181 = sphi 0, %s167
      %s185 = sphi 0, %s185
      %s187 = sphi 0, %s185
      %s188 = sphi 0, %s187
      %s202 = sphi 0, %s188
      %s206 = sphi 0, %s206
      %s208 = sphi 0, %s206
      %s209 = sphi 0, %s208
      %s223 = sphi 0, %s209
      %s229 = sphi 0, %s231
      %s232 = sphi 0, %s229
      %s233 = sphi 0, %s232
      %s249 = sphi 0, %s233
    $region4: #{grec_forward.4} parent=1 // loop_header_branch
      %28 = sbr.rel (%p26) target = $region8
    $region5: #{grec_forward.4} parent=1 // loop_body
      %s30 = ssub.s32 %s25, 1
      %s31 = ssub.s32 %s25, 2
      %s32 = sadd.s32 %s25, 1
      %s33 = ssub.s32 %s25, %s32
      %p34 = scmp.eq.s32.totalorder %s33, 0
      %s36 = sadd.s32 %s35, 1
      %s37 = scalar_select %p34, %s35, %s36
      %p40 = pneg %p34
      %p41 = scmp.eq.s32.totalorder %s25, 1
      %p42 = por %p40, %p41
      %p43 = scmp.ne.s32.totalorder %s35, %s38
      %p44 = scmp.eq.s32.totalorder %s25, 0
      %p45 = por %p43, %p44
      %p46 = scmp.ne.s32.totalorder %s35, %s38
      %p47 = scmp.eq.s32.totalorder %s30, 1
      %p48 = por %p46, %p47
      %p49 = scmp.ne.s32.totalorder %s38, %s39
      %p50 = scmp.eq.s32.totalorder %s30, 0
      %p51 = por %p49, %p50
      %p52 = scmp.ne.s32.totalorder %s38, %s39
      %p53 = scmp.eq.s32.totalorder %s31, 1
      %p54 = por %p52, %p53
      %p56 = scmp.ne.s32.totalorder %s39, %s55
      %p57 = scmp.eq.s32.totalorder %s31, 0
      %p58 = por %p56, %p57
      %s60 = sadd.s32 %s59, 1
      %p63 = scmp.eq.s32.totalorder %s25, 1
      %p64 = scmp.ne.s32.totalorder %s59, %s61
      %p65 = scmp.eq.s32.totalorder %s25, 0
      %p66 = por %p64, %p65
      %p67 = scmp.ne.s32.totalorder %s59, %s61
      %p68 = scmp.eq.s32.totalorder %s30, 1
      %p69 = por %p67, %p68
      %p70 = scmp.ne.s32.totalorder %s61, %s62
      %p71 = scmp.eq.s32.totalorder %s30, 0
      %p72 = por %p70, %p71
      %p73 = scmp.ne.s32.totalorder %s61, %s62
      %p74 = scmp.eq.s32.totalorder %s31, 1
      %p75 = por %p73, %p74
      %p77 = scmp.ne.s32.totalorder %s62, %s76
      %p78 = scmp.eq.s32.totalorder %s31, 0
      %p79 = por %p77, %p78
      %s81 = sadd.s32 %s80, 1
      %p84 = scmp.eq.s32.totalorder %s25, 1
      %p85 = scmp.ne.s32.totalorder %s80, %s82
      %p86 = scmp.eq.s32.totalorder %s25, 0
      %p87 = por %p85, %p86
      %p88 = scmp.ne.s32.totalorder %s80, %s82
      %p89 = scmp.eq.s32.totalorder %s30, 1
      %p90 = por %p88, %p89
      %p91 = scmp.ne.s32.totalorder %s82, %s83
      %p92 = scmp.eq.s32.totalorder %s30, 0
      %p93 = por %p91, %p92
      %p94 = scmp.ne.s32.totalorder %s82, %s83
      %p95 = scmp.eq.s32.totalorder %s31, 1
      %p96 = por %p94, %p95
      %p98 = scmp.ne.s32.totalorder %s83, %s97
      %p99 = scmp.eq.s32.totalorder %s31, 0
      %p100 = por %p98, %p99
      %s102 = sadd.s32 %s101, 1
      %p105 = scmp.eq.s32.totalorder %s25, 1
      %p106 = scmp.ne.s32.totalorder %s101, %s103
      %p107 = scmp.eq.s32.totalorder %s25, 0
      %p108 = por %p106, %p107
      %p109 = scmp.ne.s32.totalorder %s101, %s103
      %p110 = scmp.eq.s32.totalorder %s30, 1
      %p111 = por %p109, %p110
      %p112 = scmp.ne.s32.totalorder %s103, %s104
      %p113 = scmp.eq.s32.totalorder %s30, 0
      %p114 = por %p112, %p113
      %p115 = scmp.ne.s32.totalorder %s103, %s104
      %p116 = scmp.eq.s32.totalorder %s31, 1
      %p117 = por %p115, %p116
      %p119 = scmp.ne.s32.totalorder %s104, %s118
      %p120 = scmp.eq.s32.totalorder %s31, 0
      %p121 = por %p119, %p120
      %s123 = sadd.s32 %s122, 1
      %p126 = scmp.eq.s32.totalorder %s25, 1
      %p127 = scmp.ne.s32.totalorder %s122, %s124
      %p128 = scmp.eq.s32.totalorder %s25, 0
      %p129 = por %p127, %p128
      %p130 = scmp.ne.s32.totalorder %s122, %s124
      %p131 = scmp.eq.s32.totalorder %s30, 1
      %p132 = por %p130, %p131
      %p133 = scmp.ne.s32.totalorder %s124, %s125
      %p134 = scmp.eq.s32.totalorder %s30, 0
      %p135 = por %p133, %p134
      %p136 = scmp.ne.s32.totalorder %s124, %s125
      %p137 = scmp.eq.s32.totalorder %s31, 1
      %p138 = por %p136, %p137
      %p140 = scmp.ne.s32.totalorder %s125, %s139
      %p141 = scmp.eq.s32.totalorder %s31, 0
      %p142 = por %p140, %p141
      %s144 = sadd.s32 %s143, 1
      %p147 = scmp.eq.s32.totalorder %s25, 1
      %p148 = scmp.ne.s32.totalorder %s143, %s145
      %p149 = scmp.eq.s32.totalorder %s25, 0
      %p150 = por %p148, %p149
      %p151 = scmp.ne.s32.totalorder %s143, %s145
      %p152 = scmp.eq.s32.totalorder %s30, 1
      %p153 = por %p151, %p152
      %p154 = scmp.ne.s32.totalorder %s145, %s146
      %p155 = scmp.eq.s32.totalorder %s30, 0
      %p156 = por %p154, %p155
      %p157 = scmp.ne.s32.totalorder %s145, %s146
      %p158 = scmp.eq.s32.totalorder %s31, 1
      %p159 = por %p157, %p158
      %p161 = scmp.ne.s32.totalorder %s146, %s160
      %p162 = scmp.eq.s32.totalorder %s31, 0
      %p163 = por %p161, %p162
      %s165 = sadd.s32 %s164, 1
      %p168 = scmp.eq.s32.totalorder %s25, 1
      %p169 = scmp.ne.s32.totalorder %s164, %s166
      %p170 = scmp.eq.s32.totalorder %s25, 0
      %p171 = por %p169, %p170
      %p172 = scmp.ne.s32.totalorder %s164, %s166
      %p173 = scmp.eq.s32.totalorder %s30, 1
      %p174 = por %p172, %p173
      %p175 = scmp.ne.s32.totalorder %s166, %s167
      %p176 = scmp.eq.s32.totalorder %s30, 0
      %p177 = por %p175, %p176
      %p178 = scmp.ne.s32.totalorder %s166, %s167
      %p179 = scmp.eq.s32.totalorder %s31, 1
      %p180 = por %p178, %p179
      %p182 = scmp.ne.s32.totalorder %s167, %s181
      %p183 = scmp.eq.s32.totalorder %s31, 0
      %p184 = por %p182, %p183
      %s186 = sadd.s32 %s185, 1
      %p189 = scmp.eq.s32.totalorder %s25, 1
      %p190 = scmp.ne.s32.totalorder %s185, %s187
      %p191 = scmp.eq.s32.totalorder %s25, 0
      %p192 = por %p190, %p191
      %p193 = scmp.ne.s32.totalorder %s185, %s187
      %p194 = scmp.eq.s32.totalorder %s30, 1
      %p195 = por %p193, %p194
      %p196 = scmp.ne.s32.totalorder %s187, %s188
      %p197 = scmp.eq.s32.totalorder %s30, 0
      %p198 = por %p196, %p197
      %p199 = scmp.ne.s32.totalorder %s187, %s188
      %p200 = scmp.eq.s32.totalorder %s31, 1
      %p201 = por %p199, %p200
      %p203 = scmp.ne.s32.totalorder %s188, %s202
      %p204 = scmp.eq.s32.totalorder %s31, 0
      %p205 = por %p203, %p204
      %s207 = sadd.s32 %s206, 1
      %p210 = scmp.eq.s32.totalorder %s25, 1
      %p211 = scmp.ne.s32.totalorder %s206, %s208
      %p212 = scmp.eq.s32.totalorder %s25, 0
      %p213 = por %p211, %p212
      %p214 = scmp.ne.s32.totalorder %s206, %s208
      %p215 = scmp.eq.s32.totalorder %s30, 1
      %p216 = por %p214, %p215
      %p217 = scmp.ne.s32.totalorder %s208, %s209
      %p218 = scmp.eq.s32.totalorder %s30, 0
      %p219 = por %p217, %p218
      %p220 = scmp.ne.s32.totalorder %s208, %s209
      %p221 = scmp.eq.s32.totalorder %s31, 1
      %p222 = por %p220, %p221
      %p224 = scmp.ne.s32.totalorder %s209, %s223
      %p225 = scmp.eq.s32.totalorder %s31, 0
      %p226 = por %p224, %p225
      %s227 = ssub.s32 %s25, %s32
      %p228 = scmp.eq.s32.totalorder %s227, 0
      %s230 = sadd.s32 %s229, 1
      %s231 = scalar_select %p228, %s229, %s230
      %p234 = pneg %p228
      %p235 = scmp.eq.s32.totalorder %s25, 1
      %p236 = por %p234, %p235
      %p237 = scmp.ne.s32.totalorder %s229, %s232
      %p238 = scmp.eq.s32.totalorder %s25, 0
      %p239 = por %p237, %p238
      %p240 = scmp.ne.s32.totalorder %s229, %s232
      %p241 = scmp.eq.s32.totalorder %s30, 1
      %p242 = por %p240, %p241
      %p243 = scmp.ne.s32.totalorder %s232, %s233
      %p244 = scmp.eq.s32.totalorder %s30, 0
      %p245 = por %p243, %p244
      %p246 = scmp.ne.s32.totalorder %s232, %s233
      %p247 = scmp.eq.s32.totalorder %s31, 1
      %p248 = por %p246, %p247
      %p250 = scmp.ne.s32.totalorder %s233, %s249
      %p251 = scmp.eq.s32.totalorder %s31, 0
      %p252 = por %p250, %p251
      %p253 = scmp.le.s32.totalorder 1, %s25
      %p254 = scmp.lt.s32.totalorder %s25, 3
      %p255 = pnand %p253, %p254
      %p256 = pneg %p255
      // Predicated region
      $region9: #{grec_forward.4} parent=5 // pred_check
        _
      $region10: #{grec_forward.4} parent=5 // pred_check_branch
        %258 = sbr.rel (%p255) target = $region12
      $region11: #{grec_forward.4} parent=5 // pred_region
        %s259 = ssub.s32 %s25, 1
        // Predicated region
        $region13: #{grec_forward.4} parent=11 // pred_check
          %p260 = pneg %p72
        $region14: #{grec_forward.4} parent=11 // pred_check_branch
          %262 = sbr.rel (%p260) target = $region16
        $region15: #{grec_forward.4} parent=11 // pred_region
          %s264 = ssub.s32 6144, 6144
          %265 = vsyncadd [#allocation6], %s264
          %s266 = sshll.u32 [#allocation5], 4
          %s267 = int_to_ptr.vmem [resolvable:$true] %s266
          %272 = dma.hbm_to_vmem [thread:$0]  %s1, 6144, %s267, [#allocation6], 64, 64, 4
        $region16: #{grec_forward.4} parent=11 // pred_fallthru
          _
        // Predicated region
        $region17: #{grec_forward.4} parent=11 // pred_check
          %p273 = pneg %p93
        $region18: #{grec_forward.4} parent=11 // pred_check_branch
          %275 = sbr.rel (%p273) target = $region20
        $region19: #{grec_forward.4} parent=11 // pred_region
          %s277 = ssub.s32 32, 32
          %278 = vsyncadd [#allocation6], %s277
          %s279 = sshll.u32 [#allocation7], 4
          %s280 = int_to_ptr.vmem [resolvable:$true] %s279
          %285 = dma.hbm_to_vmem [thread:$0]  %s2, 32, %s280, [#allocation6], 16, 16, 1
        $region20: #{grec_forward.4} parent=11 // pred_fallthru
          _
        // Predicated region
        $region21: #{grec_forward.4} parent=11 // pred_check
          %p286 = pneg %p114
        $region22: #{grec_forward.4} parent=11 // pred_check_branch
          %288 = sbr.rel (%p286) target = $region24
        $region23: #{grec_forward.4} parent=11 // pred_region
          %s290 = ssub.s32 32, 32
          %291 = vsyncadd [#allocation9], %s290
          %s292 = sshll.u32 [#allocation8], 4
          %s293 = int_to_ptr.vmem [resolvable:$true] %s292
          %298 = dma.hbm_to_vmem [thread:$0]  %s3, 32, %s293, [#allocation9], 16, 16, 1
        $region24: #{grec_forward.4} parent=11 // pred_fallthru
          _
        // Predicated region
        $region25: #{grec_forward.4} parent=11 // pred_check
          %p299 = pneg %p135
        $region26: #{grec_forward.4} parent=11 // pred_check_branch
          %301 = sbr.rel (%p299) target = $region28
        $region27: #{grec_forward.4} parent=11 // pred_region
          %s303 = ssub.s32 32, 32
          %304 = vsyncadd [#allocation9], %s303
          %s305 = sshll.u32 [#allocation10], 4
          %s306 = int_to_ptr.vmem [resolvable:$true] %s305
          %311 = dma.hbm_to_vmem [thread:$0]  %s4, 32, %s306, [#allocation9], 16, 16, 1
        $region28: #{grec_forward.4} parent=11 // pred_fallthru
          _
        // Predicated region
        $region29: #{grec_forward.4} parent=11 // pred_check
          %p312 = pneg %p156
        $region30: #{grec_forward.4} parent=11 // pred_check_branch
          %314 = sbr.rel (%p312) target = $region32
        $region31: #{grec_forward.4} parent=11 // pred_region
          %s316 = ssub.s32 6144, 6144
          %317 = vsyncadd [#allocation12], %s316
          %s318 = sshll.u32 [#allocation11], 4
          %s319 = int_to_ptr.vmem [resolvable:$true] %s318
          %324 = dma.hbm_to_vmem [thread:$0]  %s5, 6144, %s319, [#allocation12], 64, 64, 4
        $region32: #{grec_forward.4} parent=11 // pred_fallthru
          _
        // Predicated region
        $region33: #{grec_forward.4} parent=11 // pred_check
          %p325 = pneg %p177
        $region34: #{grec_forward.4} parent=11 // pred_check_branch
          %327 = sbr.rel (%p325) target = $region36
        $region35: #{grec_forward.4} parent=11 // pred_region
          %s329 = ssub.s32 32, 32
          %330 = vsyncadd [#allocation12], %s329
          %s331 = sshll.u32 [#allocation13], 4
          %s332 = int_to_ptr.vmem [resolvable:$true] %s331
          %337 = dma.hbm_to_vmem [thread:$0]  %s6, 32, %s332, [#allocation12], 16, 16, 1
        $region36: #{grec_forward.4} parent=11 // pred_fallthru
          _
        // Predicated region
        $region37: #{grec_forward.4} parent=11 // pred_check
          %p338 = pneg %p198
        $region38: #{grec_forward.4} parent=11 // pred_check_branch
          %340 = sbr.rel (%p338) target = $region40
        $region39: #{grec_forward.4} parent=11 // pred_region
          %s342 = ssub.s32 32, 32
          %343 = vsyncadd [#allocation15], %s342
          %s344 = sshll.u32 [#allocation14], 4
          %s345 = int_to_ptr.vmem [resolvable:$true] %s344
          %350 = dma.hbm_to_vmem [thread:$0]  %s7, 32, %s345, [#allocation15], 16, 16, 1
        $region40: #{grec_forward.4} parent=11 // pred_fallthru
          _
        // Predicated region
        $region41: #{grec_forward.4} parent=11 // pred_check
          %p351 = pneg %p219
        $region42: #{grec_forward.4} parent=11 // pred_check_branch
          %353 = sbr.rel (%p351) target = $region44
        $region43: #{grec_forward.4} parent=11 // pred_region
          %s355 = ssub.s32 32, 32
          %356 = vsyncadd [#allocation15], %s355
          %s357 = sshll.u32 [#allocation16], 4
          %s358 = int_to_ptr.vmem [resolvable:$true] %s357
          %363 = dma.hbm_to_vmem [thread:$0]  %s8, 32, %s358, [#allocation15], 16, 16, 1
        $region44: #{grec_forward.4} parent=11 // pred_fallthru
          _
      $region12: #{grec_forward.4} parent=5 // pred_fallthru
        _
      %p364 = scmp.lt.s32.totalorder %s25, 2
      // Predicated region
      $region45: #{grec_forward.4} parent=5 // pred_check
        %p365 = pneg %p364
      $region46: #{grec_forward.4} parent=5 // pred_check_branch
        %367 = sbr.rel (%p365) target = $region48
      $region47: #{grec_forward.4} parent=5 // pred_region
        // Predicated region
        $region49: #{grec_forward.4} parent=47 // pred_check
          %p368 = pneg %p45
        $region50: #{grec_forward.4} parent=47 // pred_check_branch
          %370 = sbr.rel (%p368) target = $region52
        $region51: #{grec_forward.4} parent=47 // pred_region
          %s371 = sand.u32 %s35, 1
          %s372 = scalar_lea.sflag [#allocation3], %s371
          %s373 = sand.u32 %s35, 1
          %s374 = smul.addr %s373, 4
          %s375 = scalar_lea.vmem [#allocation2], %s374
          %s377 = ssub.s32 64, 64
          %378 = vsyncadd %s372, %s377
          %s379 = smul.addr %s25, 64
          %s380 = scalar_lea.hbm %s0, %s379
          %s382 = sshll.u32 %s375, 4
          %s383 = int_to_ptr.vmem [resolvable:$true] %s382
          %385 = dma.hbm_to_vmem [thread:$0]  %s380, 64, %s383, %s372
        $region52: #{grec_forward.4} parent=47 // pred_fallthru
          _
      $region48: #{grec_forward.4} parent=5 // pred_fallthru
        _
      %p386 = scmp.le.s32.totalorder 1, %s25
      %p387 = scmp.lt.s32.totalorder %s25, 3
      %p388 = pnand %p386, %p387
      %p389 = pneg %p388
      // Predicated region
      $region53: #{grec_forward.4} parent=5 // pred_check
        _
      $region54: #{grec_forward.4} parent=5 // pred_check_branch
        %391 = sbr.rel (%p388) target = $region56
      $region55: #{grec_forward.4} parent=5 // pred_region
        %s392 = ssub.s32 %s25, 1
        %s393 = sand.u32 %s38, 1
        %s394 = scalar_lea.sflag [#allocation3], %s393
        %s395 = sand.u32 %s38, 1
        %s396 = smul.addr %s395, 4
        %s397 = scalar_lea.vmem [#allocation2], %s396
        // Predicated region
        $region57: #{grec_forward.4} parent=55 // pred_check
          %p398 = pneg %p51
        $region58: #{grec_forward.4} parent=55 // pred_check_branch
          %400 = sbr.rel (%p398) target = $region60
        $region59: #{grec_forward.4} parent=55 // pred_region
          %401 = dma.done %s394, 64
        $region60: #{grec_forward.4} parent=55 // pred_fallthru
          _
        // Predicated region
        $region61: #{grec_forward.4} parent=55 // pred_check
          %p402 = pneg %p72
        $region62: #{grec_forward.4} parent=55 // pred_check_branch
          %404 = sbr.rel (%p402) target = $region64
        $region63: #{grec_forward.4} parent=55 // pred_region
          %405 = dma.done [#allocation6], 6144
        $region64: #{grec_forward.4} parent=55 // pred_fallthru
          _
        // Predicated region
        $region65: #{grec_forward.4} parent=55 // pred_check
          %p406 = pneg %p93
        $region66: #{grec_forward.4} parent=55 // pred_check_branch
          %408 = sbr.rel (%p406) target = $region68
        $region67: #{grec_forward.4} parent=55 // pred_region
          %409 = dma.done [#allocation6], 32
        $region68: #{grec_forward.4} parent=55 // pred_fallthru
          _
        // Predicated region
        $region69: #{grec_forward.4} parent=55 // pred_check
          %p410 = pneg %p114
        $region70: #{grec_forward.4} parent=55 // pred_check_branch
          %412 = sbr.rel (%p410) target = $region72
        $region71: #{grec_forward.4} parent=55 // pred_region
          %413 = dma.done [#allocation9], 32
        $region72: #{grec_forward.4} parent=55 // pred_fallthru
          _
        // Predicated region
        $region73: #{grec_forward.4} parent=55 // pred_check
          %p414 = pneg %p135
        $region74: #{grec_forward.4} parent=55 // pred_check_branch
          %416 = sbr.rel (%p414) target = $region76
        $region75: #{grec_forward.4} parent=55 // pred_region
          %417 = dma.done [#allocation9], 32
        $region76: #{grec_forward.4} parent=55 // pred_fallthru
          _
        // Predicated region
        $region77: #{grec_forward.4} parent=55 // pred_check
          %p418 = pneg %p156
        $region78: #{grec_forward.4} parent=55 // pred_check_branch
          %420 = sbr.rel (%p418) target = $region80
        $region79: #{grec_forward.4} parent=55 // pred_region
          %421 = dma.done [#allocation12], 6144
        $region80: #{grec_forward.4} parent=55 // pred_fallthru
          _
        // Predicated region
        $region81: #{grec_forward.4} parent=55 // pred_check
          %p422 = pneg %p177
        $region82: #{grec_forward.4} parent=55 // pred_check_branch
          %424 = sbr.rel (%p422) target = $region84
        $region83: #{grec_forward.4} parent=55 // pred_region
          %425 = dma.done [#allocation12], 32
        $region84: #{grec_forward.4} parent=55 // pred_fallthru
          _
        // Predicated region
        $region85: #{grec_forward.4} parent=55 // pred_check
          %p426 = pneg %p198
        $region86: #{grec_forward.4} parent=55 // pred_check_branch
          %428 = sbr.rel (%p426) target = $region88
        $region87: #{grec_forward.4} parent=55 // pred_region
          %429 = dma.done [#allocation15], 32
        $region88: #{grec_forward.4} parent=55 // pred_fallthru
          _
        // Predicated region
        $region89: #{grec_forward.4} parent=55 // pred_check
          %p430 = pneg %p219
        $region90: #{grec_forward.4} parent=55 // pred_check_branch
          %432 = sbr.rel (%p430) target = $region92
        $region91: #{grec_forward.4} parent=55 // pred_region
          %433 = dma.done [#allocation15], 32
        $region92: #{grec_forward.4} parent=55 // pred_fallthru
          _
        %s434 = sand.u32 %s38, 1
        %s435 = scalar_lea.sflag [#allocation3], %s434
        %s436 = sand.u32 %s38, 1
        %s437 = smul.addr %s436, 4
        %s438 = scalar_lea.vmem [#allocation2], %s437
        %p439 = pneg %p51
        %p440 = pneg %p48
        %p441 = pneg %p72
        %p442 = pneg %p69
        %p443 = pneg %p93
        %p444 = pneg %p90
        %p445 = pneg %p114
        %p446 = pneg %p111
        %p447 = pneg %p135
        %p448 = pneg %p132
        %p449 = pneg %p156
        %p450 = pneg %p153
        %p451 = pneg %p177
        %p452 = pneg %p174
        %p453 = pneg %p198
        %p454 = pneg %p195
        %p455 = pneg %p219
        %p456 = pneg %p216
        %p457 = pneg %p245
        %p458 = pneg %p242
        %s459 = sand.u32 %s232, 1
        %s460 = scalar_lea.sflag [#allocation4], %s459
        %s461 = sand.u32 %s232, 1
        %s462 = smul.addr %s461, 4
        %s463 = scalar_lea.vmem [#allocation17], %s462
        %v465 = vld [vmem:[%s397] sm:$0xf]
        %v466 = vld [vmem:[#allocation5] sm:$0xf]
        %v467 = vld [vmem:[#allocation5 + $0x4] sm:$0xf]
        %v468 = vld [vmem:[#allocation5 + $0x8] sm:$0xf]
        %v469 = vld [vmem:[#allocation5 + $0xc] sm:$0xf]
        %v470 = vld [vmem:[#allocation5 + $0x10] sm:$0xf]
        %v471 = vld [vmem:[#allocation5 + $0x14] sm:$0xf]
        %v472 = vld [vmem:[#allocation5 + $0x18] sm:$0xf]
        %v473 = vld [vmem:[#allocation5 + $0x1c] sm:$0xf]
        %v474 = vld [vmem:[#allocation5 + $0x20] sm:$0xf]
        %v475 = vld [vmem:[#allocation5 + $0x24] sm:$0xf]
        %v476 = vld [vmem:[#allocation5 + $0x28] sm:$0xf]
        %v477 = vld [vmem:[#allocation5 + $0x2c] sm:$0xf]
        %v478 = vld [vmem:[#allocation5 + $0x30] sm:$0xf]
        %v479 = vld [vmem:[#allocation5 + $0x34] sm:$0xf]
        %v480 = vld [vmem:[#allocation5 + $0x38] sm:$0xf]
        %v481 = vld [vmem:[#allocation5 + $0x3c] sm:$0xf]
        %v482 = vld [vmem:[#allocation5 + $0x40] sm:$0xf]
        %v483 = vld [vmem:[#allocation5 + $0x44] sm:$0xf]
        %v484 = vld [vmem:[#allocation5 + $0x48] sm:$0xf]
        %v485 = vld [vmem:[#allocation5 + $0x4c] sm:$0xf]
        %v486 = vld [vmem:[#allocation5 + $0x50] sm:$0xf]
        %v487 = vld [vmem:[#allocation5 + $0x54] sm:$0xf]
        %v488 = vld [vmem:[#allocation5 + $0x58] sm:$0xf]
        %v489 = vld [vmem:[#allocation5 + $0x5c] sm:$0xf]
        %v490 = vld [vmem:[#allocation5 + $0x60] sm:$0xf]
        %v491 = vld [vmem:[#allocation5 + $0x64] sm:$0xf]
        %v492 = vld [vmem:[#allocation5 + $0x68] sm:$0xf]
        %v493 = vld [vmem:[#allocation5 + $0x6c] sm:$0xf]
        %v494 = vld [vmem:[#allocation5 + $0x70] sm:$0xf]
        %v495 = vld [vmem:[#allocation5 + $0x74] sm:$0xf]
        %v496 = vld [vmem:[#allocation5 + $0x78] sm:$0xf]
        %v497 = vld [vmem:[#allocation5 + $0x7c] sm:$0xf]
        %v498 = vld [vmem:[#allocation5 + $0x80] sm:$0xf]
        %v499 = vld [vmem:[#allocation5 + $0x84] sm:$0xf]
        %v500 = vld [vmem:[#allocation5 + $0x88] sm:$0xf]
        %v501 = vld [vmem:[#allocation5 + $0x8c] sm:$0xf]
        %v502 = vld [vmem:[#allocation5 + $0x90] sm:$0xf]
        %v503 = vld [vmem:[#allocation5 + $0x94] sm:$0xf]
        %v504 = vld [vmem:[#allocation5 + $0x98] sm:$0xf]
        %v505 = vld [vmem:[#allocation5 + $0x9c] sm:$0xf]
        %v506 = vld [vmem:[#allocation5 + $0xa0] sm:$0xf]
        %v507 = vld [vmem:[#allocation5 + $0xa4] sm:$0xf]
        %v508 = vld [vmem:[#allocation5 + $0xa8] sm:$0xf]
        %v509 = vld [vmem:[#allocation5 + $0xac] sm:$0xf]
        %v510 = vld [vmem:[#allocation5 + $0xb0] sm:$0xf]
        %v511 = vld [vmem:[#allocation5 + $0xb4] sm:$0xf]
        %v512 = vld [vmem:[#allocation5 + $0xb8] sm:$0xf]
        %v513 = vld [vmem:[#allocation5 + $0xbc] sm:$0xf]
        %v514 = vld [vmem:[#allocation7] sm:$0x1]
        %v516 = vunpack.c.l.b16 %v465
        %v517 = vpack.c.b16 %v516, %v516
        %v519 = vshrl.u32 %v517, 16
        %v521 = vrot.slane %v519, 7
        %v522 = vshll.u32 %v517, 16
        %v524 = vor.u32 %v521, %v522
        %vm526 = vcmask 1040384
        %vm527 = vsmask.f32 256
        %vm528 = vmand %vm526, %vm527
        %v529 = vsel %vm528, 0, %v524
        %vm530 = vcmask 1044480
        %vm531 = vsmask.f32 4352
        %vm532 = vmand %vm530, %vm531
        %v533 = vsel %vm532, %v529, 0
        %v535 = vshrl.u32 %v533, 16
        %v537 = vshll.u32 %v533, 16
        %v539 = vrot.slane %v537, 1
        %v540 = vor.u32 %v535, %v539
        %v543 = vrot.slane %v533, 1
        %v546 = vlaneseq
        %v547 = vshrl.u32 %v546, 7
        %v548 = vsub.s32 0, %v547
        %v549 = vrot.slane %v514, %v548
        %v599 = vunpack.c.l.b16 %v466
        %v600 = vunpack.c.l.b16 %v467
        %v601 = vunpack.c.l.b16 %v468
        %v602 = vunpack.c.l.b16 %v469
        %v603 = vunpack.c.l.b16 %v470
        %v604 = vunpack.c.l.b16 %v471
        %v605 = vunpack.c.l.b16 %v472
        %v606 = vunpack.c.l.b16 %v473
        %v607 = vunpack.c.l.b16 %v474
        %v608 = vunpack.c.l.b16 %v475
        %v609 = vunpack.c.l.b16 %v476
        %v610 = vunpack.c.l.b16 %v477
        %v611 = vunpack.c.l.b16 %v478
        %v612 = vunpack.c.l.b16 %v479
        %v613 = vunpack.c.l.b16 %v480
        %v614 = vunpack.c.l.b16 %v481
        %v615 = vunpack.c.l.b16 %v482
        %v616 = vunpack.c.l.b16 %v483
        %v617 = vunpack.c.l.b16 %v484
        %v618 = vunpack.c.l.b16 %v485
        %v619 = vunpack.c.l.b16 %v486
        %v620 = vunpack.c.l.b16 %v487
        %v621 = vunpack.c.l.b16 %v488
        %v622 = vunpack.c.l.b16 %v489
        %v623 = vunpack.c.l.b16 %v490
        %v624 = vunpack.c.l.b16 %v491
        %v625 = vunpack.c.l.b16 %v492
        %v626 = vunpack.c.l.b16 %v493
        %v627 = vunpack.c.l.b16 %v494
        %v628 = vunpack.c.l.b16 %v495
        %v629 = vunpack.c.l.b16 %v496
        %v630 = vunpack.c.l.b16 %v497
        %v631 = vunpack.c.l.b16 %v498
        %v632 = vunpack.c.l.b16 %v499
        %v633 = vunpack.c.l.b16 %v500
        %v634 = vunpack.c.l.b16 %v501
        %v635 = vunpack.c.l.b16 %v502
        %v636 = vunpack.c.l.b16 %v503
        %v637 = vunpack.c.l.b16 %v504
        %v638 = vunpack.c.l.b16 %v505
        %v639 = vunpack.c.l.b16 %v506
        %v640 = vunpack.c.l.b16 %v507
        %v641 = vunpack.c.l.b16 %v508
        %v642 = vunpack.c.l.b16 %v509
        %v643 = vunpack.c.l.b16 %v510
        %v644 = vunpack.c.l.b16 %v511
        %v645 = vunpack.c.l.b16 %v512
        %v646 = vunpack.c.l.b16 %v513
        %v647 = vpack.c.b16 %v600, %v599
        %v648 = vpack.c.b16 %v602, %v601
        %v649 = vpack.c.b16 %v604, %v603
        %v650 = vpack.c.b16 %v606, %v605
        %v651 = vpack.c.b16 %v608, %v607
        %v652 = vpack.c.b16 %v610, %v609
        %v653 = vpack.c.b16 %v612, %v611
        %v654 = vpack.c.b16 %v614, %v613
        %v655 = vpack.c.b16 %v616, %v615
        %v656 = vpack.c.b16 %v618, %v617
        %v657 = vpack.c.b16 %v620, %v619
        %v658 = vpack.c.b16 %v622, %v621
        %v659 = vpack.c.b16 %v624, %v623
        %v660 = vpack.c.b16 %v626, %v625
        %v661 = vpack.c.b16 %v628, %v627
        %v662 = vpack.c.b16 %v630, %v629
        %v663 = vpack.c.b16 %v632, %v631
        %v664 = vpack.c.b16 %v634, %v633
        %v665 = vpack.c.b16 %v636, %v635
        %v666 = vpack.c.b16 %v638, %v637
        %v667 = vpack.c.b16 %v640, %v639
        %v668 = vpack.c.b16 %v642, %v641
        %v669 = vpack.c.b16 %v644, %v643
        %v670 = vpack.c.b16 %v646, %v645
        %695 = vmatprep.subr.bf16.mxu0 0
        %696 = vmatpush1.bf16.msra.mxu0 %v647
        %697 = vmatprep.subr.bf16.mxu0 0
        %698 = vmatpush1.bf16.msra.mxu0 %v648
        %699 = vmatprep.subr.bf16.mxu0 0
        %700 = vmatpush1.bf16.msra.mxu0 %v649
        %701 = vmatprep.subr.bf16.mxu0 0
        %702 = vmatpush1.bf16.msra.mxu0 %v650
        %703 = vmatprep.subr.bf16.mxu0 0
        %704 = vmatpush1.bf16.msra.mxu0 %v651
        %705 = vmatprep.subr.bf16.mxu0 0
        %706 = vmatpush1.bf16.msra.mxu0 %v652
        %707 = vmatprep.subr.bf16.mxu0 0
        %708 = vmatpush1.bf16.msra.mxu0 %v653
        %709 = vmatprep.subr.bf16.mxu0 0
        %710 = vmatpush1.bf16.msra.mxu0 %v654
        %711 = vmatprep.subr.bf16.mxu0 0
        %712 = vmatpush1.bf16.msra.mxu0 %v655
        %713 = vmatprep.subr.bf16.mxu0 0
        %714 = vmatpush1.bf16.msra.mxu0 %v656
        %715 = vmatprep.subr.bf16.mxu0 0
        %716 = vmatpush1.bf16.msra.mxu0 %v657
        %717 = vmatprep.subr.bf16.mxu0 0
        %718 = vmatpush1.bf16.msra.mxu0 %v658
        %719 = vmatprep.subr.bf16.mxu0 0
        %720 = vmatpush1.bf16.msra.mxu0 %v659
        %721 = vmatprep.subr.bf16.mxu0 0
        %722 = vmatpush1.bf16.msra.mxu0 %v660
        %723 = vmatprep.subr.bf16.mxu0 0
        %724 = vmatpush1.bf16.msra.mxu0 %v661
        %725 = vmatprep.subr.bf16.mxu0 0
        %726 = vmatpush1.bf16.msra.mxu0 %v662
        %727 = vmatprep.mubr.bf16.mxu0 %v540
        %728 = vmatmul.mubr.bf16.gmra.mrb[0].mxu0 %v533
        %v729 = vpop.f32.mrb[0].mxu0
        %v730 = vadd.f32 %v549, %v729
        %v731 = vpop.f32.mrb[0].mxu0
        %v732 = vpop.f32.mrb[0].mxu0
        %v733 = vpop.f32.mrb[0].mxu0
        %734 = vdwg.mxu0
        %735 = vmatprep.subr.bf16.mxu0 0
        %736 = vmatpush1.bf16.msra.mxu0 %v663
        %737 = vmatprep.subr.bf16.mxu0 0
        %738 = vmatpush1.bf16.msra.mxu0 %v664
        %739 = vmatprep.subr.bf16.mxu0 0
        %740 = vmatpush1.bf16.msra.mxu0 %v665
        %741 = vmatprep.subr.bf16.mxu0 0
        %742 = vmatpush1.bf16.msra.mxu0 %v666
        %743 = vmatprep.subr.bf16.mxu0 0
        %744 = vmatpush1.bf16.msra.mxu0 %v667
        %745 = vmatprep.subr.bf16.mxu0 0
        %746 = vmatpush1.bf16.msra.mxu0 %v668
        %747 = vmatprep.subr.bf16.mxu0 0
        %748 = vmatpush1.bf16.msra.mxu0 %v669
        %749 = vmatprep.subr.bf16.mxu0 0
        %750 = vmatpush1.bf16.msra.mxu0 %v670
        %751 = vmatprep.subr.bf16.mxu0 0
        %752 = vmatpush1.bf16.msra.mxu0 0
        %753 = vmatprep.subr.bf16.mxu0 0
        %754 = vmatpush1.bf16.msra.mxu0 0
        %755 = vmatprep.subr.bf16.mxu0 0
        %756 = vmatpush1.bf16.msra.mxu0 0
        %757 = vmatprep.subr.bf16.mxu0 0
        %758 = vmatpush1.bf16.msra.mxu0 0
        %759 = vmatprep.subr.bf16.mxu0 0
        %760 = vmatpush1.bf16.msra.mxu0 0
        %761 = vmatprep.subr.bf16.mxu0 0
        %762 = vmatpush1.bf16.msra.mxu0 0
        %763 = vmatprep.subr.bf16.mxu0 0
        %764 = vmatpush1.bf16.msra.mxu0 0
        %765 = vmatprep.subr.bf16.mxu0 0
        %766 = vmatpush1.bf16.msra.mxu0 0
        %767 = vmatprep.mubr.bf16.mxu0 0
        %768 = vmatmul.mubr.bf16.gmra.mrb[0].mxu0 %v543
        %v769 = vpop.f32.mrb[0].mxu0
        %v770 = vadd.f32 %v730, %v769
        %v771 = vpop.f32.mrb[0].mxu0
        %v772 = vpop.f32.mrb[0].mxu0
        %v773 = vpop.f32.mrb[0].mxu0
        %774 = vdwg.mxu0
        %v775 = vld [vmem:[#allocation8] sm:$0x1]
        %v776 = vld [vmem:[#allocation10] sm:$0x1]
        %777 = vadd.xlane.f32.xlu0 %v770
        %v778 = vpop.xlane.xlu0 %777
        %v779 = vmul.f32 %v778, 0.03125
        %v780 = vmul.f32 %v770, %v770
        %781 = vadd.xlane.f32.xlu0 %v780
        %v782 = vpop.xlane.xlu0 %781
        %v783 = vmul.f32 %v782, 0.03125
        %v784 = vmul.f32 %v779, %v779
        %v785 = vsub.f32 %v783, %v784
        %v786 = vmax.f32 %v785, 0.0
        %v787 = vsub.f32 %v770, %v779
        %v788 = vadd.f32 %v786, 1e-08
        %v789 = vrsqrt.pop %v788
        %v790 = vmul.f32 %v787, %v789
        %v792 = vlaneseq
        %v793 = vshrl.u32 %v792, 7
        %v794 = vsub.s32 0, %v793
        %v795 = vrot.slane %v775, %v794
        %v797 = vmul.f32 %v790, %v795
        %v799 = vlaneseq
        %v800 = vshrl.u32 %v799, 7
        %v801 = vsub.s32 0, %v800
        %v802 = vrot.slane %v776, %v801
        %v804 = vadd.f32 %v797, %v802
        %v805 = vmax.f32 %v804, 0.0
        %v806 = vpack.c.bf16 %v805, %v805
        %v807 = vld [vmem:[#allocation11] sm:$0xf]
        %v808 = vld [vmem:[#allocation11 + $0x4] sm:$0xf]
        %v809 = vld [vmem:[#allocation11 + $0x8] sm:$0xf]
        %v810 = vld [vmem:[#allocation11 + $0xc] sm:$0xf]
        %v811 = vld [vmem:[#allocation11 + $0x10] sm:$0xf]
        %v812 = vld [vmem:[#allocation11 + $0x14] sm:$0xf]
        %v813 = vld [vmem:[#allocation11 + $0x18] sm:$0xf]
        %v814 = vld [vmem:[#allocation11 + $0x1c] sm:$0xf]
        %v815 = vld [vmem:[#allocation11 + $0x20] sm:$0xf]
        %v816 = vld [vmem:[#allocation11 + $0x24] sm:$0xf]
        %v817 = vld [vmem:[#allocation11 + $0x28] sm:$0xf]
        %v818 = vld [vmem:[#allocation11 + $0x2c] sm:$0xf]
        %v819 = vld [vmem:[#allocation11 + $0x30] sm:$0xf]
        %v820 = vld [vmem:[#allocation11 + $0x34] sm:$0xf]
        %v821 = vld [vmem:[#allocation11 + $0x38] sm:$0xf]
        %v822 = vld [vmem:[#allocation11 + $0x3c] sm:$0xf]
        %v823 = vld [vmem:[#allocation11 + $0x40] sm:$0xf]
        %v824 = vld [vmem:[#allocation11 + $0x44] sm:$0xf]
        %v825 = vld [vmem:[#allocation11 + $0x48] sm:$0xf]
        %v826 = vld [vmem:[#allocation11 + $0x4c] sm:$0xf]
        %v827 = vld [vmem:[#allocation11 + $0x50] sm:$0xf]
        %v828 = vld [vmem:[#allocation11 + $0x54] sm:$0xf]
        %v829 = vld [vmem:[#allocation11 + $0x58] sm:$0xf]
        %v830 = vld [vmem:[#allocation11 + $0x5c] sm:$0xf]
        %v831 = vld [vmem:[#allocation11 + $0x60] sm:$0xf]
        %v832 = vld [vmem:[#allocation11 + $0x64] sm:$0xf]
        %v833 = vld [vmem:[#allocation11 + $0x68] sm:$0xf]
        %v834 = vld [vmem:[#allocation11 + $0x6c] sm:$0xf]
        %v835 = vld [vmem:[#allocation11 + $0x70] sm:$0xf]
        %v836 = vld [vmem:[#allocation11 + $0x74] sm:$0xf]
        %v837 = vld [vmem:[#allocation11 + $0x78] sm:$0xf]
        %v838 = vld [vmem:[#allocation11 + $0x7c] sm:$0xf]
        %v839 = vld [vmem:[#allocation11 + $0x80] sm:$0xf]
        %v840 = vld [vmem:[#allocation11 + $0x84] sm:$0xf]
        %v841 = vld [vmem:[#allocation11 + $0x88] sm:$0xf]
        %v842 = vld [vmem:[#allocation11 + $0x8c] sm:$0xf]
        %v843 = vld [vmem:[#allocation11 + $0x90] sm:$0xf]
        %v844 = vld [vmem:[#allocation11 + $0x94] sm:$0xf]
        %v845 = vld [vmem:[#allocation11 + $0x98] sm:$0xf]
        %v846 = vld [vmem:[#allocation11 + $0x9c] sm:$0xf]
        %v847 = vld [vmem:[#allocation11 + $0xa0] sm:$0xf]
        %v848 = vld [vmem:[#allocation11 + $0xa4] sm:$0xf]
        %v849 = vld [vmem:[#allocation11 + $0xa8] sm:$0xf]
        %v850 = vld [vmem:[#allocation11 + $0xac] sm:$0xf]
        %v851 = vld [vmem:[#allocation11 + $0xb0] sm:$0xf]
        %v852 = vld [vmem:[#allocation11 + $0xb4] sm:$0xf]
        %v853 = vld [vmem:[#allocation11 + $0xb8] sm:$0xf]
        %v854 = vld [vmem:[#allocation11 + $0xbc] sm:$0xf]
        %v855 = vld [vmem:[#allocation13] sm:$0x1]
        %v857 = vrot.slane %v806, 7
        %vm858 = vcmask 1040384
        %v861 = vsel %vm858, 0, %v857
        %vm862 = vcmask 1044480
        %v863 = vsel %vm862, %v861, 0
        %v866 = vrot.slane %v863, 1
        %v868 = vrot.slane %v863, 2
        %v871 = vlaneseq
        %v872 = vshrl.u32 %v871, 7
        %v873 = vsub.s32 0, %v872
        %v874 = vrot.slane %v855, %v873
        %v924 = vunpack.c.l.b16 %v807
        %v925 = vunpack.c.l.b16 %v808
        %v926 = vunpack.c.l.b16 %v809
        %v927 = vunpack.c.l.b16 %v810
        %v928 = vunpack.c.l.b16 %v811
        %v929 = vunpack.c.l.b16 %v812
        %v930 = vunpack.c.l.b16 %v813
        %v931 = vunpack.c.l.b16 %v814
        %v932 = vunpack.c.l.b16 %v815
        %v933 = vunpack.c.l.b16 %v816
        %v934 = vunpack.c.l.b16 %v817
        %v935 = vunpack.c.l.b16 %v818
        %v936 = vunpack.c.l.b16 %v819
        %v937 = vunpack.c.l.b16 %v820
        %v938 = vunpack.c.l.b16 %v821
        %v939 = vunpack.c.l.b16 %v822
        %v940 = vunpack.c.l.b16 %v823
        %v941 = vunpack.c.l.b16 %v824
        %v942 = vunpack.c.l.b16 %v825
        %v943 = vunpack.c.l.b16 %v826
        %v944 = vunpack.c.l.b16 %v827
        %v945 = vunpack.c.l.b16 %v828
        %v946 = vunpack.c.l.b16 %v829
        %v947 = vunpack.c.l.b16 %v830
        %v948 = vunpack.c.l.b16 %v831
        %v949 = vunpack.c.l.b16 %v832
        %v950 = vunpack.c.l.b16 %v833
        %v951 = vunpack.c.l.b16 %v834
        %v952 = vunpack.c.l.b16 %v835
        %v953 = vunpack.c.l.b16 %v836
        %v954 = vunpack.c.l.b16 %v837
        %v955 = vunpack.c.l.b16 %v838
        %v956 = vunpack.c.l.b16 %v839
        %v957 = vunpack.c.l.b16 %v840
        %v958 = vunpack.c.l.b16 %v841
        %v959 = vunpack.c.l.b16 %v842
        %v960 = vunpack.c.l.b16 %v843
        %v961 = vunpack.c.l.b16 %v844
        %v962 = vunpack.c.l.b16 %v845
        %v963 = vunpack.c.l.b16 %v846
        %v964 = vunpack.c.l.b16 %v847
        %v965 = vunpack.c.l.b16 %v848
        %v966 = vunpack.c.l.b16 %v849
        %v967 = vunpack.c.l.b16 %v850
        %v968 = vunpack.c.l.b16 %v851
        %v969 = vunpack.c.l.b16 %v852
        %v970 = vunpack.c.l.b16 %v853
        %v971 = vunpack.c.l.b16 %v854
        %v972 = vpack.c.b16 %v925, %v924
        %v973 = vpack.c.b16 %v927, %v926
        %v974 = vpack.c.b16 %v929, %v928
        %v975 = vpack.c.b16 %v931, %v930
        %v976 = vpack.c.b16 %v933, %v932
        %v977 = vpack.c.b16 %v935, %v934
        %v978 = vpack.c.b16 %v937, %v936
        %v979 = vpack.c.b16 %v939, %v938
        %v980 = vpack.c.b16 %v941, %v940
        %v981 = vpack.c.b16 %v943, %v942
        %v982 = vpack.c.b16 %v945, %v944
        %v983 = vpack.c.b16 %v947, %v946
        %v984 = vpack.c.b16 %v949, %v948
        %v985 = vpack.c.b16 %v951, %v950
        %v986 = vpack.c.b16 %v953, %v952
        %v987 = vpack.c.b16 %v955, %v954
        %v988 = vpack.c.b16 %v957, %v956
        %v989 = vpack.c.b16 %v959, %v958
        %v990 = vpack.c.b16 %v961, %v960
        %v991 = vpack.c.b16 %v963, %v962
        %v992 = vpack.c.b16 %v965, %v964
        %v993 = vpack.c.b16 %v967, %v966
        %v994 = vpack.c.b16 %v969, %v968
        %v995 = vpack.c.b16 %v971, %v970
        %1020 = vmatprep.subr.bf16.mxu0 0
        %1021 = vmatpush1.bf16.msra.mxu0 %v972
        %1022 = vmatprep.subr.bf16.mxu0 0
        %1023 = vmatpush1.bf16.msra.mxu0 %v973
        %1024 = vmatprep.subr.bf16.mxu0 0
        %1025 = vmatpush1.bf16.msra.mxu0 %v974
        %1026 = vmatprep.subr.bf16.mxu0 0
        %1027 = vmatpush1.bf16.msra.mxu0 %v975
        %1028 = vmatprep.subr.bf16.mxu0 0
        %1029 = vmatpush1.bf16.msra.mxu0 %v976
        %1030 = vmatprep.subr.bf16.mxu0 0
        %1031 = vmatpush1.bf16.msra.mxu0 %v977
        %1032 = vmatprep.subr.bf16.mxu0 0
        %1033 = vmatpush1.bf16.msra.mxu0 %v978
        %1034 = vmatprep.subr.bf16.mxu0 0
        %1035 = vmatpush1.bf16.msra.mxu0 %v979
        %1036 = vmatprep.subr.bf16.mxu0 0
        %1037 = vmatpush1.bf16.msra.mxu0 %v980
        %1038 = vmatprep.subr.bf16.mxu0 0
        %1039 = vmatpush1.bf16.msra.mxu0 %v981
        %1040 = vmatprep.subr.bf16.mxu0 0
        %1041 = vmatpush1.bf16.msra.mxu0 %v982
        %1042 = vmatprep.subr.bf16.mxu0 0
        %1043 = vmatpush1.bf16.msra.mxu0 %v983
        %1044 = vmatprep.subr.bf16.mxu0 0
        %1045 = vmatpush1.bf16.msra.mxu0 %v984
        %1046 = vmatprep.subr.bf16.mxu0 0
        %1047 = vmatpush1.bf16.msra.mxu0 %v985
        %1048 = vmatprep.subr.bf16.mxu0 0
        %1049 = vmatpush1.bf16.msra.mxu0 %v986
        %1050 = vmatprep.subr.bf16.mxu0 0
        %1051 = vmatpush1.bf16.msra.mxu0 %v987
        %1052 = vmatprep.mubr.bf16.mxu0 %v866
        %1053 = vmatmul.mubr.bf16.gmra.mrb[0].mxu0 %v863
        %v1054 = vpop.f32.mrb[0].mxu0
        %v1055 = vadd.f32 %v874, %v1054
        %v1056 = vpop.f32.mrb[0].mxu0
        %v1057 = vpop.f32.mrb[0].mxu0
        %v1058 = vpop.f32.mrb[0].mxu0
        %1059 = vdwg.mxu0
        %1060 = vmatprep.subr.bf16.mxu0 0
        %1061 = vmatpush1.bf16.msra.mxu0 %v988
        %1062 = vmatprep.subr.bf16.mxu0 0
        %1063 = vmatpush1.bf16.msra.mxu0 %v989
        %1064 = vmatprep.subr.bf16.mxu0 0
        %1065 = vmatpush1.bf16.msra.mxu0 %v990
        %1066 = vmatprep.subr.bf16.mxu0 0
        %1067 = vmatpush1.bf16.msra.mxu0 %v991
        %1068 = vmatprep.subr.bf16.mxu0 0
        %1069 = vmatpush1.bf16.msra.mxu0 %v992
        %1070 = vmatprep.subr.bf16.mxu0 0
        %1071 = vmatpush1.bf16.msra.mxu0 %v993
        %1072 = vmatprep.subr.bf16.mxu0 0
        %1073 = vmatpush1.bf16.msra.mxu0 %v994
        %1074 = vmatprep.subr.bf16.mxu0 0
        %1075 = vmatpush1.bf16.msra.mxu0 %v995
        %1076 = vmatprep.subr.bf16.mxu0 0
        %1077 = vmatpush1.bf16.msra.mxu0 0
        %1078 = vmatprep.subr.bf16.mxu0 0
        %1079 = vmatpush1.bf16.msra.mxu0 0
        %1080 = vmatprep.subr.bf16.mxu0 0
        %1081 = vmatpush1.bf16.msra.mxu0 0
        %1082 = vmatprep.subr.bf16.mxu0 0
        %1083 = vmatpush1.bf16.msra.mxu0 0
        %1084 = vmatprep.subr.bf16.mxu0 0
        %1085 = vmatpush1.bf16.msra.mxu0 0
        %1086 = vmatprep.subr.bf16.mxu0 0
        %1087 = vmatpush1.bf16.msra.mxu0 0
        %1088 = vmatprep.subr.bf16.mxu0 0
        %1089 = vmatpush1.bf16.msra.mxu0 0
        %1090 = vmatprep.subr.bf16.mxu0 0
        %1091 = vmatpush1.bf16.msra.mxu0 0
        %1092 = vmatprep.mubr.bf16.mxu0 0
        %1093 = vmatmul.mubr.bf16.gmra.mrb[0].mxu0 %v868
        %v1094 = vpop.f32.mrb[0].mxu0
        %v1095 = vadd.f32 %v1055, %v1094
        %v1096 = vpop.f32.mrb[0].mxu0
        %v1097 = vpop.f32.mrb[0].mxu0
        %v1098 = vpop.f32.mrb[0].mxu0
        %1099 = vdwg.mxu0
        %v1100 = vld [vmem:[#allocation14] sm:$0x1]
        %v1101 = vld [vmem:[#allocation16] sm:$0x1]
        %1102 = vadd.xlane.f32.xlu0 %v1095
        %v1103 = vpop.xlane.xlu0 %1102
        %v1104 = vmul.f32 %v1103, 0.03125
        %v1105 = vmul.f32 %v1095, %v1095
        %1106 = vadd.xlane.f32.xlu0 %v1105
        %v1107 = vpop.xlane.xlu0 %1106
        %v1108 = vmul.f32 %v1107, 0.03125
        %v1109 = vmul.f32 %v1104, %v1104
        %v1110 = vsub.f32 %v1108, %v1109
        %v1111 = vmax.f32 %v1110, 0.0
        %v1112 = vsub.f32 %v1095, %v1104
        %v1113 = vadd.f32 %v1111, 1e-08
        %v1114 = vrsqrt.pop %v1113
        %v1115 = vmul.f32 %v1112, %v1114
        %v1117 = vlaneseq
        %v1118 = vshrl.u32 %v1117, 7
        %v1119 = vsub.s32 0, %v1118
        %v1120 = vrot.slane %v1100, %v1119
        %v1122 = vmul.f32 %v1115, %v1120
        %v1124 = vlaneseq
        %v1125 = vshrl.u32 %v1124, 7
        %v1126 = vsub.s32 0, %v1125
        %v1127 = vrot.slane %v1101, %v1126
        %v1129 = vadd.f32 %v1122, %v1127
        %v1130 = vmax.f32 %v1129, 0.0
        %v1131 = vunpack.c.l.bf16 %v465
        %v1132 = vadd.f32 %v1130, %v1131
        %v1133 = vpack.c.bf16 %v1132, %v1132
        %s1134 = scalar_lea.vmem [#allocation5], 192
        %v1135 = vld [vmem:[%s1134] sm:$0xf]
        %v1136 = vld [vmem:[%s1134 + $0x4] sm:$0xf]
        %v1137 = vld [vmem:[%s1134 + $0x8] sm:$0xf]
        %v1138 = vld [vmem:[%s1134 + $0xc] sm:$0xf]
        %v1139 = vld [vmem:[%s1134 + $0x10] sm:$0xf]
        %v1140 = vld [vmem:[%s1134 + $0x14] sm:$0xf]
        %v1141 = vld [vmem:[%s1134 + $0x18] sm:$0xf]
        %v1142 = vld [vmem:[%s1134 + $0x1c] sm:$0xf]
        %v1143 = vld [vmem:[%s1134 + $0x20] sm:$0xf]
        %v1144 = vld [vmem:[%s1134 + $0x24] sm:$0xf]
        %v1145 = vld [vmem:[%s1134 + $0x28] sm:$0xf]
        %v1146 = vld [vmem:[%s1134 + $0x2c] sm:$0xf]
        %v1147 = vld [vmem:[%s1134 + $0x30] sm:$0xf]
        %v1148 = vld [vmem:[%s1134 + $0x34] sm:$0xf]
        %v1149 = vld [vmem:[%s1134 + $0x38] sm:$0xf]
        %v1150 = vld [vmem:[%s1134 + $0x3c] sm:$0xf]
        %v1151 = vld [vmem:[%s1134 + $0x40] sm:$0xf]
        %v1152 = vld [vmem:[%s1134 + $0x44] sm:$0xf]
        %v1153 = vld [vmem:[%s1134 + $0x48] sm:$0xf]
        %v1154 = vld [vmem:[%s1134 + $0x4c] sm:$0xf]
        %v1155 = vld [vmem:[%s1134 + $0x50] sm:$0xf]
        %v1156 = vld [vmem:[%s1134 + $0x54] sm:$0xf]
        %v1157 = vld [vmem:[%s1134 + $0x58] sm:$0xf]
        %v1158 = vld [vmem:[%s1134 + $0x5c] sm:$0xf]
        %v1159 = vld [vmem:[%s1134 + $0x60] sm:$0xf]
        %v1160 = vld [vmem:[%s1134 + $0x64] sm:$0xf]
        %v1161 = vld [vmem:[%s1134 + $0x68] sm:$0xf]
        %v1162 = vld [vmem:[%s1134 + $0x6c] sm:$0xf]
        %v1163 = vld [vmem:[%s1134 + $0x70] sm:$0xf]
        %v1164 = vld [vmem:[%s1134 + $0x74] sm:$0xf]
        %v1165 = vld [vmem:[%s1134 + $0x78] sm:$0xf]
        %v1166 = vld [vmem:[%s1134 + $0x7c] sm:$0xf]
        %v1167 = vld [vmem:[%s1134 + $0x80] sm:$0xf]
        %v1168 = vld [vmem:[%s1134 + $0x84] sm:$0xf]
        %v1169 = vld [vmem:[%s1134 + $0x88] sm:$0xf]
        %v1170 = vld [vmem:[%s1134 + $0x8c] sm:$0xf]
        %v1171 = vld [vmem:[%s1134 + $0x90] sm:$0xf]
        %v1172 = vld [vmem:[%s1134 + $0x94] sm:$0xf]
        %v1173 = vld [vmem:[%s1134 + $0x98] sm:$0xf]
        %v1174 = vld [vmem:[%s1134 + $0x9c] sm:$0xf]
        %v1175 = vld [vmem:[%s1134 + $0xa0] sm:$0xf]
        %v1176 = vld [vmem:[%s1134 + $0xa4] sm:$0xf]
        %v1177 = vld [vmem:[%s1134 + $0xa8] sm:$0xf]
        %v1178 = vld [vmem:[%s1134 + $0xac] sm:$0xf]
        %v1179 = vld [vmem:[%s1134 + $0xb0] sm:$0xf]
        %v1180 = vld [vmem:[%s1134 + $0xb4] sm:$0xf]
        %v1181 = vld [vmem:[%s1134 + $0xb8] sm:$0xf]
        %v1182 = vld [vmem:[%s1134 + $0xbc] sm:$0xf]
        %s1183 = scalar_lea.vmem [#allocation7], 1
        %v1184 = vld [vmem:[%s1183] sm:$0x1]
        %v1186 = vrot.slane %v1133, 7
        %v1188 = vsel %vm858, 0, %v1186
        %v1189 = vsel %vm862, %v1188, 0
        %v1192 = vrot.slane %v1189, 1
        %v1194 = vrot.slane %v1189, 2
        %v1197 = vlaneseq
        %v1198 = vshrl.u32 %v1197, 7
        %v1199 = vsub.s32 0, %v1198
        %v1200 = vrot.slane %v1184, %v1199
        %v1250 = vunpack.c.l.b16 %v1135
        %v1251 = vunpack.c.l.b16 %v1136
        %v1252 = vunpack.c.l.b16 %v1137
        %v1253 = vunpack.c.l.b16 %v1138
        %v1254 = vunpack.c.l.b16 %v1139
        %v1255 = vunpack.c.l.b16 %v1140
        %v1256 = vunpack.c.l.b16 %v1141
        %v1257 = vunpack.c.l.b16 %v1142
        %v1258 = vunpack.c.l.b16 %v1143
        %v1259 = vunpack.c.l.b16 %v1144
        %v1260 = vunpack.c.l.b16 %v1145
        %v1261 = vunpack.c.l.b16 %v1146
        %v1262 = vunpack.c.l.b16 %v1147
        %v1263 = vunpack.c.l.b16 %v1148
        %v1264 = vunpack.c.l.b16 %v1149
        %v1265 = vunpack.c.l.b16 %v1150
        %v1266 = vunpack.c.l.b16 %v1151
        %v1267 = vunpack.c.l.b16 %v1152
        %v1268 = vunpack.c.l.b16 %v1153
        %v1269 = vunpack.c.l.b16 %v1154
        %v1270 = vunpack.c.l.b16 %v1155
        %v1271 = vunpack.c.l.b16 %v1156
        %v1272 = vunpack.c.l.b16 %v1157
        %v1273 = vunpack.c.l.b16 %v1158
        %v1274 = vunpack.c.l.b16 %v1159
        %v1275 = vunpack.c.l.b16 %v1160
        %v1276 = vunpack.c.l.b16 %v1161
        %v1277 = vunpack.c.l.b16 %v1162
        %v1278 = vunpack.c.l.b16 %v1163
        %v1279 = vunpack.c.l.b16 %v1164
        %v1280 = vunpack.c.l.b16 %v1165
        %v1281 = vunpack.c.l.b16 %v1166
        %v1282 = vunpack.c.l.b16 %v1167
        %v1283 = vunpack.c.l.b16 %v1168
        %v1284 = vunpack.c.l.b16 %v1169
        %v1285 = vunpack.c.l.b16 %v1170
        %v1286 = vunpack.c.l.b16 %v1171
        %v1287 = vunpack.c.l.b16 %v1172
        %v1288 = vunpack.c.l.b16 %v1173
        %v1289 = vunpack.c.l.b16 %v1174
        %v1290 = vunpack.c.l.b16 %v1175
        %v1291 = vunpack.c.l.b16 %v1176
        %v1292 = vunpack.c.l.b16 %v1177
        %v1293 = vunpack.c.l.b16 %v1178
        %v1294 = vunpack.c.l.b16 %v1179
        %v1295 = vunpack.c.l.b16 %v1180
        %v1296 = vunpack.c.l.b16 %v1181
        %v1297 = vunpack.c.l.b16 %v1182
        %v1298 = vpack.c.b16 %v1251, %v1250
        %v1299 = vpack.c.b16 %v1253, %v1252
        %v1300 = vpack.c.b16 %v1255, %v1254
        %v1301 = vpack.c.b16 %v1257, %v1256
        %v1302 = vpack.c.b16 %v1259, %v1258
        %v1303 = vpack.c.b16 %v1261, %v1260
        %v1304 = vpack.c.b16 %v1263, %v1262
        %v1305 = vpack.c.b16 %v1265, %v1264
        %v1306 = vpack.c.b16 %v1267, %v1266
        %v1307 = vpack.c.b16 %v1269, %v1268
        %v1308 = vpack.c.b16 %v1271, %v1270
        %v1309 = vpack.c.b16 %v1273, %v1272
        %v1310 = vpack.c.b16 %v1275, %v1274
        %v1311 = vpack.c.b16 %v1277, %v1276
        %v1312 = vpack.c.b16 %v1279, %v1278
        %v1313 = vpack.c.b16 %v1281, %v1280
        %v1314 = vpack.c.b16 %v1283, %v1282
        %v1315 = vpack.c.b16 %v1285, %v1284
        %v1316 = vpack.c.b16 %v1287, %v1286
        %v1317 = vpack.c.b16 %v1289, %v1288
        %v1318 = vpack.c.b16 %v1291, %v1290
        %v1319 = vpack.c.b16 %v1293, %v1292
        %v1320 = vpack.c.b16 %v1295, %v1294
        %v1321 = vpack.c.b16 %v1297, %v1296
        %1346 = vmatprep.subr.bf16.mxu0 0
        %1347 = vmatpush1.bf16.msra.mxu0 %v1298
        %1348 = vmatprep.subr.bf16.mxu0 0
        %1349 = vmatpush1.bf16.msra.mxu0 %v1299
        %1350 = vmatprep.subr.bf16.mxu0 0
        %1351 = vmatpush1.bf16.msra.mxu0 %v1300
        %1352 = vmatprep.subr.bf16.mxu0 0
        %1353 = vmatpush1.bf16.msra.mxu0 %v1301
        %1354 = vmatprep.subr.bf16.mxu0 0
        %1355 = vmatpush1.bf16.msra.mxu0 %v1302
        %1356 = vmatprep.subr.bf16.mxu0 0
        %1357 = vmatpush1.bf16.msra.mxu0 %v1303
        %1358 = vmatprep.subr.bf16.mxu0 0
        %1359 = vmatpush1.bf16.msra.mxu0 %v1304
        %1360 = vmatprep.subr.bf16.mxu0 0
        %1361 = vmatpush1.bf16.msra.mxu0 %v1305
        %1362 = vmatprep.subr.bf16.mxu0 0
        %1363 = vmatpush1.bf16.msra.mxu0 %v1306
        %1364 = vmatprep.subr.bf16.mxu0 0
        %1365 = vmatpush1.bf16.msra.mxu0 %v1307
        %1366 = vmatprep.subr.bf16.mxu0 0
        %1367 = vmatpush1.bf16.msra.mxu0 %v1308
        %1368 = vmatprep.subr.bf16.mxu0 0
        %1369 = vmatpush1.bf16.msra.mxu0 %v1309
        %1370 = vmatprep.subr.bf16.mxu0 0
        %1371 = vmatpush1.bf16.msra.mxu0 %v1310
        %1372 = vmatprep.subr.bf16.mxu0 0
        %1373 = vmatpush1.bf16.msra.mxu0 %v1311
        %1374 = vmatprep.subr.bf16.mxu0 0
        %1375 = vmatpush1.bf16.msra.mxu0 %v1312
        %1376 = vmatprep.subr.bf16.mxu0 0
        %1377 = vmatpush1.bf16.msra.mxu0 %v1313
        %1378 = vmatprep.mubr.bf16.mxu0 %v1192
        %1379 = vmatmul.mubr.bf16.gmra.mrb[0].mxu0 %v1189
        %v1380 = vpop.f32.mrb[0].mxu0
        %v1381 = vadd.f32 %v1200, %v1380
        %v1382 = vpop.f32.mrb[0].mxu0
        %v1383 = vpop.f32.mrb[0].mxu0
        %v1384 = vpop.f32.mrb[0].mxu0
        %1385 = vdwg.mxu0
        %1386 = vmatprep.subr.bf16.mxu0 0
        %1387 = vmatpush1.bf16.msra.mxu0 %v1314
        %1388 = vmatprep.subr.bf16.mxu0 0
        %1389 = vmatpush1.bf16.msra.mxu0 %v1315
        %1390 = vmatprep.subr.bf16.mxu0 0
        %1391 = vmatpush1.bf16.msra.mxu0 %v1316
        %1392 = vmatprep.subr.bf16.mxu0 0
        %1393 = vmatpush1.bf16.msra.mxu0 %v1317
        %1394 = vmatprep.subr.bf16.mxu0 0
        %1395 = vmatpush1.bf16.msra.mxu0 %v1318
        %1396 = vmatprep.subr.bf16.mxu0 0
        %1397 = vmatpush1.bf16.msra.mxu0 %v1319
        %1398 = vmatprep.subr.bf16.mxu0 0
        %1399 = vmatpush1.bf16.msra.mxu0 %v1320
        %1400 = vmatprep.subr.bf16.mxu0 0
        %1401 = vmatpush1.bf16.msra.mxu0 %v1321
        %1402 = vmatprep.subr.bf16.mxu0 0
        %1403 = vmatpush1.bf16.msra.mxu0 0
        %1404 = vmatprep.subr.bf16.mxu0 0
        %1405 = vmatpush1.bf16.msra.mxu0 0
        %1406 = vmatprep.subr.bf16.mxu0 0
        %1407 = vmatpush1.bf16.msra.mxu0 0
        %1408 = vmatprep.subr.bf16.mxu0 0
        %1409 = vmatpush1.bf16.msra.mxu0 0
        %1410 = vmatprep.subr.bf16.mxu0 0
        %1411 = vmatpush1.bf16.msra.mxu0 0
        %1412 = vmatprep.subr.bf16.mxu0 0
        %1413 = vmatpush1.bf16.msra.mxu0 0
        %1414 = vmatprep.subr.bf16.mxu0 0
        %1415 = vmatpush1.bf16.msra.mxu0 0
        %1416 = vmatprep.subr.bf16.mxu0 0
        %1417 = vmatpush1.bf16.msra.mxu0 0
        %1418 = vmatprep.mubr.bf16.mxu0 0
        %1419 = vmatmul.mubr.bf16.gmra.mrb[0].mxu0 %v1194
        %v1420 = vpop.f32.mrb[0].mxu0
        %v1421 = vadd.f32 %v1381, %v1420
        %v1422 = vpop.f32.mrb[0].mxu0
        %v1423 = vpop.f32.mrb[0].mxu0
        %v1424 = vpop.f32.mrb[0].mxu0
        %1425 = vdwg.mxu0
        %s1426 = scalar_lea.vmem [#allocation8], 1
        %v1427 = vld [vmem:[%s1426] sm:$0x1]
        %s1428 = scalar_lea.vmem [#allocation10], 1
        %v1429 = vld [vmem:[%s1428] sm:$0x1]
        %1430 = vadd.xlane.f32.xlu0 %v1421
        %v1431 = vpop.xlane.xlu0 %1430
        %v1432 = vmul.f32 %v1431, 0.03125
        %v1433 = vmul.f32 %v1421, %v1421
        %1434 = vadd.xlane.f32.xlu0 %v1433
        %v1435 = vpop.xlane.xlu0 %1434
        %v1436 = vmul.f32 %v1435, 0.03125
        %v1437 = vmul.f32 %v1432, %v1432
        %v1438 = vsub.f32 %v1436, %v1437
        %v1439 = vmax.f32 %v1438, 0.0
        %v1440 = vsub.f32 %v1421, %v1432
        %v1441 = vadd.f32 %v1439, 1e-08
        %v1442 = vrsqrt.pop %v1441
        %v1443 = vmul.f32 %v1440, %v1442
        %v1445 = vlaneseq
        %v1446 = vshrl.u32 %v1445, 7
        %v1447 = vsub.s32 0, %v1446
        %v1448 = vrot.slane %v1427, %v1447
        %v1450 = vmul.f32 %v1443, %v1448
        %v1452 = vlaneseq
        %v1453 = vshrl.u32 %v1452, 7
        %v1454 = vsub.s32 0, %v1453
        %v1455 = vrot.slane %v1429, %v1454
        %v1457 = vadd.f32 %v1450, %v1455
        %v1458 = vmax.f32 %v1457, 0.0
        %v1459 = vpack.c.bf16 %v1458, %v1458
        %s1460 = scalar_lea.vmem [#allocation11], 192
        %v1461 = vld [vmem:[%s1460] sm:$0xf]
        %v1462 = vld [vmem:[%s1460 + $0x4] sm:$0xf]
        %v1463 = vld [vmem:[%s1460 + $0x8] sm:$0xf]
        %v1464 = vld [vmem:[%s1460 + $0xc] sm:$0xf]
        %v1465 = vld [vmem:[%s1460 + $0x10] sm:$0xf]
        %v1466 = vld [vmem:[%s1460 + $0x14] sm:$0xf]
        %v1467 = vld [vmem:[%s1460 + $0x18] sm:$0xf]
        %v1468 = vld [vmem:[%s1460 + $0x1c] sm:$0xf]
        %v1469 = vld [vmem:[%s1460 + $0x20] sm:$0xf]
        %v1470 = vld [vmem:[%s1460 + $0x24] sm:$0xf]
        %v1471 = vld [vmem:[%s1460 + $0x28] sm:$0xf]
        %v1472 = vld [vmem:[%s1460 + $0x2c] sm:$0xf]
        %v1473 = vld [vmem:[%s1460 + $0x30] sm:$0xf]
        %v1474 = vld [vmem:[%s1460 + $0x34] sm:$0xf]
        %v1475 = vld [vmem:[%s1460 + $0x38] sm:$0xf]
        %v1476 = vld [vmem:[%s1460 + $0x3c] sm:$0xf]
        %v1477 = vld [vmem:[%s1460 + $0x40] sm:$0xf]
        %v1478 = vld [vmem:[%s1460 + $0x44] sm:$0xf]
        %v1479 = vld [vmem:[%s1460 + $0x48] sm:$0xf]
        %v1480 = vld [vmem:[%s1460 + $0x4c] sm:$0xf]
        %v1481 = vld [vmem:[%s1460 + $0x50] sm:$0xf]
        %v1482 = vld [vmem:[%s1460 + $0x54] sm:$0xf]
        %v1483 = vld [vmem:[%s1460 + $0x58] sm:$0xf]
        %v1484 = vld [vmem:[%s1460 + $0x5c] sm:$0xf]
        %v1485 = vld [vmem:[%s1460 + $0x60] sm:$0xf]
        %v1486 = vld [vmem:[%s1460 + $0x64] sm:$0xf]
        %v1487 = vld [vmem:[%s1460 + $0x68] sm:$0xf]
        %v1488 = vld [vmem:[%s1460 + $0x6c] sm:$0xf]
        %v1489 = vld [vmem:[%s1460 + $0x70] sm:$0xf]
        %v1490 = vld [vmem:[%s1460 + $0x74] sm:$0xf]
        %v1491 = vld [vmem:[%s1460 + $0x78] sm:$0xf]
        %v1492 = vld [vmem:[%s1460 + $0x7c] sm:$0xf]
        %v1493 = vld [vmem:[%s1460 + $0x80] sm:$0xf]
        %v1494 = vld [vmem:[%s1460 + $0x84] sm:$0xf]
        %v1495 = vld [vmem:[%s1460 + $0x88] sm:$0xf]
        %v1496 = vld [vmem:[%s1460 + $0x8c] sm:$0xf]
        %v1497 = vld [vmem:[%s1460 + $0x90] sm:$0xf]
        %v1498 = vld [vmem:[%s1460 + $0x94] sm:$0xf]
        %v1499 = vld [vmem:[%s1460 + $0x98] sm:$0xf]
        %v1500 = vld [vmem:[%s1460 + $0x9c] sm:$0xf]
        %v1501 = vld [vmem:[%s1460 + $0xa0] sm:$0xf]
        %v1502 = vld [vmem:[%s1460 + $0xa4] sm:$0xf]
        %v1503 = vld [vmem:[%s1460 + $0xa8] sm:$0xf]
        %v1504 = vld [vmem:[%s1460 + $0xac] sm:$0xf]
        %v1505 = vld [vmem:[%s1460 + $0xb0] sm:$0xf]
        %v1506 = vld [vmem:[%s1460 + $0xb4] sm:$0xf]
        %v1507 = vld [vmem:[%s1460 + $0xb8] sm:$0xf]
        %v1508 = vld [vmem:[%s1460 + $0xbc] sm:$0xf]
        %s1509 = scalar_lea.vmem [#allocation13], 1
        %v1510 = vld [vmem:[%s1509] sm:$0x1]
        %v1512 = vrot.slane %v1459, 6
        %vm1513 = vcmask 1041408
        %v1515 = vsel %vm1513, 0, %v1512
        %vm1516 = vcmask 1045504
        %v1517 = vsel %vm1516, %v1515, 0
        %v1520 = vrot.slane %v1517, 2
        %v1522 = vrot.slane %v1517, 4
        %v1525 = vlaneseq
        %v1526 = vshrl.u32 %v1525, 7
        %v1527 = vsub.s32 0, %v1526
        %v1528 = vrot.slane %v1510, %v1527
        %v1578 = vunpack.c.l.b16 %v1461
        %v1579 = vunpack.c.l.b16 %v1462
        %v1580 = vunpack.c.l.b16 %v1463
        %v1581 = vunpack.c.l.b16 %v1464
        %v1582 = vunpack.c.l.b16 %v1465
        %v1583 = vunpack.c.l.b16 %v1466
        %v1584 = vunpack.c.l.b16 %v1467
        %v1585 = vunpack.c.l.b16 %v1468
        %v1586 = vunpack.c.l.b16 %v1469
        %v1587 = vunpack.c.l.b16 %v1470
        %v1588 = vunpack.c.l.b16 %v1471
        %v1589 = vunpack.c.l.b16 %v1472
        %v1590 = vunpack.c.l.b16 %v1473
        %v1591 = vunpack.c.l.b16 %v1474
        %v1592 = vunpack.c.l.b16 %v1475
        %v1593 = vunpack.c.l.b16 %v1476
        %v1594 = vunpack.c.l.b16 %v1477
        %v1595 = vunpack.c.l.b16 %v1478
        %v1596 = vunpack.c.l.b16 %v1479
        %v1597 = vunpack.c.l.b16 %v1480
        %v1598 = vunpack.c.l.b16 %v1481
        %v1599 = vunpack.c.l.b16 %v1482
        %v1600 = vunpack.c.l.b16 %v1483
        %v1601 = vunpack.c.l.b16 %v1484
        %v1602 = vunpack.c.l.b16 %v1485
        %v1603 = vunpack.c.l.b16 %v1486
        %v1604 = vunpack.c.l.b16 %v1487
        %v1605 = vunpack.c.l.b16 %v1488
        %v1606 = vunpack.c.l.b16 %v1489
        %v1607 = vunpack.c.l.b16 %v1490
        %v1608 = vunpack.c.l.b16 %v1491
        %v1609 = vunpack.c.l.b16 %v1492
        %v1610 = vunpack.c.l.b16 %v1493
        %v1611 = vunpack.c.l.b16 %v1494
        %v1612 = vunpack.c.l.b16 %v1495
        %v1613 = vunpack.c.l.b16 %v1496
        %v1614 = vunpack.c.l.b16 %v1497
        %v1615 = vunpack.c.l.b16 %v1498
        %v1616 = vunpack.c.l.b16 %v1499
        %v1617 = vunpack.c.l.b16 %v1500
        %v1618 = vunpack.c.l.b16 %v1501
        %v1619 = vunpack.c.l.b16 %v1502
        %v1620 = vunpack.c.l.b16 %v1503
        %v1621 = vunpack.c.l.b16 %v1504
        %v1622 = vunpack.c.l.b16 %v1505
        %v1623 = vunpack.c.l.b16 %v1506
        %v1624 = vunpack.c.l.b16 %v1507
        %v1625 = vunpack.c.l.b16 %v1508
        %v1626 = vpack.c.b16 %v1579, %v1578
        %v1627 = vpack.c.b16 %v1581, %v1580
        %v1628 = vpack.c.b16 %v1583, %v1582
        %v1629 = vpack.c.b16 %v1585, %v1584
        %v1630 = vpack.c.b16 %v1587, %v1586
        %v1631 = vpack.c.b16 %v1589, %v1588
        %v1632 = vpack.c.b16 %v1591, %v1590
        %v1633 = vpack.c.b16 %v1593, %v1592
        %v1634 = vpack.c.b16 %v1595, %v1594
        %v1635 = vpack.c.b16 %v1597, %v1596
        %v1636 = vpack.c.b16 %v1599, %v1598
        %v1637 = vpack.c.b16 %v1601, %v1600
        %v1638 = vpack.c.b16 %v1603, %v1602
        %v1639 = vpack.c.b16 %v1605, %v1604
        %v1640 = vpack.c.b16 %v1607, %v1606
        %v1641 = vpack.c.b16 %v1609, %v1608
        %v1642 = vpack.c.b16 %v1611, %v1610
        %v1643 = vpack.c.b16 %v1613, %v1612
        %v1644 = vpack.c.b16 %v1615, %v1614
        %v1645 = vpack.c.b16 %v1617, %v1616
        %v1646 = vpack.c.b16 %v1619, %v1618
        %v1647 = vpack.c.b16 %v1621, %v1620
        %v1648 = vpack.c.b16 %v1623, %v1622
        %v1649 = vpack.c.b16 %v1625, %v1624
        %1674 = vmatprep.subr.bf16.mxu0 0
        %1675 = vmatpush1.bf16.msra.mxu0 %v1626
        %1676 = vmatprep.subr.bf16.mxu0 0
        %1677 = vmatpush1.bf16.msra.mxu0 %v1627
        %1678 = vmatprep.subr.bf16.mxu0 0
        %1679 = vmatpush1.bf16.msra.mxu0 %v1628
        %1680 = vmatprep.subr.bf16.mxu0 0
        %1681 = vmatpush1.bf16.msra.mxu0 %v1629
        %1682 = vmatprep.subr.bf16.mxu0 0
        %1683 = vmatpush1.bf16.msra.mxu0 %v1630
        %1684 = vmatprep.subr.bf16.mxu0 0
        %1685 = vmatpush1.bf16.msra.mxu0 %v1631
        %1686 = vmatprep.subr.bf16.mxu0 0
        %1687 = vmatpush1.bf16.msra.mxu0 %v1632
        %1688 = vmatprep.subr.bf16.mxu0 0
        %1689 = vmatpush1.bf16.msra.mxu0 %v1633
        %1690 = vmatprep.subr.bf16.mxu0 0
        %1691 = vmatpush1.bf16.msra.mxu0 %v1634
        %1692 = vmatprep.subr.bf16.mxu0 0
        %1693 = vmatpush1.bf16.msra.mxu0 %v1635
        %1694 = vmatprep.subr.bf16.mxu0 0
        %1695 = vmatpush1.bf16.msra.mxu0 %v1636
        %1696 = vmatprep.subr.bf16.mxu0 0
        %1697 = vmatpush1.bf16.msra.mxu0 %v1637
        %1698 = vmatprep.subr.bf16.mxu0 0
        %1699 = vmatpush1.bf16.msra.mxu0 %v1638
        %1700 = vmatprep.subr.bf16.mxu0 0
        %1701 = vmatpush1.bf16.msra.mxu0 %v1639
        %1702 = vmatprep.subr.bf16.mxu0 0
        %1703 = vmatpush1.bf16.msra.mxu0 %v1640
        %1704 = vmatprep.subr.bf16.mxu0 0
        %1705 = vmatpush1.bf16.msra.mxu0 %v1641
        %1706 = vmatprep.mubr.bf16.mxu0 %v1520
        %1707 = vmatmul.mubr.bf16.gmra.mrb[0].mxu0 %v1517
        %v1708 = vpop.f32.mrb[0].mxu0
        %v1709 = vadd.f32 %v1528, %v1708
        %v1710 = vpop.f32.mrb[0].mxu0
        %v1711 = vpop.f32.mrb[0].mxu0
        %v1712 = vpop.f32.mrb[0].mxu0
        %1713 = vdwg.mxu0
        %1714 = vmatprep.subr.bf16.mxu0 0
        %1715 = vmatpush1.bf16.msra.mxu0 %v1642
        %1716 = vmatprep.subr.bf16.mxu0 0
        %1717 = vmatpush1.bf16.msra.mxu0 %v1643
        %1718 = vmatprep.subr.bf16.mxu0 0
        %1719 = vmatpush1.bf16.msra.mxu0 %v1644
        %1720 = vmatprep.subr.bf16.mxu0 0
        %1721 = vmatpush1.bf16.msra.mxu0 %v1645
        %1722 = vmatprep.subr.bf16.mxu0 0
        %1723 = vmatpush1.bf16.msra.mxu0 %v1646
        %1724 = vmatprep.subr.bf16.mxu0 0
        %1725 = vmatpush1.bf16.msra.mxu0 %v1647
        %1726 = vmatprep.subr.bf16.mxu0 0
        %1727 = vmatpush1.bf16.msra.mxu0 %v1648
        %1728 = vmatprep.subr.bf16.mxu0 0
        %1729 = vmatpush1.bf16.msra.mxu0 %v1649
        %1730 = vmatprep.subr.bf16.mxu0 0
        %1731 = vmatpush1.bf16.msra.mxu0 0
        %1732 = vmatprep.subr.bf16.mxu0 0
        %1733 = vmatpush1.bf16.msra.mxu0 0
        %1734 = vmatprep.subr.bf16.mxu0 0
        %1735 = vmatpush1.bf16.msra.mxu0 0
        %1736 = vmatprep.subr.bf16.mxu0 0
        %1737 = vmatpush1.bf16.msra.mxu0 0
        %1738 = vmatprep.subr.bf16.mxu0 0
        %1739 = vmatpush1.bf16.msra.mxu0 0
        %1740 = vmatprep.subr.bf16.mxu0 0
        %1741 = vmatpush1.bf16.msra.mxu0 0
        %1742 = vmatprep.subr.bf16.mxu0 0
        %1743 = vmatpush1.bf16.msra.mxu0 0
        %1744 = vmatprep.subr.bf16.mxu0 0
        %1745 = vmatpush1.bf16.msra.mxu0 0
        %1746 = vmatprep.mubr.bf16.mxu0 0
        %1747 = vmatmul.mubr.bf16.gmra.mrb[0].mxu0 %v1522
        %v1748 = vpop.f32.mrb[0].mxu0
        %v1749 = vadd.f32 %v1709, %v1748
        %v1750 = vpop.f32.mrb[0].mxu0
        %v1751 = vpop.f32.mrb[0].mxu0
        %v1752 = vpop.f32.mrb[0].mxu0
        %1753 = vdwg.mxu0
        %s1754 = scalar_lea.vmem [#allocation14], 1
        %v1755 = vld [vmem:[%s1754] sm:$0x1]
        %s1756 = scalar_lea.vmem [#allocation16], 1
        %v1757 = vld [vmem:[%s1756] sm:$0x1]
        %1758 = vadd.xlane.f32.xlu0 %v1749
        %v1759 = vpop.xlane.xlu0 %1758
        %v1760 = vmul.f32 %v1759, 0.03125
        %v1761 = vmul.f32 %v1749, %v1749
        %1762 = vadd.xlane.f32.xlu0 %v1761
        %v1763 = vpop.xlane.xlu0 %1762
        %v1764 = vmul.f32 %v1763, 0.03125
        %v1765 = vmul.f32 %v1760, %v1760
        %v1766 = vsub.f32 %v1764, %v1765
        %v1767 = vmax.f32 %v1766, 0.0
        %v1768 = vsub.f32 %v1749, %v1760
        %v1769 = vadd.f32 %v1767, 1e-08
        %v1770 = vrsqrt.pop %v1769
        %v1771 = vmul.f32 %v1768, %v1770
        %v1773 = vlaneseq
        %v1774 = vshrl.u32 %v1773, 7
        %v1775 = vsub.s32 0, %v1774
        %v1776 = vrot.slane %v1755, %v1775
        %v1778 = vmul.f32 %v1771, %v1776
        %v1780 = vlaneseq
        %v1781 = vshrl.u32 %v1780, 7
        %v1782 = vsub.s32 0, %v1781
        %v1783 = vrot.slane %v1757, %v1782
        %v1785 = vadd.f32 %v1778, %v1783
        %v1786 = vmax.f32 %v1785, 0.0
        %v1787 = vunpack.c.l.bf16 %v1133
        %v1788 = vadd.f32 %v1786, %v1787
        %v1789 = vpack.c.bf16 %v1788, %v1788
        %1790 = vst [vmem:[%s463] sm:$0xf] %v1789
        %s1791 = sand.u32 %s232, 1
        %s1792 = scalar_lea.sflag [#allocation4], %s1791
        %s1793 = sand.u32 %s232, 1
        %s1794 = smul.addr %s1793, 4
        %s1795 = scalar_lea.vmem [#allocation17], %s1794
        // Predicated region
        $region93: #{grec_forward.4} parent=55 // pred_check
          %p1796 = pneg %p242
        $region94: #{grec_forward.4} parent=55 // pred_check_branch
          %1798 = sbr.rel (%p1796) target = $region96
        $region95: #{grec_forward.4} parent=55 // pred_region
          %s1800 = ssub.s32 64, 64
          %1801 = vsyncadd %s1792, %s1800
          %s1802 = smul.addr %s30, 64
          %s1803 = scalar_lea.hbm %s9, %s1802
          %s1805 = sshll.u32 %s1795, 4
          %s1806 = int_to_ptr.vmem [resolvable:$true] %s1805
          %1808 = dma.vmem_to_hbm [thread:$0]  %s1806, 64, %s1803, %s1792
        $region96: #{grec_forward.4} parent=55 // pred_fallthru
          _
      $region56: #{grec_forward.4} parent=5 // pred_fallthru
        _
      %p1809 = scmp.le.s32.totalorder 2, %s25
      // Predicated region
      $region97: #{grec_forward.4} parent=5 // pred_check
        %p1810 = pneg %p1809
      $region98: #{grec_forward.4} parent=5 // pred_check_branch
        %1812 = sbr.rel (%p1810) target = $region100
      $region99: #{grec_forward.4} parent=5 // pred_region
        %s1813 = ssub.s32 %s25, 2
        // Predicated region
        $region101: #{grec_forward.4} parent=99 // pred_check
          %p1814 = pneg %p248
        $region102: #{grec_forward.4} parent=99 // pred_check_branch
          %1816 = sbr.rel (%p1814) target = $region104
        $region103: #{grec_forward.4} parent=99 // pred_region
          %s1817 = sand.u32 %s233, 1
          %s1818 = scalar_lea.sflag [#allocation4], %s1817
          %s1819 = sand.u32 %s233, 1
          %s1820 = smul.addr %s1819, 4
          %s1821 = scalar_lea.vmem [#allocation17], %s1820
          %1822 = dma.done %s1818, 64
        $region104: #{grec_forward.4} parent=99 // pred_fallthru
          _
      $region100: #{grec_forward.4} parent=5 // pred_fallthru
        _
    $region6: #{grec_forward.4} parent=1 // loop_footer
      %s29 = sadd.s32 1, %s25
    $region7: #{grec_forward.4} parent=1 // loop_footer_branch
      %24 = sbr.rel target = $region3
    $region8: #{grec_forward.4} parent=1 // loop_exit
      _
    %1823 = vsyncpa [#allocation3], 1
    %s1824 = scalar_lea.sflag [#allocation3], 1
    %1825 = vsyncpa %s1824, 1
    %1826 = vsyncpa [#allocation6], 1
    %1827 = vsyncpa [#allocation9], 1
    %1828 = vsyncpa [#allocation12], 1
    %1829 = vsyncpa [#allocation15], 1
    %1830 = vsyncpa [#allocation4], 1
    %s1831 = scalar_lea.sflag [#allocation4], 1
    %1832 = vsyncpa %s1831, 1

// kernel: grec_forward.6
$region0: #{grec_forward.6}
  #allocation0 [shape = 'u32[]', space=smem, size = 0x4, offset = 0x4, fixed_abs, tag = 'smem constant byte address 0x4 - core index']
  #allocation1 [shape = 'u32[144,128]{1,0:T(1,128)}', space=vmem, size = 0x12000, scoped, tag = 'internal scratch']
  %s0 = inlined_call_operand.hbm [shape: bf16[2,8,128], index: 0, kind: input, shape index: {}]
  %s1 = inlined_call_operand.hbm [shape: bf16[2,3,128,128], index: 1, kind: input, shape index: {}]
  %s2 = inlined_call_operand.hbm [shape: f32[2,1,128], index: 2, kind: input, shape index: {}]
  %s3 = inlined_call_operand.hbm [shape: f32[2,1,128], index: 3, kind: input, shape index: {}]
  %s4 = inlined_call_operand.hbm [shape: f32[2,1,128], index: 4, kind: input, shape index: {}]
  %s5 = inlined_call_operand.hbm [shape: bf16[2,3,128,128], index: 5, kind: input, shape index: {}]
  %s6 = inlined_call_operand.hbm [shape: f32[2,1,128], index: 6, kind: input, shape index: {}]
  %s7 = inlined_call_operand.hbm [shape: f32[2,1,128], index: 7, kind: input, shape index: {}]
  %s8 = inlined_call_operand.hbm [shape: f32[2,1,128], index: 8, kind: input, shape index: {}]
  %s9 = inlined_call_operand.hbm [shape: bf16[2,8,128], index: 9, kind: output, shape index: {}]
  %s10 = sld [smem:[#allocation0]]
  $region105: #{grec_forward.6} parent=0
    _
  %s12 = ssub.s32 1, %s10
  %s13 = scalar_select 0, %s12, %s10
  $region1: #{grec_forward.6} parent=0
    #allocation2 [shape = 'u8[4096]{0}', space=vmem, size = 0x1000, scoped, tag = 'input window, operand 0']
    #allocation3 [shape = 's32[2]{0}', space=sflag, size = 0x8, scoped, tag = 'scoped memory for grec_forward.6']
    #allocation4 [shape = 's32[2]{0}', space=sflag, size = 0x8, scoped, tag = 'scoped memory for grec_forward.6']
    #allocation5 [shape = 'u8[196608]{0}', space=vmem, size = 0x30000, scoped, tag = 'input window, operand 1, single buffered']
    #allocation6 [shape = 's32[1]{0}', space=sflag, size = 0x4, scoped, tag = 'scoped memory for grec_forward.6']
    #allocation7 [shape = 'u8[1024]{0}', space=vmem, size = 0x400, scoped, tag = 'input window, operand 2, single buffered']
    #allocation8 [shape = 'u8[1024]{0}', space=vmem, size = 0x400, scoped, tag = 'input window, operand 3, single buffered']
    #allocation9 [shape = 's32[1]{0}', space=sflag, size = 0x4, scoped, tag = 'scoped memory for grec_forward.6']
    #allocation10 [shape = 'u8[1024]{0}', space=vmem, size = 0x400, scoped, tag = 'input window, operand 4, single buffered']
    #allocation11 [shape = 'u8[196608]{0}', space=vmem, size = 0x30000, scoped, tag = 'input window, operand 5, single buffered']
    #allocation12 [shape = 's32[1]{0}', space=sflag, size = 0x4, scoped, tag = 'scoped memory for grec_forward.6']
    #allocation13 [shape = 'u8[1024]{0}', space=vmem, size = 0x400, scoped, tag = 'input window, operand 6, single buffered']
    #allocation14 [shape = 'u8[1024]{0}', space=vmem, size = 0x400, scoped, tag = 'input window, operand 7, single buffered']
    #allocation15 [shape = 's32[1]{0}', space=sflag, size = 0x4, scoped, tag = 'scoped memory for grec_forward.6']
    #allocation16 [shape = 'u8[1024]{0}', space=vmem, size = 0x400, scoped, tag = 'input window, operand 8, single buffered']
    #allocation17 [shape = 'u8[4096]{0}', space=vmem, size = 0x1000, scoped, tag = 'output window, operand 0']
    %14 = vsyncpa [#allocation3], 0
    %s15 = scalar_lea.sflag [#allocation3], 1
    %16 = vsyncpa %s15, 0
    %17 = vsyncpa [#allocation6], 0
    %18 = vsyncpa [#allocation9], 0
    %19 = vsyncpa [#allocation12], 0
    %20 = vsyncpa [#allocation15], 0
    %21 = vsyncpa [#allocation4], 0
    %s22 = scalar_lea.sflag [#allocation4], 1
    %23 = vsyncpa %s22, 0
    loop: start=0, step=1, limit=4
    $region2: #{grec_forward.6} parent=1 // loop_pre_header
      _
    $region3: #{grec_forward.6} parent=1 // loop_header
      %s25 = sphi 0, %s29
      %p26 = scmp.ge.s32.totalorder %s25, 4
      %s35 = sphi 0, %s37
      %s38 = sphi 0, %s35
      %s39 = sphi 0, %s38
      %s55 = sphi 0, %s39
      %s59 = sphi 0, %s59
      %s61 = sphi 0, %s59
      %s62 = sphi 0, %s61
      %s76 = sphi 0, %s62
      %s80 = sphi 0, %s80
      %s82 = sphi 0, %s80
      %s83 = sphi 0, %s82
      %s97 = sphi 0, %s83
      %s101 = sphi 0, %s101
      %s103 = sphi 0, %s101
      %s104 = sphi 0, %s103
      %s118 = sphi 0, %s104
      %s122 = sphi 0, %s122
      %s124 = sphi 0, %s122
      %s125 = sphi 0, %s124
      %s139 = sphi 0, %s125
      %s143 = sphi 0, %s143
      %s145 = sphi 0, %s143
      %s146 = sphi 0, %s145
      %s160 = sphi 0, %s146
      %s164 = sphi 0, %s164
      %s166 = sphi 0, %s164
      %s167 = sphi 0, %s166
      %s181 = sphi 0, %s167
      %s185 = sphi 0, %s185
      %s187 = sphi 0, %s185
      %s188 = sphi 0, %s187
      %s202 = sphi 0, %s188
      %s206 = sphi 0, %s206
      %s208 = sphi 0, %s206
      %s209 = sphi 0, %s208
      %s223 = sphi 0, %s209
      %s229 = sphi 0, %s231
      %s232 = sphi 0, %s229
      %s233 = sphi 0, %s232
      %s249 = sphi 0, %s233
    $region4: #{grec_forward.6} parent=1 // loop_header_branch
      %28 = sbr.rel (%p26) target = $region8
    $region5: #{grec_forward.6} parent=1 // loop_body
      %s30 = ssub.s32 %s25, 1
      %s31 = ssub.s32 %s25, 2
      %s32 = sadd.s32 %s25, 1
      %s33 = ssub.s32 %s25, %s32
      %p34 = scmp.eq.s32.totalorder %s33, 0
      %s36 = sadd.s32 %s35, 1
      %s37 = scalar_select %p34, %s35, %s36
      %p40 = pneg %p34
      %p41 = scmp.eq.s32.totalorder %s25, 1
      %p42 = por %p40, %p41
      %p43 = scmp.ne.s32.totalorder %s35, %s38
      %p44 = scmp.eq.s32.totalorder %s25, 0
      %p45 = por %p43, %p44
      %p46 = scmp.ne.s32.totalorder %s35, %s38
      %p47 = scmp.eq.s32.totalorder %s30, 1
      %p48 = por %p46, %p47
      %p49 = scmp.ne.s32.totalorder %s38, %s39
      %p50 = scmp.eq.s32.totalorder %s30, 0
      %p51 = por %p49, %p50
      %p52 = scmp.ne.s32.totalorder %s38, %s39
      %p53 = scmp.eq.s32.totalorder %s31, 1
      %p54 = por %p52, %p53
      %p56 = scmp.ne.s32.totalorder %s39, %s55
      %p57 = scmp.eq.s32.totalorder %s31, 0
      %p58 = por %p56, %p57
      %s60 = sadd.s32 %s59, 1
      %p63 = scmp.eq.s32.totalorder %s25, 1
      %p64 = scmp.ne.s32.totalorder %s59, %s61
      %p65 = scmp.eq.s32.totalorder %s25, 0
      %p66 = por %p64, %p65
      %p67 = scmp.ne.s32.totalorder %s59, %s61
      %p68 = scmp.eq.s32.totalorder %s30, 1
      %p69 = por %p67, %p68
      %p70 = scmp.ne.s32.totalorder %s61, %s62
      %p71 = scmp.eq.s32.totalorder %s30, 0
      %p72 = por %p70, %p71
      %p73 = scmp.ne.s32.totalorder %s61, %s62
      %p74 = scmp.eq.s32.totalorder %s31, 1
      %p75 = por %p73, %p74
      %p77 = scmp.ne.s32.totalorder %s62, %s76
      %p78 = scmp.eq.s32.totalorder %s31, 0
      %p79 = por %p77, %p78
      %s81 = sadd.s32 %s80, 1
      %p84 = scmp.eq.s32.totalorder %s25, 1
      %p85 = scmp.ne.s32.totalorder %s80, %s82
      %p86 = scmp.eq.s32.totalorder %s25, 0
      %p87 = por %p85, %p86
      %p88 = scmp.ne.s32.totalorder %s80, %s82
      %p89 = scmp.eq.s32.totalorder %s30, 1
      %p90 = por %p88, %p89
      %p91 = scmp.ne.s32.totalorder %s82, %s83
      %p92 = scmp.eq.s32.totalorder %s30, 0
      %p93 = por %p91, %p92
      %p94 = scmp.ne.s32.totalorder %s82, %s83
      %p95 = scmp.eq.s32.totalorder %s31, 1
      %p96 = por %p94, %p95
      %p98 = scmp.ne.s32.totalorder %s83, %s97
      %p99 = scmp.eq.s32.totalorder %s31, 0
      %p100 = por %p98, %p99
      %s102 = sadd.s32 %s101, 1
      %p105 = scmp.eq.s32.totalorder %s25, 1
      %p106 = scmp.ne.s32.totalorder %s101, %s103
      %p107 = scmp.eq.s32.totalorder %s25, 0
      %p108 = por %p106, %p107
      %p109 = scmp.ne.s32.totalorder %s101, %s103
      %p110 = scmp.eq.s32.totalorder %s30, 1
      %p111 = por %p109, %p110
      %p112 = scmp.ne.s32.totalorder %s103, %s104
      %p113 = scmp.eq.s32.totalorder %s30, 0
      %p114 = por %p112, %p113
      %p115 = scmp.ne.s32.totalorder %s103, %s104
      %p116 = scmp.eq.s32.totalorder %s31, 1
      %p117 = por %p115, %p116
      %p119 = scmp.ne.s32.totalorder %s104, %s118
      %p120 = scmp.eq.s32.totalorder %s31, 0
      %p121 = por %p119, %p120
      %s123 = sadd.s32 %s122, 1
      %p126 = scmp.eq.s32.totalorder %s25, 1
      %p127 = scmp.ne.s32.totalorder %s122, %s124
      %p128 = scmp.eq.s32.totalorder %s25, 0
      %p129 = por %p127, %p128
      %p130 = scmp.ne.s32.totalorder %s122, %s124
      %p131 = scmp.eq.s32.totalorder %s30, 1
      %p132 = por %p130, %p131
      %p133 = scmp.ne.s32.totalorder %s124, %s125
      %p134 = scmp.eq.s32.totalorder %s30, 0
      %p135 = por %p133, %p134
      %p136 = scmp.ne.s32.totalorder %s124, %s125
      %p137 = scmp.eq.s32.totalorder %s31, 1
      %p138 = por %p136, %p137
      %p140 = scmp.ne.s32.totalorder %s125, %s139
      %p141 = scmp.eq.s32.totalorder %s31, 0
      %p142 = por %p140, %p141
      %s144 = sadd.s32 %s143, 1
      %p147 = scmp.eq.s32.totalorder %s25, 1
      %p148 = scmp.ne.s32.totalorder %s143, %s145
      %p149 = scmp.eq.s32.totalorder %s25, 0
      %p150 = por %p148, %p149
      %p151 = scmp.ne.s32.totalorder %s143, %s145
      %p152 = scmp.eq.s32.totalorder %s30, 1
      %p153 = por %p151, %p152
      %p154 = scmp.ne.s32.totalorder %s145, %s146
      %p155 = scmp.eq.s32.totalorder %s30, 0
      %p156 = por %p154, %p155
      %p157 = scmp.ne.s32.totalorder %s145, %s146
      %p158 = scmp.eq.s32.totalorder %s31, 1
      %p159 = por %p157, %p158
      %p161 = scmp.ne.s32.totalorder %s146, %s160
      %p162 = scmp.eq.s32.totalorder %s31, 0
      %p163 = por %p161, %p162
      %s165 = sadd.s32 %s164, 1
      %p168 = scmp.eq.s32.totalorder %s25, 1
      %p169 = scmp.ne.s32.totalorder %s164, %s166
      %p170 = scmp.eq.s32.totalorder %s25, 0
      %p171 = por %p169, %p170
      %p172 = scmp.ne.s32.totalorder %s164, %s166
      %p173 = scmp.eq.s32.totalorder %s30, 1
      %p174 = por %p172, %p173
      %p175 = scmp.ne.s32.totalorder %s166, %s167
      %p176 = scmp.eq.s32.totalorder %s30, 0
      %p177 = por %p175, %p176
      %p178 = scmp.ne.s32.totalorder %s166, %s167
      %p179 = scmp.eq.s32.totalorder %s31, 1
      %p180 = por %p178, %p179
      %p182 = scmp.ne.s32.totalorder %s167, %s181
      %p183 = scmp.eq.s32.totalorder %s31, 0
      %p184 = por %p182, %p183
      %s186 = sadd.s32 %s185, 1
      %p189 = scmp.eq.s32.totalorder %s25, 1
      %p190 = scmp.ne.s32.totalorder %s185, %s187
      %p191 = scmp.eq.s32.totalorder %s25, 0
      %p192 = por %p190, %p191
      %p193 = scmp.ne.s32.totalorder %s185, %s187
      %p194 = scmp.eq.s32.totalorder %s30, 1
      %p195 = por %p193, %p194
      %p196 = scmp.ne.s32.totalorder %s187, %s188
      %p197 = scmp.eq.s32.totalorder %s30, 0
      %p198 = por %p196, %p197
      %p199 = scmp.ne.s32.totalorder %s187, %s188
      %p200 = scmp.eq.s32.totalorder %s31, 1
      %p201 = por %p199, %p200
      %p203 = scmp.ne.s32.totalorder %s188, %s202
      %p204 = scmp.eq.s32.totalorder %s31, 0
      %p205 = por %p203, %p204
      %s207 = sadd.s32 %s206, 1
      %p210 = scmp.eq.s32.totalorder %s25, 1
      %p211 = scmp.ne.s32.totalorder %s206, %s208
      %p212 = scmp.eq.s32.totalorder %s25, 0
      %p213 = por %p211, %p212
      %p214 = scmp.ne.s32.totalorder %s206, %s208
      %p215 = scmp.eq.s32.totalorder %s30, 1
      %p216 = por %p214, %p215
      %p217 = scmp.ne.s32.totalorder %s208, %s209
      %p218 = scmp.eq.s32.totalorder %s30, 0
      %p219 = por %p217, %p218
      %p220 = scmp.ne.s32.totalorder %s208, %s209
      %p221 = scmp.eq.s32.totalorder %s31, 1
      %p222 = por %p220, %p221
      %p224 = scmp.ne.s32.totalorder %s209, %s223
      %p225 = scmp.eq.s32.totalorder %s31, 0
      %p226 = por %p224, %p225
      %s227 = ssub.s32 %s25, %s32
      %p228 = scmp.eq.s32.totalorder %s227, 0
      %s230 = sadd.s32 %s229, 1
      %s231 = scalar_select %p228, %s229, %s230
      %p234 = pneg %p228
      %p235 = scmp.eq.s32.totalorder %s25, 1
      %p236 = por %p234, %p235
      %p237 = scmp.ne.s32.totalorder %s229, %s232
      %p238 = scmp.eq.s32.totalorder %s25, 0
      %p239 = por %p237, %p238
      %p240 = scmp.ne.s32.totalorder %s229, %s232
      %p241 = scmp.eq.s32.totalorder %s30, 1
      %p242 = por %p240, %p241
      %p243 = scmp.ne.s32.totalorder %s232, %s233
      %p244 = scmp.eq.s32.totalorder %s30, 0
      %p245 = por %p243, %p244
      %p246 = scmp.ne.s32.totalorder %s232, %s233
      %p247 = scmp.eq.s32.totalorder %s31, 1
      %p248 = por %p246, %p247
      %p250 = scmp.ne.s32.totalorder %s233, %s249
      %p251 = scmp.eq.s32.totalorder %s31, 0
      %p252 = por %p250, %p251
      %p253 = scmp.le.s32.totalorder 1, %s25
      %p254 = scmp.lt.s32.totalorder %s25, 3
      %p255 = pnand %p253, %p254
      %p256 = pneg %p255
      // Predicated region
      $region9: #{grec_forward.6} parent=5 // pred_check
        _
      $region10: #{grec_forward.6} parent=5 // pred_check_branch
        %258 = sbr.rel (%p255) target = $region12
      $region11: #{grec_forward.6} parent=5 // pred_region
        %s259 = ssub.s32 %s25, 1
        // Predicated region
        $region13: #{grec_forward.6} parent=11 // pred_check
          %p260 = pneg %p72
        $region14: #{grec_forward.6} parent=11 // pred_check_branch
          %262 = sbr.rel (%p260) target = $region16
        $region15: #{grec_forward.6} parent=11 // pred_region
          %s264 = ssub.s32 6144, 6144
          %265 = vsyncadd [#allocation6], %s264
          %s266 = sshll.u32 [#allocation5], 4
          %s267 = int_to_ptr.vmem [resolvable:$true] %s266
          %272 = dma.hbm_to_vmem [thread:$0]  %s1, 6144, %s267, [#allocation6], 64, 64, 4
        $region16: #{grec_forward.6} parent=11 // pred_fallthru
          _
        // Predicated region
        $region17: #{grec_forward.6} parent=11 // pred_check
          %p273 = pneg %p93
        $region18: #{grec_forward.6} parent=11 // pred_check_branch
          %275 = sbr.rel (%p273) target = $region20
        $region19: #{grec_forward.6} parent=11 // pred_region
          %s277 = ssub.s32 32, 32
          %278 = vsyncadd [#allocation6], %s277
          %s279 = sshll.u32 [#allocation7], 4
          %s280 = int_to_ptr.vmem [resolvable:$true] %s279
          %285 = dma.hbm_to_vmem [thread:$0]  %s2, 32, %s280, [#allocation6], 16, 16, 1
        $region20: #{grec_forward.6} parent=11 // pred_fallthru
          _
        // Predicated region
        $region21: #{grec_forward.6} parent=11 // pred_check
          %p286 = pneg %p114
        $region22: #{grec_forward.6} parent=11 // pred_check_branch
          %288 = sbr.rel (%p286) target = $region24
        $region23: #{grec_forward.6} parent=11 // pred_region
          %s290 = ssub.s32 32, 32
          %291 = vsyncadd [#allocation9], %s290
          %s292 = sshll.u32 [#allocation8], 4
          %s293 = int_to_ptr.vmem [resolvable:$true] %s292
          %298 = dma.hbm_to_vmem [thread:$0]  %s3, 32, %s293, [#allocation9], 16, 16, 1
        $region24: #{grec_forward.6} parent=11 // pred_fallthru
          _
        // Predicated region
        $region25: #{grec_forward.6} parent=11 // pred_check
          %p299 = pneg %p135
        $region26: #{grec_forward.6} parent=11 // pred_check_branch
          %301 = sbr.rel (%p299) target = $region28
        $region27: #{grec_forward.6} parent=11 // pred_region
          %s303 = ssub.s32 32, 32
          %304 = vsyncadd [#allocation9], %s303
          %s305 = sshll.u32 [#allocation10], 4
          %s306 = int_to_ptr.vmem [resolvable:$true] %s305
          %311 = dma.hbm_to_vmem [thread:$0]  %s4, 32, %s306, [#allocation9], 16, 16, 1
        $region28: #{grec_forward.6} parent=11 // pred_fallthru
          _
        // Predicated region
        $region29: #{grec_forward.6} parent=11 // pred_check
          %p312 = pneg %p156
        $region30: #{grec_forward.6} parent=11 // pred_check_branch
          %314 = sbr.rel (%p312) target = $region32
        $region31: #{grec_forward.6} parent=11 // pred_region
          %s316 = ssub.s32 6144, 6144
          %317 = vsyncadd [#allocation12], %s316
          %s318 = sshll.u32 [#allocation11], 4
          %s319 = int_to_ptr.vmem [resolvable:$true] %s318
          %324 = dma.hbm_to_vmem [thread:$0]  %s5, 6144, %s319, [#allocation12], 64, 64, 4
        $region32: #{grec_forward.6} parent=11 // pred_fallthru
          _
        // Predicated region
        $region33: #{grec_forward.6} parent=11 // pred_check
          %p325 = pneg %p177
        $region34: #{grec_forward.6} parent=11 // pred_check_branch
          %327 = sbr.rel (%p325) target = $region36
        $region35: #{grec_forward.6} parent=11 // pred_region
          %s329 = ssub.s32 32, 32
          %330 = vsyncadd [#allocation12], %s329
          %s331 = sshll.u32 [#allocation13], 4
          %s332 = int_to_ptr.vmem [resolvable:$true] %s331
          %337 = dma.hbm_to_vmem [thread:$0]  %s6, 32, %s332, [#allocation12], 16, 16, 1
        $region36: #{grec_forward.6} parent=11 // pred_fallthru
          _
        // Predicated region
        $region37: #{grec_forward.6} parent=11 // pred_check
          %p338 = pneg %p198
        $region38: #{grec_forward.6} parent=11 // pred_check_branch
          %340 = sbr.rel (%p338) target = $region40
        $region39: #{grec_forward.6} parent=11 // pred_region
          %s342 = ssub.s32 32, 32
          %343 = vsyncadd [#allocation15], %s342
          %s344 = sshll.u32 [#allocation14], 4
          %s345 = int_to_ptr.vmem [resolvable:$true] %s344
          %350 = dma.hbm_to_vmem [thread:$0]  %s7, 32, %s345, [#allocation15], 16, 16, 1
        $region40: #{grec_forward.6} parent=11 // pred_fallthru
          _
        // Predicated region
        $region41: #{grec_forward.6} parent=11 // pred_check
          %p351 = pneg %p219
        $region42: #{grec_forward.6} parent=11 // pred_check_branch
          %353 = sbr.rel (%p351) target = $region44
        $region43: #{grec_forward.6} parent=11 // pred_region
          %s355 = ssub.s32 32, 32
          %356 = vsyncadd [#allocation15], %s355
          %s357 = sshll.u32 [#allocation16], 4
          %s358 = int_to_ptr.vmem [resolvable:$true] %s357
          %363 = dma.hbm_to_vmem [thread:$0]  %s8, 32, %s358, [#allocation15], 16, 16, 1
        $region44: #{grec_forward.6} parent=11 // pred_fallthru
          _
      $region12: #{grec_forward.6} parent=5 // pred_fallthru
        _
      %p364 = scmp.lt.s32.totalorder %s25, 2
      // Predicated region
      $region45: #{grec_forward.6} parent=5 // pred_check
        %p365 = pneg %p364
      $region46: #{grec_forward.6} parent=5 // pred_check_branch
        %367 = sbr.rel (%p365) target = $region48
      $region47: #{grec_forward.6} parent=5 // pred_region
        // Predicated region
        $region49: #{grec_forward.6} parent=47 // pred_check
          %p368 = pneg %p45
        $region50: #{grec_forward.6} parent=47 // pred_check_branch
          %370 = sbr.rel (%p368) target = $region52
        $region51: #{grec_forward.6} parent=47 // pred_region
          %s371 = sand.u32 %s35, 1
          %s372 = scalar_lea.sflag [#allocation3], %s371
          %s373 = sand.u32 %s35, 1
          %s374 = smul.addr %s373, 4
          %s375 = scalar_lea.vmem [#allocation2], %s374
          %s377 = ssub.s32 64, 64
          %378 = vsyncadd %s372, %s377
          %s379 = smul.addr %s25, 64
          %s380 = scalar_lea.hbm %s0, %s379
          %s382 = sshll.u32 %s375, 4
          %s383 = int_to_ptr.vmem [resolvable:$true] %s382
          %385 = dma.hbm_to_vmem [thread:$0]  %s380, 64, %s383, %s372
        $region52: #{grec_forward.6} parent=47 // pred_fallthru
          _
      $region48: #{grec_forward.6} parent=5 // pred_fallthru
        _
      %p386 = scmp.le.s32.totalorder 1, %s25
      %p387 = scmp.lt.s32.totalorder %s25, 3
      %p388 = pnand %p386, %p387
      %p389 = pneg %p388
      // Predicated region
      $region53: #{grec_forward.6} parent=5 // pred_check
        _
      $region54: #{grec_forward.6} parent=5 // pred_check_branch
        %391 = sbr.rel (%p388) target = $region56
      $region55: #{grec_forward.6} parent=5 // pred_region
        %s392 = ssub.s32 %s25, 1
        %s393 = sand.u32 %s38, 1
        %s394 = scalar_lea.sflag [#allocation3], %s393
        %s395 = sand.u32 %s38, 1
        %s396 = smul.addr %s395, 4
        %s397 = scalar_lea.vmem [#allocation2], %s396
        // Predicated region
        $region57: #{grec_forward.6} parent=55 // pred_check
          %p398 = pneg %p51
        $region58: #{grec_forward.6} parent=55 // pred_check_branch
          %400 = sbr.rel (%p398) target = $region60
        $region59: #{grec_forward.6} parent=55 // pred_region
          %401 = dma.done %s394, 64
        $region60: #{grec_forward.6} parent=55 // pred_fallthru
          _
        // Predicated region
        $region61: #{grec_forward.6} parent=55 // pred_check
          %p402 = pneg %p72
        $region62: #{grec_forward.6} parent=55 // pred_check_branch
          %404 = sbr.rel (%p402) target = $region64
        $region63: #{grec_forward.6} parent=55 // pred_region
          %405 = dma.done [#allocation6], 6144
        $region64: #{grec_forward.6} parent=55 // pred_fallthru
          _
        // Predicated region
        $region65: #{grec_forward.6} parent=55 // pred_check
          %p406 = pneg %p93
        $region66: #{grec_forward.6} parent=55 // pred_check_branch
          %408 = sbr.rel (%p406) target = $region68
        $region67: #{grec_forward.6} parent=55 // pred_region
          %409 = dma.done [#allocation6], 32
        $region68: #{grec_forward.6} parent=55 // pred_fallthru
          _
        // Predicated region
        $region69: #{grec_forward.6} parent=55 // pred_check
          %p410 = pneg %p114
        $region70: #{grec_forward.6} parent=55 // pred_check_branch
          %412 = sbr.rel (%p410) target = $region72
        $region71: #{grec_forward.6} parent=55 // pred_region
          %413 = dma.done [#allocation9], 32
        $region72: #{grec_forward.6} parent=55 // pred_fallthru
          _
        // Predicated region
        $region73: #{grec_forward.6} parent=55 // pred_check
          %p414 = pneg %p135
        $region74: #{grec_forward.6} parent=55 // pred_check_branch
          %416 = sbr.rel (%p414) target = $region76
        $region75: #{grec_forward.6} parent=55 // pred_region
          %417 = dma.done [#allocation9], 32
        $region76: #{grec_forward.6} parent=55 // pred_fallthru
          _
        // Predicated region
        $region77: #{grec_forward.6} parent=55 // pred_check
          %p418 = pneg %p156
        $region78: #{grec_forward.6} parent=55 // pred_check_branch
          %420 = sbr.rel (%p418) target = $region80
        $region79: #{grec_forward.6} parent=55 // pred_region
          %421 = dma.done [#allocation12], 6144
        $region80: #{grec_forward.6} parent=55 // pred_fallthru
          _
        // Predicated region
        $region81: #{grec_forward.6} parent=55 // pred_check
          %p422 = pneg %p177
        $region82: #{grec_forward.6} parent=55 // pred_check_branch
          %424 = sbr.rel (%p422) target = $region84
        $region83: #{grec_forward.6} parent=55 // pred_region
          %425 = dma.done [#allocation12], 32
        $region84: #{grec_forward.6} parent=55 // pred_fallthru
          _
        // Predicated region
        $region85: #{grec_forward.6} parent=55 // pred_check
          %p426 = pneg %p198
        $region86: #{grec_forward.6} parent=55 // pred_check_branch
          %428 = sbr.rel (%p426) target = $region88
        $region87: #{grec_forward.6} parent=55 // pred_region
          %429 = dma.done [#allocation15], 32
        $region88: #{grec_forward.6} parent=55 // pred_fallthru
          _
        // Predicated region
        $region89: #{grec_forward.6} parent=55 // pred_check
          %p430 = pneg %p219
        $region90: #{grec_forward.6} parent=55 // pred_check_branch
          %432 = sbr.rel (%p430) target = $region92
        $region91: #{grec_forward.6} parent=55 // pred_region
          %433 = dma.done [#allocation15], 32
        $region92: #{grec_forward.6} parent=55 // pred_fallthru
          _
        %s434 = sand.u32 %s38, 1
        %s435 = scalar_lea.sflag [#allocation3], %s434
        %s436 = sand.u32 %s38, 1
        %s437 = smul.addr %s436, 4
        %s438 = scalar_lea.vmem [#allocation2], %s437
        %p439 = pneg %p51
        %p440 = pneg %p48
        %p441 = pneg %p72
        %p442 = pneg %p69
        %p443 = pneg %p93
        %p444 = pneg %p90
        %p445 = pneg %p114
        %p446 = pneg %p111
        %p447 = pneg %p135
        %p448 = pneg %p132
        %p449 = pneg %p156
        %p450 = pneg %p153
        %p451 = pneg %p177
        %p452 = pneg %p174
        %p453 = pneg %p198
        %p454 = pneg %p195
        %p455 = pneg %p219
        %p456 = pneg %p216
        %p457 = pneg %p245
        %p458 = pneg %p242
        %s459 = sand.u32 %s232, 1
        %s460 = scalar_lea.sflag [#allocation4], %s459
        %s461 = sand.u32 %s232, 1
        %s462 = smul.addr %s461, 4
        %s463 = scalar_lea.vmem [#allocation17], %s462
        %v465 = vld [vmem:[%s397] sm:$0xf]
        %v466 = vld [vmem:[#allocation5] sm:$0xf]
        %v467 = vld [vmem:[#allocation5 + $0x4] sm:$0xf]
        %v468 = vld [vmem:[#allocation5 + $0x8] sm:$0xf]
        %v469 = vld [vmem:[#allocation5 + $0xc] sm:$0xf]
        %v470 = vld [vmem:[#allocation5 + $0x10] sm:$0xf]
        %v471 = vld [vmem:[#allocation5 + $0x14] sm:$0xf]
        %v472 = vld [vmem:[#allocation5 + $0x18] sm:$0xf]
        %v473 = vld [vmem:[#allocation5 + $0x1c] sm:$0xf]
        %v474 = vld [vmem:[#allocation5 + $0x20] sm:$0xf]
        %v475 = vld [vmem:[#allocation5 + $0x24] sm:$0xf]
        %v476 = vld [vmem:[#allocation5 + $0x28] sm:$0xf]
        %v477 = vld [vmem:[#allocation5 + $0x2c] sm:$0xf]
        %v478 = vld [vmem:[#allocation5 + $0x30] sm:$0xf]
        %v479 = vld [vmem:[#allocation5 + $0x34] sm:$0xf]
        %v480 = vld [vmem:[#allocation5 + $0x38] sm:$0xf]
        %v481 = vld [vmem:[#allocation5 + $0x3c] sm:$0xf]
        %v482 = vld [vmem:[#allocation5 + $0x40] sm:$0xf]
        %v483 = vld [vmem:[#allocation5 + $0x44] sm:$0xf]
        %v484 = vld [vmem:[#allocation5 + $0x48] sm:$0xf]
        %v485 = vld [vmem:[#allocation5 + $0x4c] sm:$0xf]
        %v486 = vld [vmem:[#allocation5 + $0x50] sm:$0xf]
        %v487 = vld [vmem:[#allocation5 + $0x54] sm:$0xf]
        %v488 = vld [vmem:[#allocation5 + $0x58] sm:$0xf]
        %v489 = vld [vmem:[#allocation5 + $0x5c] sm:$0xf]
        %v490 = vld [vmem:[#allocation5 + $0x60] sm:$0xf]
        %v491 = vld [vmem:[#allocation5 + $0x64] sm:$0xf]
        %v492 = vld [vmem:[#allocation5 + $0x68] sm:$0xf]
        %v493 = vld [vmem:[#allocation5 + $0x6c] sm:$0xf]
        %v494 = vld [vmem:[#allocation5 + $0x70] sm:$0xf]
        %v495 = vld [vmem:[#allocation5 + $0x74] sm:$0xf]
        %v496 = vld [vmem:[#allocation5 + $0x78] sm:$0xf]
        %v497 = vld [vmem:[#allocation5 + $0x7c] sm:$0xf]
        %v498 = vld [vmem:[#allocation5 + $0x80] sm:$0xf]
        %v499 = vld [vmem:[#allocation5 + $0x84] sm:$0xf]
        %v500 = vld [vmem:[#allocation5 + $0x88] sm:$0xf]
        %v501 = vld [vmem:[#allocation5 + $0x8c] sm:$0xf]
        %v502 = vld [vmem:[#allocation5 + $0x90] sm:$0xf]
        %v503 = vld [vmem:[#allocation5 + $0x94] sm:$0xf]
        %v504 = vld [vmem:[#allocation5 + $0x98] sm:$0xf]
        %v505 = vld [vmem:[#allocation5 + $0x9c] sm:$0xf]
        %v506 = vld [vmem:[#allocation5 + $0xa0] sm:$0xf]
        %v507 = vld [vmem:[#allocation5 + $0xa4] sm:$0xf]
        %v508 = vld [vmem:[#allocation5 + $0xa8] sm:$0xf]
        %v509 = vld [vmem:[#allocation5 + $0xac] sm:$0xf]
        %v510 = vld [vmem:[#allocation5 + $0xb0] sm:$0xf]
        %v511 = vld [vmem:[#allocation5 + $0xb4] sm:$0xf]
        %v512 = vld [vmem:[#allocation5 + $0xb8] sm:$0xf]
        %v513 = vld [vmem:[#allocation5 + $0xbc] sm:$0xf]
        %v514 = vld [vmem:[#allocation7] sm:$0x1]
        %v516 = vunpack.c.l.b16 %v465
        %v517 = vpack.c.b16 %v516, %v516
        %v518 = vrot.slane %v517, 7
        %vm519 = vcmask 1040384
        %v522 = vsel %vm519, 0, %v518
        %v524 = vshrl.u32 %v522, 16
        %v526 = vshll.u32 %v522, 16
        %v528 = vrot.slane %v526, 1
        %v529 = vor.u32 %v524, %v528
        %v532 = vrot.slane %v522, 1
        %v535 = vlaneseq
        %v536 = vshrl.u32 %v535, 7
        %v537 = vsub.s32 0, %v536
        %v538 = vrot.slane %v514, %v537
        %v588 = vunpack.c.l.b16 %v466
        %v589 = vunpack.c.l.b16 %v467
        %v590 = vunpack.c.l.b16 %v468
        %v591 = vunpack.c.l.b16 %v469
        %v592 = vunpack.c.l.b16 %v470
        %v593 = vunpack.c.l.b16 %v471
        %v594 = vunpack.c.l.b16 %v472
        %v595 = vunpack.c.l.b16 %v473
        %v596 = vunpack.c.l.b16 %v474
        %v597 = vunpack.c.l.b16 %v475
        %v598 = vunpack.c.l.b16 %v476
        %v599 = vunpack.c.l.b16 %v477
        %v600 = vunpack.c.l.b16 %v478
        %v601 = vunpack.c.l.b16 %v479
        %v602 = vunpack.c.l.b16 %v480
        %v603 = vunpack.c.l.b16 %v481
        %v604 = vunpack.c.l.b16 %v482
        %v605 = vunpack.c.l.b16 %v483
        %v606 = vunpack.c.l.b16 %v484
        %v607 = vunpack.c.l.b16 %v485
        %v608 = vunpack.c.l.b16 %v486
        %v609 = vunpack.c.l.b16 %v487
        %v610 = vunpack.c.l.b16 %v488
        %v611 = vunpack.c.l.b16 %v489
        %v612 = vunpack.c.l.b16 %v490
        %v613 = vunpack.c.l.b16 %v491
        %v614 = vunpack.c.l.b16 %v492
        %v615 = vunpack.c.l.b16 %v493
        %v616 = vunpack.c.l.b16 %v494
        %v617 = vunpack.c.l.b16 %v495
        %v618 = vunpack.c.l.b16 %v496
        %v619 = vunpack.c.l.b16 %v497
        %v620 = vunpack.c.l.b16 %v498
        %v621 = vunpack.c.l.b16 %v499
        %v622 = vunpack.c.l.b16 %v500
        %v623 = vunpack.c.l.b16 %v501
        %v624 = vunpack.c.l.b16 %v502
        %v625 = vunpack.c.l.b16 %v503
        %v626 = vunpack.c.l.b16 %v504
        %v627 = vunpack.c.l.b16 %v505
        %v628 = vunpack.c.l.b16 %v506
        %v629 = vunpack.c.l.b16 %v507
        %v630 = vunpack.c.l.b16 %v508
        %v631 = vunpack.c.l.b16 %v509
        %v632 = vunpack.c.l.b16 %v510
        %v633 = vunpack.c.l.b16 %v511
        %v634 = vunpack.c.l.b16 %v512
        %v635 = vunpack.c.l.b16 %v513
        %v636 = vpack.c.b16 %v589, %v588
        %v637 = vpack.c.b16 %v591, %v590
        %v638 = vpack.c.b16 %v593, %v592
        %v639 = vpack.c.b16 %v595, %v594
        %v640 = vpack.c.b16 %v597, %v596
        %v641 = vpack.c.b16 %v599, %v598
        %v642 = vpack.c.b16 %v601, %v600
        %v643 = vpack.c.b16 %v603, %v602
        %v644 = vpack.c.b16 %v605, %v604
        %v645 = vpack.c.b16 %v607, %v606
        %v646 = vpack.c.b16 %v609, %v608
        %v647 = vpack.c.b16 %v611, %v610
        %v648 = vpack.c.b16 %v613, %v612
        %v649 = vpack.c.b16 %v615, %v614
        %v650 = vpack.c.b16 %v617, %v616
        %v651 = vpack.c.b16 %v619, %v618
        %v652 = vpack.c.b16 %v621, %v620
        %v653 = vpack.c.b16 %v623, %v622
        %v654 = vpack.c.b16 %v625, %v624
        %v655 = vpack.c.b16 %v627, %v626
        %v656 = vpack.c.b16 %v629, %v628
        %v657 = vpack.c.b16 %v631, %v630
        %v658 = vpack.c.b16 %v633, %v632
        %v659 = vpack.c.b16 %v635, %v634
        %684 = vmatprep.subr.bf16.mxu0 0
        %685 = vmatpush1.bf16.msra.mxu0 %v636
        %686 = vmatprep.subr.bf16.mxu0 0
        %687 = vmatpush1.bf16.msra.mxu0 %v637
        %688 = vmatprep.subr.bf16.mxu0 0
        %689 = vmatpush1.bf16.msra.mxu0 %v638
        %690 = vmatprep.subr.bf16.mxu0 0
        %691 = vmatpush1.bf16.msra.mxu0 %v639
        %692 = vmatprep.subr.bf16.mxu0 0
        %693 = vmatpush1.bf16.msra.mxu0 %v640
        %694 = vmatprep.subr.bf16.mxu0 0
        %695 = vmatpush1.bf16.msra.mxu0 %v641
        %696 = vmatprep.subr.bf16.mxu0 0
        %697 = vmatpush1.bf16.msra.mxu0 %v642
        %698 = vmatprep.subr.bf16.mxu0 0
        %699 = vmatpush1.bf16.msra.mxu0 %v643
        %700 = vmatprep.subr.bf16.mxu0 0
        %701 = vmatpush1.bf16.msra.mxu0 %v644
        %702 = vmatprep.subr.bf16.mxu0 0
        %703 = vmatpush1.bf16.msra.mxu0 %v645
        %704 = vmatprep.subr.bf16.mxu0 0
        %705 = vmatpush1.bf16.msra.mxu0 %v646
        %706 = vmatprep.subr.bf16.mxu0 0
        %707 = vmatpush1.bf16.msra.mxu0 %v647
        %708 = vmatprep.subr.bf16.mxu0 0
        %709 = vmatpush1.bf16.msra.mxu0 %v648
        %710 = vmatprep.subr.bf16.mxu0 0
        %711 = vmatpush1.bf16.msra.mxu0 %v649
        %712 = vmatprep.subr.bf16.mxu0 0
        %713 = vmatpush1.bf16.msra.mxu0 %v650
        %714 = vmatprep.subr.bf16.mxu0 0
        %715 = vmatpush1.bf16.msra.mxu0 %v651
        %716 = vmatprep.mubr.bf16.mxu0 %v529
        %717 = vmatmul.mubr.bf16.gmra.mrb[0].mxu0 %v522
        %v718 = vpop.f32.mrb[0].mxu0
        %v719 = vadd.f32 %v538, %v718
        %v720 = vpop.f32.mrb[0].mxu0
        %v721 = vpop.f32.mrb[0].mxu0
        %v722 = vpop.f32.mrb[0].mxu0
        %723 = vdwg.mxu0
        %724 = vmatprep.subr.bf16.mxu0 0
        %725 = vmatpush1.bf16.msra.mxu0 %v652
        %726 = vmatprep.subr.bf16.mxu0 0
        %727 = vmatpush1.bf16.msra.mxu0 %v653
        %728 = vmatprep.subr.bf16.mxu0 0
        %729 = vmatpush1.bf16.msra.mxu0 %v654
        %730 = vmatprep.subr.bf16.mxu0 0
        %731 = vmatpush1.bf16.msra.mxu0 %v655
        %732 = vmatprep.subr.bf16.mxu0 0
        %733 = vmatpush1.bf16.msra.mxu0 %v656
        %734 = vmatprep.subr.bf16.mxu0 0
        %735 = vmatpush1.bf16.msra.mxu0 %v657
        %736 = vmatprep.subr.bf16.mxu0 0
        %737 = vmatpush1.bf16.msra.mxu0 %v658
        %738 = vmatprep.subr.bf16.mxu0 0
        %739 = vmatpush1.bf16.msra.mxu0 %v659
        %740 = vmatprep.subr.bf16.mxu0 0
        %741 = vmatpush1.bf16.msra.mxu0 0
        %742 = vmatprep.subr.bf16.mxu0 0
        %743 = vmatpush1.bf16.msra.mxu0 0
        %744 = vmatprep.subr.bf16.mxu0 0
        %745 = vmatpush1.bf16.msra.mxu0 0
        %746 = vmatprep.subr.bf16.mxu0 0
        %747 = vmatpush1.bf16.msra.mxu0 0
        %748 = vmatprep.subr.bf16.mxu0 0
        %749 = vmatpush1.bf16.msra.mxu0 0
        %750 = vmatprep.subr.bf16.mxu0 0
        %751 = vmatpush1.bf16.msra.mxu0 0
        %752 = vmatprep.subr.bf16.mxu0 0
        %753 = vmatpush1.bf16.msra.mxu0 0
        %754 = vmatprep.subr.bf16.mxu0 0
        %755 = vmatpush1.bf16.msra.mxu0 0
        %756 = vmatprep.mubr.bf16.mxu0 0
        %757 = vmatmul.mubr.bf16.gmra.mrb[0].mxu0 %v532
        %v758 = vpop.f32.mrb[0].mxu0
        %v759 = vadd.f32 %v719, %v758
        %v760 = vpop.f32.mrb[0].mxu0
        %v761 = vpop.f32.mrb[0].mxu0
        %v762 = vpop.f32.mrb[0].mxu0
        %763 = vdwg.mxu0
        %v764 = vld [vmem:[#allocation8] sm:$0x1]
        %v765 = vld [vmem:[#allocation10] sm:$0x1]
        %766 = vadd.xlane.f32.xlu0 %v759
        %v767 = vpop.xlane.xlu0 %766
        %v768 = vmul.f32 %v767, 0.03125
        %v769 = vmul.f32 %v759, %v759
        %770 = vadd.xlane.f32.xlu0 %v769
        %v771 = vpop.xlane.xlu0 %770
        %v772 = vmul.f32 %v771, 0.03125
        %v773 = vmul.f32 %v768, %v768
        %v774 = vsub.f32 %v772, %v773
        %v775 = vmax.f32 %v774, 0.0
        %v776 = vsub.f32 %v759, %v768
        %v777 = vadd.f32 %v775, 1e-08
        %v778 = vrsqrt.pop %v777
        %v779 = vmul.f32 %v776, %v778
        %v781 = vlaneseq
        %v782 = vshrl.u32 %v781, 7
        %v783 = vsub.s32 0, %v782
        %v784 = vrot.slane %v764, %v783
        %v786 = vmul.f32 %v779, %v784
        %v788 = vlaneseq
        %v789 = vshrl.u32 %v788, 7
        %v790 = vsub.s32 0, %v789
        %v791 = vrot.slane %v765, %v790
        %v793 = vadd.f32 %v786, %v791
        %v794 = vmax.f32 %v793, 0.0
        %v795 = vpack.c.bf16 %v794, %v794
        %v796 = vld [vmem:[#allocation11] sm:$0xf]
        %v797 = vld [vmem:[#allocation11 + $0x4] sm:$0xf]
        %v798 = vld [vmem:[#allocation11 + $0x8] sm:$0xf]
        %v799 = vld [vmem:[#allocation11 + $0xc] sm:$0xf]
        %v800 = vld [vmem:[#allocation11 + $0x10] sm:$0xf]
        %v801 = vld [vmem:[#allocation11 + $0x14] sm:$0xf]
        %v802 = vld [vmem:[#allocation11 + $0x18] sm:$0xf]
        %v803 = vld [vmem:[#allocation11 + $0x1c] sm:$0xf]
        %v804 = vld [vmem:[#allocation11 + $0x20] sm:$0xf]
        %v805 = vld [vmem:[#allocation11 + $0x24] sm:$0xf]
        %v806 = vld [vmem:[#allocation11 + $0x28] sm:$0xf]
        %v807 = vld [vmem:[#allocation11 + $0x2c] sm:$0xf]
        %v808 = vld [vmem:[#allocation11 + $0x30] sm:$0xf]
        %v809 = vld [vmem:[#allocation11 + $0x34] sm:$0xf]
        %v810 = vld [vmem:[#allocation11 + $0x38] sm:$0xf]
        %v811 = vld [vmem:[#allocation11 + $0x3c] sm:$0xf]
        %v812 = vld [vmem:[#allocation11 + $0x40] sm:$0xf]
        %v813 = vld [vmem:[#allocation11 + $0x44] sm:$0xf]
        %v814 = vld [vmem:[#allocation11 + $0x48] sm:$0xf]
        %v815 = vld [vmem:[#allocation11 + $0x4c] sm:$0xf]
        %v816 = vld [vmem:[#allocation11 + $0x50] sm:$0xf]
        %v817 = vld [vmem:[#allocation11 + $0x54] sm:$0xf]
        %v818 = vld [vmem:[#allocation11 + $0x58] sm:$0xf]
        %v819 = vld [vmem:[#allocation11 + $0x5c] sm:$0xf]
        %v820 = vld [vmem:[#allocation11 + $0x60] sm:$0xf]
        %v821 = vld [vmem:[#allocation11 + $0x64] sm:$0xf]
        %v822 = vld [vmem:[#allocation11 + $0x68] sm:$0xf]
        %v823 = vld [vmem:[#allocation11 + $0x6c] sm:$0xf]
        %v824 = vld [vmem:[#allocation11 + $0x70] sm:$0xf]
        %v825 = vld [vmem:[#allocation11 + $0x74] sm:$0xf]
        %v826 = vld [vmem:[#allocation11 + $0x78] sm:$0xf]
        %v827 = vld [vmem:[#allocation11 + $0x7c] sm:$0xf]
        %v828 = vld [vmem:[#allocation11 + $0x80] sm:$0xf]
        %v829 = vld [vmem:[#allocation11 + $0x84] sm:$0xf]
        %v830 = vld [vmem:[#allocation11 + $0x88] sm:$0xf]
        %v831 = vld [vmem:[#allocation11 + $0x8c] sm:$0xf]
        %v832 = vld [vmem:[#allocation11 + $0x90] sm:$0xf]
        %v833 = vld [vmem:[#allocation11 + $0x94] sm:$0xf]
        %v834 = vld [vmem:[#allocation11 + $0x98] sm:$0xf]
        %v835 = vld [vmem:[#allocation11 + $0x9c] sm:$0xf]
        %v836 = vld [vmem:[#allocation11 + $0xa0] sm:$0xf]
        %v837 = vld [vmem:[#allocation11 + $0xa4] sm:$0xf]
        %v838 = vld [vmem:[#allocation11 + $0xa8] sm:$0xf]
        %v839 = vld [vmem:[#allocation11 + $0xac] sm:$0xf]
        %v840 = vld [vmem:[#allocation11 + $0xb0] sm:$0xf]
        %v841 = vld [vmem:[#allocation11 + $0xb4] sm:$0xf]
        %v842 = vld [vmem:[#allocation11 + $0xb8] sm:$0xf]
        %v843 = vld [vmem:[#allocation11 + $0xbc] sm:$0xf]
        %v844 = vld [vmem:[#allocation13] sm:$0x1]
        %v846 = vrot.slane %v795, 6
        %vm847 = vcmask 1041408
        %v849 = vsel %vm847, 0, %v846
        %v852 = vrot.slane %v849, 1
        %v854 = vrot.slane %v849, 2
        %v857 = vlaneseq
        %v858 = vshrl.u32 %v857, 7
        %v859 = vsub.s32 0, %v858
        %v860 = vrot.slane %v844, %v859
        %v910 = vunpack.c.l.b16 %v796
        %v911 = vunpack.c.l.b16 %v797
        %v912 = vunpack.c.l.b16 %v798
        %v913 = vunpack.c.l.b16 %v799
        %v914 = vunpack.c.l.b16 %v800
        %v915 = vunpack.c.l.b16 %v801
        %v916 = vunpack.c.l.b16 %v802
        %v917 = vunpack.c.l.b16 %v803
        %v918 = vunpack.c.l.b16 %v804
        %v919 = vunpack.c.l.b16 %v805
        %v920 = vunpack.c.l.b16 %v806
        %v921 = vunpack.c.l.b16 %v807
        %v922 = vunpack.c.l.b16 %v808
        %v923 = vunpack.c.l.b16 %v809
        %v924 = vunpack.c.l.b16 %v810
        %v925 = vunpack.c.l.b16 %v811
        %v926 = vunpack.c.l.b16 %v812
        %v927 = vunpack.c.l.b16 %v813
        %v928 = vunpack.c.l.b16 %v814
        %v929 = vunpack.c.l.b16 %v815
        %v930 = vunpack.c.l.b16 %v816
        %v931 = vunpack.c.l.b16 %v817
        %v932 = vunpack.c.l.b16 %v818
        %v933 = vunpack.c.l.b16 %v819
        %v934 = vunpack.c.l.b16 %v820
        %v935 = vunpack.c.l.b16 %v821
        %v936 = vunpack.c.l.b16 %v822
        %v937 = vunpack.c.l.b16 %v823
        %v938 = vunpack.c.l.b16 %v824
        %v939 = vunpack.c.l.b16 %v825
        %v940 = vunpack.c.l.b16 %v826
        %v941 = vunpack.c.l.b16 %v827
        %v942 = vunpack.c.l.b16 %v828
        %v943 = vunpack.c.l.b16 %v829
        %v944 = vunpack.c.l.b16 %v830
        %v945 = vunpack.c.l.b16 %v831
        %v946 = vunpack.c.l.b16 %v832
        %v947 = vunpack.c.l.b16 %v833
        %v948 = vunpack.c.l.b16 %v834
        %v949 = vunpack.c.l.b16 %v835
        %v950 = vunpack.c.l.b16 %v836
        %v951 = vunpack.c.l.b16 %v837
        %v952 = vunpack.c.l.b16 %v838
        %v953 = vunpack.c.l.b16 %v839
        %v954 = vunpack.c.l.b16 %v840
        %v955 = vunpack.c.l.b16 %v841
        %v956 = vunpack.c.l.b16 %v842
        %v957 = vunpack.c.l.b16 %v843
        %v958 = vpack.c.b16 %v911, %v910
        %v959 = vpack.c.b16 %v913, %v912
        %v960 = vpack.c.b16 %v915, %v914
        %v961 = vpack.c.b16 %v917, %v916
        %v962 = vpack.c.b16 %v919, %v918
        %v963 = vpack.c.b16 %v921, %v920
        %v964 = vpack.c.b16 %v923, %v922
        %v965 = vpack.c.b16 %v925, %v924
        %v966 = vpack.c.b16 %v927, %v926
        %v967 = vpack.c.b16 %v929, %v928
        %v968 = vpack.c.b16 %v931, %v930
        %v969 = vpack.c.b16 %v933, %v932
        %v970 = vpack.c.b16 %v935, %v934
        %v971 = vpack.c.b16 %v937, %v936
        %v972 = vpack.c.b16 %v939, %v938
        %v973 = vpack.c.b16 %v941, %v940
        %v974 = vpack.c.b16 %v943, %v942
        %v975 = vpack.c.b16 %v945, %v944
        %v976 = vpack.c.b16 %v947, %v946
        %v977 = vpack.c.b16 %v949, %v948
        %v978 = vpack.c.b16 %v951, %v950
        %v979 = vpack.c.b16 %v953, %v952
        %v980 = vpack.c.b16 %v955, %v954
        %v981 = vpack.c.b16 %v957, %v956
        %1006 = vmatprep.subr.bf16.mxu0 0
        %1007 = vmatpush1.bf16.msra.mxu0 %v958
        %1008 = vmatprep.subr.bf16.mxu0 0
        %1009 = vmatpush1.bf16.msra.mxu0 %v959
        %1010 = vmatprep.subr.bf16.mxu0 0
        %1011 = vmatpush1.bf16.msra.mxu0 %v960
        %1012 = vmatprep.subr.bf16.mxu0 0
        %1013 = vmatpush1.bf16.msra.mxu0 %v961
        %1014 = vmatprep.subr.bf16.mxu0 0
        %1015 = vmatpush1.bf16.msra.mxu0 %v962
        %1016 = vmatprep.subr.bf16.mxu0 0
        %1017 = vmatpush1.bf16.msra.mxu0 %v963
        %1018 = vmatprep.subr.bf16.mxu0 0
        %1019 = vmatpush1.bf16.msra.mxu0 %v964
        %1020 = vmatprep.subr.bf16.mxu0 0
        %1021 = vmatpush1.bf16.msra.mxu0 %v965
        %1022 = vmatprep.subr.bf16.mxu0 0
        %1023 = vmatpush1.bf16.msra.mxu0 %v966
        %1024 = vmatprep.subr.bf16.mxu0 0
        %1025 = vmatpush1.bf16.msra.mxu0 %v967
        %1026 = vmatprep.subr.bf16.mxu0 0
        %1027 = vmatpush1.bf16.msra.mxu0 %v968
        %1028 = vmatprep.subr.bf16.mxu0 0
        %1029 = vmatpush1.bf16.msra.mxu0 %v969
        %1030 = vmatprep.subr.bf16.mxu0 0
        %1031 = vmatpush1.bf16.msra.mxu0 %v970
        %1032 = vmatprep.subr.bf16.mxu0 0
        %1033 = vmatpush1.bf16.msra.mxu0 %v971
        %1034 = vmatprep.subr.bf16.mxu0 0
        %1035 = vmatpush1.bf16.msra.mxu0 %v972
        %1036 = vmatprep.subr.bf16.mxu0 0
        %1037 = vmatpush1.bf16.msra.mxu0 %v973
        %1038 = vmatprep.mubr.bf16.mxu0 %v852
        %1039 = vmatmul.mubr.bf16.gmra.mrb[0].mxu0 %v849
        %v1040 = vpop.f32.mrb[0].mxu0
        %v1041 = vadd.f32 %v860, %v1040
        %v1042 = vpop.f32.mrb[0].mxu0
        %v1043 = vpop.f32.mrb[0].mxu0
        %v1044 = vpop.f32.mrb[0].mxu0
        %1045 = vdwg.mxu0
        %1046 = vmatprep.subr.bf16.mxu0 0
        %1047 = vmatpush1.bf16.msra.mxu0 %v974
        %1048 = vmatprep.subr.bf16.mxu0 0
        %1049 = vmatpush1.bf16.msra.mxu0 %v975
        %1050 = vmatprep.subr.bf16.mxu0 0
        %1051 = vmatpush1.bf16.msra.mxu0 %v976
        %1052 = vmatprep.subr.bf16.mxu0 0
        %1053 = vmatpush1.bf16.msra.mxu0 %v977
        %1054 = vmatprep.subr.bf16.mxu0 0
        %1055 = vmatpush1.bf16.msra.mxu0 %v978
        %1056 = vmatprep.subr.bf16.mxu0 0
        %1057 = vmatpush1.bf16.msra.mxu0 %v979
        %1058 = vmatprep.subr.bf16.mxu0 0
        %1059 = vmatpush1.bf16.msra.mxu0 %v980
        %1060 = vmatprep.subr.bf16.mxu0 0
        %1061 = vmatpush1.bf16.msra.mxu0 %v981
        %1062 = vmatprep.subr.bf16.mxu0 0
        %1063 = vmatpush1.bf16.msra.mxu0 0
        %1064 = vmatprep.subr.bf16.mxu0 0
        %1065 = vmatpush1.bf16.msra.mxu0 0
        %1066 = vmatprep.subr.bf16.mxu0 0
        %1067 = vmatpush1.bf16.msra.mxu0 0
        %1068 = vmatprep.subr.bf16.mxu0 0
        %1069 = vmatpush1.bf16.msra.mxu0 0
        %1070 = vmatprep.subr.bf16.mxu0 0
        %1071 = vmatpush1.bf16.msra.mxu0 0
        %1072 = vmatprep.subr.bf16.mxu0 0
        %1073 = vmatpush1.bf16.msra.mxu0 0
        %1074 = vmatprep.subr.bf16.mxu0 0
        %1075 = vmatpush1.bf16.msra.mxu0 0
        %1076 = vmatprep.subr.bf16.mxu0 0
        %1077 = vmatpush1.bf16.msra.mxu0 0
        %1078 = vmatprep.mubr.bf16.mxu0 0
        %1079 = vmatmul.mubr.bf16.gmra.mrb[0].mxu0 %v854
        %v1080 = vpop.f32.mrb[0].mxu0
        %v1081 = vadd.f32 %v1041, %v1080
        %v1082 = vpop.f32.mrb[0].mxu0
        %v1083 = vpop.f32.mrb[0].mxu0
        %v1084 = vpop.f32.mrb[0].mxu0
        %1085 = vdwg.mxu0
        %v1086 = vld [vmem:[#allocation14] sm:$0x1]
        %v1087 = vld [vmem:[#allocation16] sm:$0x1]
        %1088 = vadd.xlane.f32.xlu0 %v1081
        %v1089 = vpop.xlane.xlu0 %1088
        %v1090 = vmul.f32 %v1089, 0.03125
        %v1091 = vmul.f32 %v1081, %v1081
        %1092 = vadd.xlane.f32.xlu0 %v1091
        %v1093 = vpop.xlane.xlu0 %1092
        %v1094 = vmul.f32 %v1093, 0.03125
        %v1095 = vmul.f32 %v1090, %v1090
        %v1096 = vsub.f32 %v1094, %v1095
        %v1097 = vmax.f32 %v1096, 0.0
        %v1098 = vsub.f32 %v1081, %v1090
        %v1099 = vadd.f32 %v1097, 1e-08
        %v1100 = vrsqrt.pop %v1099
        %v1101 = vmul.f32 %v1098, %v1100
        %v1103 = vlaneseq
        %v1104 = vshrl.u32 %v1103, 7
        %v1105 = vsub.s32 0, %v1104
        %v1106 = vrot.slane %v1086, %v1105
        %v1108 = vmul.f32 %v1101, %v1106
        %v1110 = vlaneseq
        %v1111 = vshrl.u32 %v1110, 7
        %v1112 = vsub.s32 0, %v1111
        %v1113 = vrot.slane %v1087, %v1112
        %v1115 = vadd.f32 %v1108, %v1113
        %v1116 = vmax.f32 %v1115, 0.0
        %v1117 = vunpack.c.l.bf16 %v465
        %v1118 = vadd.f32 %v1116, %v1117
        %v1119 = vpack.c.bf16 %v1118, %v1118
        %s1120 = scalar_lea.vmem [#allocation5], 192
        %v1121 = vld [vmem:[%s1120] sm:$0xf]
        %v1122 = vld [vmem:[%s1120 + $0x4] sm:$0xf]
        %v1123 = vld [vmem:[%s1120 + $0x8] sm:$0xf]
        %v1124 = vld [vmem:[%s1120 + $0xc] sm:$0xf]
        %v1125 = vld [vmem:[%s1120 + $0x10] sm:$0xf]
        %v1126 = vld [vmem:[%s1120 + $0x14] sm:$0xf]
        %v1127 = vld [vmem:[%s1120 + $0x18] sm:$0xf]
        %v1128 = vld [vmem:[%s1120 + $0x1c] sm:$0xf]
        %v1129 = vld [vmem:[%s1120 + $0x20] sm:$0xf]
        %v1130 = vld [vmem:[%s1120 + $0x24] sm:$0xf]
        %v1131 = vld [vmem:[%s1120 + $0x28] sm:$0xf]
        %v1132 = vld [vmem:[%s1120 + $0x2c] sm:$0xf]
        %v1133 = vld [vmem:[%s1120 + $0x30] sm:$0xf]
        %v1134 = vld [vmem:[%s1120 + $0x34] sm:$0xf]
        %v1135 = vld [vmem:[%s1120 + $0x38] sm:$0xf]
        %v1136 = vld [vmem:[%s1120 + $0x3c] sm:$0xf]
        %v1137 = vld [vmem:[%s1120 + $0x40] sm:$0xf]
        %v1138 = vld [vmem:[%s1120 + $0x44] sm:$0xf]
        %v1139 = vld [vmem:[%s1120 + $0x48] sm:$0xf]
        %v1140 = vld [vmem:[%s1120 + $0x4c] sm:$0xf]
        %v1141 = vld [vmem:[%s1120 + $0x50] sm:$0xf]
        %v1142 = vld [vmem:[%s1120 + $0x54] sm:$0xf]
        %v1143 = vld [vmem:[%s1120 + $0x58] sm:$0xf]
        %v1144 = vld [vmem:[%s1120 + $0x5c] sm:$0xf]
        %v1145 = vld [vmem:[%s1120 + $0x60] sm:$0xf]
        %v1146 = vld [vmem:[%s1120 + $0x64] sm:$0xf]
        %v1147 = vld [vmem:[%s1120 + $0x68] sm:$0xf]
        %v1148 = vld [vmem:[%s1120 + $0x6c] sm:$0xf]
        %v1149 = vld [vmem:[%s1120 + $0x70] sm:$0xf]
        %v1150 = vld [vmem:[%s1120 + $0x74] sm:$0xf]
        %v1151 = vld [vmem:[%s1120 + $0x78] sm:$0xf]
        %v1152 = vld [vmem:[%s1120 + $0x7c] sm:$0xf]
        %v1153 = vld [vmem:[%s1120 + $0x80] sm:$0xf]
        %v1154 = vld [vmem:[%s1120 + $0x84] sm:$0xf]
        %v1155 = vld [vmem:[%s1120 + $0x88] sm:$0xf]
        %v1156 = vld [vmem:[%s1120 + $0x8c] sm:$0xf]
        %v1157 = vld [vmem:[%s1120 + $0x90] sm:$0xf]
        %v1158 = vld [vmem:[%s1120 + $0x94] sm:$0xf]
        %v1159 = vld [vmem:[%s1120 + $0x98] sm:$0xf]
        %v1160 = vld [vmem:[%s1120 + $0x9c] sm:$0xf]
        %v1161 = vld [vmem:[%s1120 + $0xa0] sm:$0xf]
        %v1162 = vld [vmem:[%s1120 + $0xa4] sm:$0xf]
        %v1163 = vld [vmem:[%s1120 + $0xa8] sm:$0xf]
        %v1164 = vld [vmem:[%s1120 + $0xac] sm:$0xf]
        %v1165 = vld [vmem:[%s1120 + $0xb0] sm:$0xf]
        %v1166 = vld [vmem:[%s1120 + $0xb4] sm:$0xf]
        %v1167 = vld [vmem:[%s1120 + $0xb8] sm:$0xf]
        %v1168 = vld [vmem:[%s1120 + $0xbc] sm:$0xf]
        %s1169 = scalar_lea.vmem [#allocation7], 1
        %v1170 = vld [vmem:[%s1169] sm:$0x1]
        %v1172 = vrot.slane %v1119, 6
        %v1174 = vsel %vm847, 0, %v1172
        %v1177 = vrot.slane %v1174, 1
        %v1179 = vrot.slane %v1174, 2
        %v1182 = vlaneseq
        %v1183 = vshrl.u32 %v1182, 7
        %v1184 = vsub.s32 0, %v1183
        %v1185 = vrot.slane %v1170, %v1184
        %v1235 = vunpack.c.l.b16 %v1121
        %v1236 = vunpack.c.l.b16 %v1122
        %v1237 = vunpack.c.l.b16 %v1123
        %v1238 = vunpack.c.l.b16 %v1124
        %v1239 = vunpack.c.l.b16 %v1125
        %v1240 = vunpack.c.l.b16 %v1126
        %v1241 = vunpack.c.l.b16 %v1127
        %v1242 = vunpack.c.l.b16 %v1128
        %v1243 = vunpack.c.l.b16 %v1129
        %v1244 = vunpack.c.l.b16 %v1130
        %v1245 = vunpack.c.l.b16 %v1131
        %v1246 = vunpack.c.l.b16 %v1132
        %v1247 = vunpack.c.l.b16 %v1133
        %v1248 = vunpack.c.l.b16 %v1134
        %v1249 = vunpack.c.l.b16 %v1135
        %v1250 = vunpack.c.l.b16 %v1136
        %v1251 = vunpack.c.l.b16 %v1137
        %v1252 = vunpack.c.l.b16 %v1138
        %v1253 = vunpack.c.l.b16 %v1139
        %v1254 = vunpack.c.l.b16 %v1140
        %v1255 = vunpack.c.l.b16 %v1141
        %v1256 = vunpack.c.l.b16 %v1142
        %v1257 = vunpack.c.l.b16 %v1143
        %v1258 = vunpack.c.l.b16 %v1144
        %v1259 = vunpack.c.l.b16 %v1145
        %v1260 = vunpack.c.l.b16 %v1146
        %v1261 = vunpack.c.l.b16 %v1147
        %v1262 = vunpack.c.l.b16 %v1148
        %v1263 = vunpack.c.l.b16 %v1149
        %v1264 = vunpack.c.l.b16 %v1150
        %v1265 = vunpack.c.l.b16 %v1151
        %v1266 = vunpack.c.l.b16 %v1152
        %v1267 = vunpack.c.l.b16 %v1153
        %v1268 = vunpack.c.l.b16 %v1154
        %v1269 = vunpack.c.l.b16 %v1155
        %v1270 = vunpack.c.l.b16 %v1156
        %v1271 = vunpack.c.l.b16 %v1157
        %v1272 = vunpack.c.l.b16 %v1158
        %v1273 = vunpack.c.l.b16 %v1159
        %v1274 = vunpack.c.l.b16 %v1160
        %v1275 = vunpack.c.l.b16 %v1161
        %v1276 = vunpack.c.l.b16 %v1162
        %v1277 = vunpack.c.l.b16 %v1163
        %v1278 = vunpack.c.l.b16 %v1164
        %v1279 = vunpack.c.l.b16 %v1165
        %v1280 = vunpack.c.l.b16 %v1166
        %v1281 = vunpack.c.l.b16 %v1167
        %v1282 = vunpack.c.l.b16 %v1168
        %v1283 = vpack.c.b16 %v1236, %v1235
        %v1284 = vpack.c.b16 %v1238, %v1237
        %v1285 = vpack.c.b16 %v1240, %v1239
        %v1286 = vpack.c.b16 %v1242, %v1241
        %v1287 = vpack.c.b16 %v1244, %v1243
        %v1288 = vpack.c.b16 %v1246, %v1245
        %v1289 = vpack.c.b16 %v1248, %v1247
        %v1290 = vpack.c.b16 %v1250, %v1249
        %v1291 = vpack.c.b16 %v1252, %v1251
        %v1292 = vpack.c.b16 %v1254, %v1253
        %v1293 = vpack.c.b16 %v1256, %v1255
        %v1294 = vpack.c.b16 %v1258, %v1257
        %v1295 = vpack.c.b16 %v1260, %v1259
        %v1296 = vpack.c.b16 %v1262, %v1261
        %v1297 = vpack.c.b16 %v1264, %v1263
        %v1298 = vpack.c.b16 %v1266, %v1265
        %v1299 = vpack.c.b16 %v1268, %v1267
        %v1300 = vpack.c.b16 %v1270, %v1269
        %v1301 = vpack.c.b16 %v1272, %v1271
        %v1302 = vpack.c.b16 %v1274, %v1273
        %v1303 = vpack.c.b16 %v1276, %v1275
        %v1304 = vpack.c.b16 %v1278, %v1277
        %v1305 = vpack.c.b16 %v1280, %v1279
        %v1306 = vpack.c.b16 %v1282, %v1281
        %1331 = vmatprep.subr.bf16.mxu0 0
        %1332 = vmatpush1.bf16.msra.mxu0 %v1283
        %1333 = vmatprep.subr.bf16.mxu0 0
        %1334 = vmatpush1.bf16.msra.mxu0 %v1284
        %1335 = vmatprep.subr.bf16.mxu0 0
        %1336 = vmatpush1.bf16.msra.mxu0 %v1285
        %1337 = vmatprep.subr.bf16.mxu0 0
        %1338 = vmatpush1.bf16.msra.mxu0 %v1286
        %1339 = vmatprep.subr.bf16.mxu0 0
        %1340 = vmatpush1.bf16.msra.mxu0 %v1287
        %1341 = vmatprep.subr.bf16.mxu0 0
        %1342 = vmatpush1.bf16.msra.mxu0 %v1288
        %1343 = vmatprep.subr.bf16.mxu0 0
        %1344 = vmatpush1.bf16.msra.mxu0 %v1289
        %1345 = vmatprep.subr.bf16.mxu0 0
        %1346 = vmatpush1.bf16.msra.mxu0 %v1290
        %1347 = vmatprep.subr.bf16.mxu0 0
        %1348 = vmatpush1.bf16.msra.mxu0 %v1291
        %1349 = vmatprep.subr.bf16.mxu0 0
        %1350 = vmatpush1.bf16.msra.mxu0 %v1292
        %1351 = vmatprep.subr.bf16.mxu0 0
        %1352 = vmatpush1.bf16.msra.mxu0 %v1293
        %1353 = vmatprep.subr.bf16.mxu0 0
        %1354 = vmatpush1.bf16.msra.mxu0 %v1294
        %1355 = vmatprep.subr.bf16.mxu0 0
        %1356 = vmatpush1.bf16.msra.mxu0 %v1295
        %1357 = vmatprep.subr.bf16.mxu0 0
        %1358 = vmatpush1.bf16.msra.mxu0 %v1296
        %1359 = vmatprep.subr.bf16.mxu0 0
        %1360 = vmatpush1.bf16.msra.mxu0 %v1297
        %1361 = vmatprep.subr.bf16.mxu0 0
        %1362 = vmatpush1.bf16.msra.mxu0 %v1298
        %1363 = vmatprep.mubr.bf16.mxu0 %v1177
        %1364 = vmatmul.mubr.bf16.gmra.mrb[0].mxu0 %v1174
        %v1365 = vpop.f32.mrb[0].mxu0
        %v1366 = vadd.f32 %v1185, %v1365
        %v1367 = vpop.f32.mrb[0].mxu0
        %v1368 = vpop.f32.mrb[0].mxu0
        %v1369 = vpop.f32.mrb[0].mxu0
        %1370 = vdwg.mxu0
        %1371 = vmatprep.subr.bf16.mxu0 0
        %1372 = vmatpush1.bf16.msra.mxu0 %v1299
        %1373 = vmatprep.subr.bf16.mxu0 0
        %1374 = vmatpush1.bf16.msra.mxu0 %v1300
        %1375 = vmatprep.subr.bf16.mxu0 0
        %1376 = vmatpush1.bf16.msra.mxu0 %v1301
        %1377 = vmatprep.subr.bf16.mxu0 0
        %1378 = vmatpush1.bf16.msra.mxu0 %v1302
        %1379 = vmatprep.subr.bf16.mxu0 0
        %1380 = vmatpush1.bf16.msra.mxu0 %v1303
        %1381 = vmatprep.subr.bf16.mxu0 0
        %1382 = vmatpush1.bf16.msra.mxu0 %v1304
        %1383 = vmatprep.subr.bf16.mxu0 0
        %1384 = vmatpush1.bf16.msra.mxu0 %v1305
        %1385 = vmatprep.subr.bf16.mxu0 0
        %1386 = vmatpush1.bf16.msra.mxu0 %v1306
        %1387 = vmatprep.subr.bf16.mxu0 0
        %1388 = vmatpush1.bf16.msra.mxu0 0
        %1389 = vmatprep.subr.bf16.mxu0 0
        %1390 = vmatpush1.bf16.msra.mxu0 0
        %1391 = vmatprep.subr.bf16.mxu0 0
        %1392 = vmatpush1.bf16.msra.mxu0 0
        %1393 = vmatprep.subr.bf16.mxu0 0
        %1394 = vmatpush1.bf16.msra.mxu0 0
        %1395 = vmatprep.subr.bf16.mxu0 0
        %1396 = vmatpush1.bf16.msra.mxu0 0
        %1397 = vmatprep.subr.bf16.mxu0 0
        %1398 = vmatpush1.bf16.msra.mxu0 0
        %1399 = vmatprep.subr.bf16.mxu0 0
        %1400 = vmatpush1.bf16.msra.mxu0 0
        %1401 = vmatprep.subr.bf16.mxu0 0
        %1402 = vmatpush1.bf16.msra.mxu0 0
        %1403 = vmatprep.mubr.bf16.mxu0 0
        %1404 = vmatmul.mubr.bf16.gmra.mrb[0].mxu0 %v1179
        %v1405 = vpop.f32.mrb[0].mxu0
        %v1406 = vadd.f32 %v1366, %v1405
        %v1407 = vpop.f32.mrb[0].mxu0
        %v1408 = vpop.f32.mrb[0].mxu0
        %v1409 = vpop.f32.mrb[0].mxu0
        %1410 = vdwg.mxu0
        %s1411 = scalar_lea.vmem [#allocation8], 1
        %v1412 = vld [vmem:[%s1411] sm:$0x1]
        %s1413 = scalar_lea.vmem [#allocation10], 1
        %v1414 = vld [vmem:[%s1413] sm:$0x1]
        %1415 = vadd.xlane.f32.xlu0 %v1406
        %v1416 = vpop.xlane.xlu0 %1415
        %v1417 = vmul.f32 %v1416, 0.03125
        %v1418 = vmul.f32 %v1406, %v1406
        %1419 = vadd.xlane.f32.xlu0 %v1418
        %v1420 = vpop.xlane.xlu0 %1419
        %v1421 = vmul.f32 %v1420, 0.03125
        %v1422 = vmul.f32 %v1417, %v1417
        %v1423 = vsub.f32 %v1421, %v1422
        %v1424 = vmax.f32 %v1423, 0.0
        %v1425 = vsub.f32 %v1406, %v1417
        %v1426 = vadd.f32 %v1424, 1e-08
        %v1427 = vrsqrt.pop %v1426
        %v1428 = vmul.f32 %v1425, %v1427
        %v1430 = vlaneseq
        %v1431 = vshrl.u32 %v1430, 7
        %v1432 = vsub.s32 0, %v1431
        %v1433 = vrot.slane %v1412, %v1432
        %v1435 = vmul.f32 %v1428, %v1433
        %v1437 = vlaneseq
        %v1438 = vshrl.u32 %v1437, 7
        %v1439 = vsub.s32 0, %v1438
        %v1440 = vrot.slane %v1414, %v1439
        %v1442 = vadd.f32 %v1435, %v1440
        %v1443 = vmax.f32 %v1442, 0.0
        %v1444 = vpack.c.bf16 %v1443, %v1443
        %s1445 = scalar_lea.vmem [#allocation11], 192
        %v1446 = vld [vmem:[%s1445] sm:$0xf]
        %v1447 = vld [vmem:[%s1445 + $0x4] sm:$0xf]
        %v1448 = vld [vmem:[%s1445 + $0x8] sm:$0xf]
        %v1449 = vld [vmem:[%s1445 + $0xc] sm:$0xf]
        %v1450 = vld [vmem:[%s1445 + $0x10] sm:$0xf]
        %v1451 = vld [vmem:[%s1445 + $0x14] sm:$0xf]
        %v1452 = vld [vmem:[%s1445 + $0x18] sm:$0xf]
        %v1453 = vld [vmem:[%s1445 + $0x1c] sm:$0xf]
        %v1454 = vld [vmem:[%s1445 + $0x20] sm:$0xf]
        %v1455 = vld [vmem:[%s1445 + $0x24] sm:$0xf]
        %v1456 = vld [vmem:[%s1445 + $0x28] sm:$0xf]
        %v1457 = vld [vmem:[%s1445 + $0x2c] sm:$0xf]
        %v1458 = vld [vmem:[%s1445 + $0x30] sm:$0xf]
        %v1459 = vld [vmem:[%s1445 + $0x34] sm:$0xf]
        %v1460 = vld [vmem:[%s1445 + $0x38] sm:$0xf]
        %v1461 = vld [vmem:[%s1445 + $0x3c] sm:$0xf]
        %v1462 = vld [vmem:[%s1445 + $0x40] sm:$0xf]
        %v1463 = vld [vmem:[%s1445 + $0x44] sm:$0xf]
        %v1464 = vld [vmem:[%s1445 + $0x48] sm:$0xf]
        %v1465 = vld [vmem:[%s1445 + $0x4c] sm:$0xf]
        %v1466 = vld [vmem:[%s1445 + $0x50] sm:$0xf]
        %v1467 = vld [vmem:[%s1445 + $0x54] sm:$0xf]
        %v1468 = vld [vmem:[%s1445 + $0x58] sm:$0xf]
        %v1469 = vld [vmem:[%s1445 + $0x5c] sm:$0xf]
        %v1470 = vld [vmem:[%s1445 + $0x60] sm:$0xf]
        %v1471 = vld [vmem:[%s1445 + $0x64] sm:$0xf]
        %v1472 = vld [vmem:[%s1445 + $0x68] sm:$0xf]
        %v1473 = vld [vmem:[%s1445 + $0x6c] sm:$0xf]
        %v1474 = vld [vmem:[%s1445 + $0x70] sm:$0xf]
        %v1475 = vld [vmem:[%s1445 + $0x74] sm:$0xf]
        %v1476 = vld [vmem:[%s1445 + $0x78] sm:$0xf]
        %v1477 = vld [vmem:[%s1445 + $0x7c] sm:$0xf]
        %v1478 = vld [vmem:[%s1445 + $0x80] sm:$0xf]
        %v1479 = vld [vmem:[%s1445 + $0x84] sm:$0xf]
        %v1480 = vld [vmem:[%s1445 + $0x88] sm:$0xf]
        %v1481 = vld [vmem:[%s1445 + $0x8c] sm:$0xf]
        %v1482 = vld [vmem:[%s1445 + $0x90] sm:$0xf]
        %v1483 = vld [vmem:[%s1445 + $0x94] sm:$0xf]
        %v1484 = vld [vmem:[%s1445 + $0x98] sm:$0xf]
        %v1485 = vld [vmem:[%s1445 + $0x9c] sm:$0xf]
        %v1486 = vld [vmem:[%s1445 + $0xa0] sm:$0xf]
        %v1487 = vld [vmem:[%s1445 + $0xa4] sm:$0xf]
        %v1488 = vld [vmem:[%s1445 + $0xa8] sm:$0xf]
        %v1489 = vld [vmem:[%s1445 + $0xac] sm:$0xf]
        %v1490 = vld [vmem:[%s1445 + $0xb0] sm:$0xf]
        %v1491 = vld [vmem:[%s1445 + $0xb4] sm:$0xf]
        %v1492 = vld [vmem:[%s1445 + $0xb8] sm:$0xf]
        %v1493 = vld [vmem:[%s1445 + $0xbc] sm:$0xf]
        %s1494 = scalar_lea.vmem [#allocation13], 1
        %v1495 = vld [vmem:[%s1494] sm:$0x1]
        %v1497 = vrot.slane %v1444, 4
        %vm1498 = vcmask 1043456
        %v1500 = vsel %vm1498, 0, %v1497
        %v1503 = vrot.slane %v1500, 2
        %v1505 = vrot.slane %v1500, 4
        %v1508 = vlaneseq
        %v1509 = vshrl.u32 %v1508, 7
        %v1510 = vsub.s32 0, %v1509
        %v1511 = vrot.slane %v1495, %v1510
        %v1561 = vunpack.c.l.b16 %v1446
        %v1562 = vunpack.c.l.b16 %v1447
        %v1563 = vunpack.c.l.b16 %v1448
        %v1564 = vunpack.c.l.b16 %v1449
        %v1565 = vunpack.c.l.b16 %v1450
        %v1566 = vunpack.c.l.b16 %v1451
        %v1567 = vunpack.c.l.b16 %v1452
        %v1568 = vunpack.c.l.b16 %v1453
        %v1569 = vunpack.c.l.b16 %v1454
        %v1570 = vunpack.c.l.b16 %v1455
        %v1571 = vunpack.c.l.b16 %v1456
        %v1572 = vunpack.c.l.b16 %v1457
        %v1573 = vunpack.c.l.b16 %v1458
        %v1574 = vunpack.c.l.b16 %v1459
        %v1575 = vunpack.c.l.b16 %v1460
        %v1576 = vunpack.c.l.b16 %v1461
        %v1577 = vunpack.c.l.b16 %v1462
        %v1578 = vunpack.c.l.b16 %v1463
        %v1579 = vunpack.c.l.b16 %v1464
        %v1580 = vunpack.c.l.b16 %v1465
        %v1581 = vunpack.c.l.b16 %v1466
        %v1582 = vunpack.c.l.b16 %v1467
        %v1583 = vunpack.c.l.b16 %v1468
        %v1584 = vunpack.c.l.b16 %v1469
        %v1585 = vunpack.c.l.b16 %v1470
        %v1586 = vunpack.c.l.b16 %v1471
        %v1587 = vunpack.c.l.b16 %v1472
        %v1588 = vunpack.c.l.b16 %v1473
        %v1589 = vunpack.c.l.b16 %v1474
        %v1590 = vunpack.c.l.b16 %v1475
        %v1591 = vunpack.c.l.b16 %v1476
        %v1592 = vunpack.c.l.b16 %v1477
        %v1593 = vunpack.c.l.b16 %v1478
        %v1594 = vunpack.c.l.b16 %v1479
        %v1595 = vunpack.c.l.b16 %v1480
        %v1596 = vunpack.c.l.b16 %v1481
        %v1597 = vunpack.c.l.b16 %v1482
        %v1598 = vunpack.c.l.b16 %v1483
        %v1599 = vunpack.c.l.b16 %v1484
        %v1600 = vunpack.c.l.b16 %v1485
        %v1601 = vunpack.c.l.b16 %v1486
        %v1602 = vunpack.c.l.b16 %v1487
        %v1603 = vunpack.c.l.b16 %v1488
        %v1604 = vunpack.c.l.b16 %v1489
        %v1605 = vunpack.c.l.b16 %v1490
        %v1606 = vunpack.c.l.b16 %v1491
        %v1607 = vunpack.c.l.b16 %v1492
        %v1608 = vunpack.c.l.b16 %v1493
        %v1609 = vpack.c.b16 %v1562, %v1561
        %v1610 = vpack.c.b16 %v1564, %v1563
        %v1611 = vpack.c.b16 %v1566, %v1565
        %v1612 = vpack.c.b16 %v1568, %v1567
        %v1613 = vpack.c.b16 %v1570, %v1569
        %v1614 = vpack.c.b16 %v1572, %v1571
        %v1615 = vpack.c.b16 %v1574, %v1573
        %v1616 = vpack.c.b16 %v1576, %v1575
        %v1617 = vpack.c.b16 %v1578, %v1577
        %v1618 = vpack.c.b16 %v1580, %v1579
        %v1619 = vpack.c.b16 %v1582, %v1581
        %v1620 = vpack.c.b16 %v1584, %v1583
        %v1621 = vpack.c.b16 %v1586, %v1585
        %v1622 = vpack.c.b16 %v1588, %v1587
        %v1623 = vpack.c.b16 %v1590, %v1589
        %v1624 = vpack.c.b16 %v1592, %v1591
        %v1625 = vpack.c.b16 %v1594, %v1593
        %v1626 = vpack.c.b16 %v1596, %v1595
        %v1627 = vpack.c.b16 %v1598, %v1597
        %v1628 = vpack.c.b16 %v1600, %v1599
        %v1629 = vpack.c.b16 %v1602, %v1601
        %v1630 = vpack.c.b16 %v1604, %v1603
        %v1631 = vpack.c.b16 %v1606, %v1605
        %v1632 = vpack.c.b16 %v1608, %v1607
        %1657 = vmatprep.subr.bf16.mxu0 0
        %1658 = vmatpush1.bf16.msra.mxu0 %v1609
        %1659 = vmatprep.subr.bf16.mxu0 0
        %1660 = vmatpush1.bf16.msra.mxu0 %v1610
        %1661 = vmatprep.subr.bf16.mxu0 0
        %1662 = vmatpush1.bf16.msra.mxu0 %v1611
        %1663 = vmatprep.subr.bf16.mxu0 0
        %1664 = vmatpush1.bf16.msra.mxu0 %v1612
        %1665 = vmatprep.subr.bf16.mxu0 0
        %1666 = vmatpush1.bf16.msra.mxu0 %v1613
        %1667 = vmatprep.subr.bf16.mxu0 0
        %1668 = vmatpush1.bf16.msra.mxu0 %v1614
        %1669 = vmatprep.subr.bf16.mxu0 0
        %1670 = vmatpush1.bf16.msra.mxu0 %v1615
        %1671 = vmatprep.subr.bf16.mxu0 0
        %1672 = vmatpush1.bf16.msra.mxu0 %v1616
        %1673 = vmatprep.subr.bf16.mxu0 0
        %1674 = vmatpush1.bf16.msra.mxu0 %v1617
        %1675 = vmatprep.subr.bf16.mxu0 0
        %1676 = vmatpush1.bf16.msra.mxu0 %v1618
        %1677 = vmatprep.subr.bf16.mxu0 0
        %1678 = vmatpush1.bf16.msra.mxu0 %v1619
        %1679 = vmatprep.subr.bf16.mxu0 0
        %1680 = vmatpush1.bf16.msra.mxu0 %v1620
        %1681 = vmatprep.subr.bf16.mxu0 0
        %1682 = vmatpush1.bf16.msra.mxu0 %v1621
        %1683 = vmatprep.subr.bf16.mxu0 0
        %1684 = vmatpush1.bf16.msra.mxu0 %v1622
        %1685 = vmatprep.subr.bf16.mxu0 0
        %1686 = vmatpush1.bf16.msra.mxu0 %v1623
        %1687 = vmatprep.subr.bf16.mxu0 0
        %1688 = vmatpush1.bf16.msra.mxu0 %v1624
        %1689 = vmatprep.mubr.bf16.mxu0 %v1503
        %1690 = vmatmul.mubr.bf16.gmra.mrb[0].mxu0 %v1500
        %v1691 = vpop.f32.mrb[0].mxu0
        %v1692 = vadd.f32 %v1511, %v1691
        %v1693 = vpop.f32.mrb[0].mxu0
        %v1694 = vpop.f32.mrb[0].mxu0
        %v1695 = vpop.f32.mrb[0].mxu0
        %1696 = vdwg.mxu0
        %1697 = vmatprep.subr.bf16.mxu0 0
        %1698 = vmatpush1.bf16.msra.mxu0 %v1625
        %1699 = vmatprep.subr.bf16.mxu0 0
        %1700 = vmatpush1.bf16.msra.mxu0 %v1626
        %1701 = vmatprep.subr.bf16.mxu0 0
        %1702 = vmatpush1.bf16.msra.mxu0 %v1627
        %1703 = vmatprep.subr.bf16.mxu0 0
        %1704 = vmatpush1.bf16.msra.mxu0 %v1628
        %1705 = vmatprep.subr.bf16.mxu0 0
        %1706 = vmatpush1.bf16.msra.mxu0 %v1629
        %1707 = vmatprep.subr.bf16.mxu0 0
        %1708 = vmatpush1.bf16.msra.mxu0 %v1630
        %1709 = vmatprep.subr.bf16.mxu0 0
        %1710 = vmatpush1.bf16.msra.mxu0 %v1631
        %1711 = vmatprep.subr.bf16.mxu0 0
        %1712 = vmatpush1.bf16.msra.mxu0 %v1632
        %1713 = vmatprep.subr.bf16.mxu0 0
        %1714 = vmatpush1.bf16.msra.mxu0 0
        %1715 = vmatprep.subr.bf16.mxu0 0
        %1716 = vmatpush1.bf16.msra.mxu0 0
        %1717 = vmatprep.subr.bf16.mxu0 0
        %1718 = vmatpush1.bf16.msra.mxu0 0
        %1719 = vmatprep.subr.bf16.mxu0 0
        %1720 = vmatpush1.bf16.msra.mxu0 0
        %1721 = vmatprep.subr.bf16.mxu0 0
        %1722 = vmatpush1.bf16.msra.mxu0 0
        %1723 = vmatprep.subr.bf16.mxu0 0
        %1724 = vmatpush1.bf16.msra.mxu0 0
        %1725 = vmatprep.subr.bf16.mxu0 0
        %1726 = vmatpush1.bf16.msra.mxu0 0
        %1727 = vmatprep.subr.bf16.mxu0 0
        %1728 = vmatpush1.bf16.msra.mxu0 0
        %1729 = vmatprep.mubr.bf16.mxu0 0
        %1730 = vmatmul.mubr.bf16.gmra.mrb[0].mxu0 %v1505
        %v1731 = vpop.f32.mrb[0].mxu0
        %v1732 = vadd.f32 %v1692, %v1731
        %v1733 = vpop.f32.mrb[0].mxu0
        %v1734 = vpop.f32.mrb[0].mxu0
        %v1735 = vpop.f32.mrb[0].mxu0
        %1736 = vdwg.mxu0
        %s1737 = scalar_lea.vmem [#allocation14], 1
        %v1738 = vld [vmem:[%s1737] sm:$0x1]
        %s1739 = scalar_lea.vmem [#allocation16], 1
        %v1740 = vld [vmem:[%s1739] sm:$0x1]
        %1741 = vadd.xlane.f32.xlu0 %v1732
        %v1742 = vpop.xlane.xlu0 %1741
        %v1743 = vmul.f32 %v1742, 0.03125
        %v1744 = vmul.f32 %v1732, %v1732
        %1745 = vadd.xlane.f32.xlu0 %v1744
        %v1746 = vpop.xlane.xlu0 %1745
        %v1747 = vmul.f32 %v1746, 0.03125
        %v1748 = vmul.f32 %v1743, %v1743
        %v1749 = vsub.f32 %v1747, %v1748
        %v1750 = vmax.f32 %v1749, 0.0
        %v1751 = vsub.f32 %v1732, %v1743
        %v1752 = vadd.f32 %v1750, 1e-08
        %v1753 = vrsqrt.pop %v1752
        %v1754 = vmul.f32 %v1751, %v1753
        %v1756 = vlaneseq
        %v1757 = vshrl.u32 %v1756, 7
        %v1758 = vsub.s32 0, %v1757
        %v1759 = vrot.slane %v1738, %v1758
        %v1761 = vmul.f32 %v1754, %v1759
        %v1763 = vlaneseq
        %v1764 = vshrl.u32 %v1763, 7
        %v1765 = vsub.s32 0, %v1764
        %v1766 = vrot.slane %v1740, %v1765
        %v1768 = vadd.f32 %v1761, %v1766
        %v1769 = vmax.f32 %v1768, 0.0
        %v1770 = vunpack.c.l.bf16 %v1119
        %v1771 = vadd.f32 %v1769, %v1770
        %v1772 = vpack.c.bf16 %v1771, %v1771
        %1773 = vst [vmem:[%s463] sm:$0xf] %v1772
        %s1774 = sand.u32 %s232, 1
        %s1775 = scalar_lea.sflag [#allocation4], %s1774
        %s1776 = sand.u32 %s232, 1
        %s1777 = smul.addr %s1776, 4
        %s1778 = scalar_lea.vmem [#allocation17], %s1777
        // Predicated region
        $region93: #{grec_forward.6} parent=55 // pred_check
          %p1779 = pneg %p242
        $region94: #{grec_forward.6} parent=55 // pred_check_branch
          %1781 = sbr.rel (%p1779) target = $region96
        $region95: #{grec_forward.6} parent=55 // pred_region
          %s1783 = ssub.s32 64, 64
          %1784 = vsyncadd %s1775, %s1783
          %s1785 = smul.addr %s30, 64
          %s1786 = scalar_lea.hbm %s9, %s1785
          %s1788 = sshll.u32 %s1778, 4
          %s1789 = int_to_ptr.vmem [resolvable:$true] %s1788
          %1791 = dma.vmem_to_hbm [thread:$0]  %s1789, 64, %s1786, %s1775
        $region96: #{grec_forward.6} parent=55 // pred_fallthru
          _
      $region56: #{grec_forward.6} parent=5 // pred_fallthru
        _
      %p1792 = scmp.le.s32.totalorder 2, %s25
      // Predicated region
      $region97: #{grec_forward.6} parent=5 // pred_check
        %p1793 = pneg %p1792
      $region98: #{grec_forward.6} parent=5 // pred_check_branch
        %1795 = sbr.rel (%p1793) target = $region100
      $region99: #{grec_forward.6} parent=5 // pred_region
        %s1796 = ssub.s32 %s25, 2
        // Predicated region
        $region101: #{grec_forward.6} parent=99 // pred_check
          %p1797 = pneg %p248
        $region102: #{grec_forward.6} parent=99 // pred_check_branch
          %1799 = sbr.rel (%p1797) target = $region104
        $region103: #{grec_forward.6} parent=99 // pred_region
          %s1800 = sand.u32 %s233, 1
          %s1801 = scalar_lea.sflag [#allocation4], %s1800
          %s1802 = sand.u32 %s233, 1
          %s1803 = smul.addr %s1802, 4
          %s1804 = scalar_lea.vmem [#allocation17], %s1803
          %1805 = dma.done %s1801, 64
        $region104: #{grec_forward.6} parent=99 // pred_fallthru
          _
      $region100: #{grec_forward.6} parent=5 // pred_fallthru
        _
    $region6: #{grec_forward.6} parent=1 // loop_footer
      %s29 = sadd.s32 1, %s25
    $region7: #{grec_forward.6} parent=1 // loop_footer_branch
      %24 = sbr.rel target = $region3
    $region8: #{grec_forward.6} parent=1 // loop_exit
      _
    %1806 = vsyncpa [#allocation3], 1
    %s1807 = scalar_lea.sflag [#allocation3], 1
    %1808 = vsyncpa %s1807, 1
    %1809 = vsyncpa [#allocation6], 1
    %1810 = vsyncpa [#allocation9], 1
    %1811 = vsyncpa [#allocation12], 1
    %1812 = vsyncpa [#allocation15], 1
    %1813 = vsyncpa [#allocation4], 1
    %s1814 = scalar_lea.sflag [#allocation4], 1
    %1815 = vsyncpa %s1814, 1

</llo_original>
